<compile_context>
chip_gen: v7x
topology: tpu7x:2x2x1
jax: 0.10.0
libtpu: 0.0.40
codegen_flags: <defaults>
</compile_context>

<pallas_src>
import functools

import jax
import jax.numpy as jnp
from jax import lax
from jax.experimental import pallas as pl
from jax.experimental.pallas import tpu as pltpu


# ----------------------------------------------------------------------------
# Kernel 1: GraphEncoder (2-layer GCN + per-graph mean pooling)
# grid = (B,): one graph per grid step (block-diagonal structure exploited).
# ----------------------------------------------------------------------------
def _gcn_encoder_kernel(a_ref, x_ref, w1_ref, b1_ref, w2_ref, b2_ref,
                        node_ref, glob_ref):
    a = a_ref[0]                                    # (Np, Np) bf16
    x = x_ref[0]                                    # (Np, F)  bf16
    h1 = jnp.dot(x, w1_ref[...], preferred_element_type=jnp.float32)
    h1 = jnp.dot(a, h1.astype(jnp.bfloat16),
                 preferred_element_type=jnp.float32) + b1_ref[...]
    h1 = jnp.maximum(h1, 0.0)
    h2 = jnp.dot(h1.astype(jnp.bfloat16), w2_ref[...],
                 preferred_element_type=jnp.float32)
    h2 = jnp.dot(a, h2.astype(jnp.bfloat16),
                 preferred_element_type=jnp.float32) + b2_ref[...]
    node_ref[0] = h2
    # NOTE: mean over all N_per nodes (matches original global_mean_pool);
    # if padded nodes were ever present this would be slightly biased.
    glob_ref[0] = jnp.mean(h2, axis=0, keepdims=True)


def gcn_encoder(adj_norm_b, x_b, w1, b1, w2, b2):
    b, n_per, f = x_b.shape
    h = w1.shape[1]
    d = w2.shape[1]
    node_emb, glob = pl.pallas_call(
        _gcn_encoder_kernel,
        out_shape=(jax.ShapeDtypeStruct((b, n_per, d), jnp.float32),
                   jax.ShapeDtypeStruct((b, 1, d), jnp.float32)),
        grid=(b,),
        in_specs=[
            pl.BlockSpec((1, n_per, n_per), lambda i: (i, 0, 0)),
            pl.BlockSpec((1, n_per, f), lambda i: (i, 0, 0)),
            pl.BlockSpec((f, h), lambda i: (0, 0)),
            pl.BlockSpec((1, h), lambda i: (0, 0)),
            pl.BlockSpec((h, d), lambda i: (0, 0)),
            pl.BlockSpec((1, d), lambda i: (0, 0)),
        ],
        out_specs=(pl.BlockSpec((1, n_per, d), lambda i: (i, 0, 0)),
                   pl.BlockSpec((1, 1, d), lambda i: (i, 0, 0))),
        compiler_params=pltpu.CompilerParams(
            dimension_semantics=("parallel",)),
    )(adj_norm_b.astype(jnp.bfloat16), x_b.astype(jnp.bfloat16),
      w1.astype(jnp.bfloat16), b1, w2.astype(jnp.bfloat16), b2)
    return node_emb, glob[:, 0, :]


# ----------------------------------------------------------------------------
# Kernel 2: EdgeAssignmentLineGNN (2-layer GCN on the line graph + linear head)
# ----------------------------------------------------------------------------
def _line_gnn_kernel(l_ref, e_ref, w1_ref, b1_ref, w2_ref, b2_ref,
                     wo_ref, bo_ref, out_ref):
    l = l_ref[...]                                  # (E, E) bf16
    h = jnp.dot(e_ref[...], w1_ref[...], preferred_element_type=jnp.float32)
    h = jnp.maximum(jnp.dot(l, h.astype(jnp.bfloat16),
                            preferred_element_type=jnp.float32)
                    + b1_ref[...], 0.0)
    h = jnp.dot(h.astype(jnp.bfloat16), w2_ref[...],
                preferred_element_type=jnp.float32)
    h = jnp.maximum(jnp.dot(l, h.astype(jnp.bfloat16),
                            preferred_element_type=jnp.float32)
                    + b2_ref[...], 0.0)
    out_ref[...] = jnp.dot(h.astype(jnp.bfloat16), wo_ref[...],
                           preferred_element_type=jnp.float32) + bo_ref[...]


def line_gnn_assigner(l_norm, edge_feats, w1, b1, w2, b2, wo, bo):
    e = edge_feats.shape[0]
    num_trucks = wo.shape[1]
    return pl.pallas_call(
        _line_gnn_kernel,
        out_shape=jax.ShapeDtypeStruct((e, num_trucks), jnp.float32),
    )(l_norm.astype(jnp.bfloat16), edge_feats.astype(jnp.bfloat16),
      w1.astype(jnp.bfloat16), b1, w2.astype(jnp.bfloat16), b2,
      wo.astype(jnp.bfloat16), bo)


# ----------------------------------------------------------------------------
# Kernel 3: InterleavedHardMaskDecoder (greedy hard-masked pointer decoding)
# grid = (ceil(B/G),): G graphs per grid step; per-block node banks are flattened
# to L = round_up(G*N, 128) lanes (lane-dense scores / stores), with cross-graph
# columns masked out via the validity mask.
# ----------------------------------------------------------------------------
def _ptr_decoder_kernel(gemb_ref, nodes_ref, depot_ref, valid_ref,
                        wcat_ref, wp_ref, logits_ref,
                        *, G, L, D, HP, seq_len):
    nodes = nodes_ref[...]                          # (L, D)
    g = gemb_ref[...]                               # (G, D)
    depot = depot_ref[...]                          # (G, L) one-hot in own block
    valid = valid_ref[...]                          # (G, L) 1/0, own block only
    wcat = wcat_ref[...]                            # (2D+HP+1, HP)
    wg = wcat[0:D]
    we = wcat[D:2 * D]
    wq = wcat[2 * D:2 * D + HP]
    bg = wcat[2 * D + HP:2 * D + HP + 1]
    wp = wp_ref[...]                                # (HP, D)

    h0 = jnp.tanh(jnp.dot(g, wg, preferred_element_type=jnp.float32) + bg)
    c = jnp.dot(h0, wq, preferred_element_type=jnp.float32)      # hoisted (G, HP)
    # Pre-projected node bank: scores = q @ (Wp @ nodes^T), computed once.
    pn = lax.dot_general(wp, nodes, (((1,), (1,)), ((), ())),
                         preferred_element_type=jnp.float32)     # (HP, L)
    prev0 = jnp.dot(depot, nodes, preferred_element_type=jnp.float32)  # (G, D)
    scale = 1.0 / (float(D) ** 0.5)
    iota = lax.broadcasted_iota(jnp.int32, (G, L), 1)
    not_depot = 1.0 - depot

    def step(t, carry):
        selected, prev = carry
        q = jnp.tanh(c + jnp.dot(prev, we, preferred_element_type=jnp.float32))
        scores = jnp.dot(q, pn, preferred_element_type=jnp.float32) * scale
        allow = (valid > 0.5) & (selected < 0.5)
        masked = jnp.where(allow, scores, -1e9)                  # (G, L)
        logits_ref[0, pl.ds(t, 1), :, :] = masked[None]
        idx = jnp.argmax(masked, axis=-1)[:, None]               # (G, 1)
        onehot = (iota == idx).astype(jnp.float32)               # (G, L)
        # depot may be revisited (interleaving between trucks): never mask it
        new_selected = jnp.maximum(selected, onehot * not_depot)
        new_prev = jnp.dot(onehot, nodes, preferred_element_type=jnp.float32)
        return new_selected, new_prev

    sel0 = jnp.zeros((G, L), jnp.float32)
    lax.fori_loop(0, seq_len, step, (sel0, prev0), unroll=True)


def ptr_decoder(global_emb, node_emb_b, depot_onehot, valid_mask,
                wg, bg, wq, we, wp, seq_len, graphs_per_block=8):
    b, n, d = node_emb_b.shape
    hp = wg.shape[1]
    G = min(graphs_per_block, b)
    nb = -(-b // G)                                  # ceil(b / G)
    bp = nb * G
    L = ((G * n + 127) // 128) * 128                 # lane-dense column width

    pad_b = bp - b

    def pad_batch(x):
        pad = ((0, pad_b),) + ((0, 0),) * (x.ndim - 1)
        return jnp.pad(x, pad)

    gemb = pad_batch(global_emb)                     # (bp, d)
    nodes = pad_batch(node_emb_b)                    # (bp, n, d)
    depot = pad_batch(depot_onehot)                  # (bp, n)
    valid = pad_batch(valid_mask)                    # (bp, n)

    # Flatten node banks per block; pad lanes to L.
    nodes_blk = nodes.reshape(nb, G * n, d)
    nodes_blk = jnp.pad(nodes_blk, ((0, 0), (0, L - G * n), (0, 0)))
    nodes_flat = nodes_blk.reshape(nb * L, d)

    # Place each graph's n-wide mask into its own block of the L-wide row.
    def to_full(m):
        m_blk = m.reshape(nb, G, n)
        eye = jnp.eye(G, dtype=m.dtype)
        full = m_blk[:, :, None, :] * eye[None, :, :, None]      # (nb, G, G, n)
        full = full.reshape(nb, G, G * n)
        full = jnp.pad(full, ((0, 0), (0, 0), (0, L - G * n)))
        return full.reshape(nb * G, L)

    depot_full = to_full(depot)
    valid_full = to_full(valid)

    # Single weight slab for the Hp-column weights (one DMA / one VMEM buffer).
    wcat = jnp.concatenate([wg, we, wq, bg], axis=0)             # (2d+hp+1, hp)

    kernel = functools.partial(_ptr_decoder_kernel,
                               G=G, L=L, D=d, HP=hp, seq_len=seq_len)
    logits_full = pl.pallas_call(
        kernel,
        out_shape=jax.ShapeDtypeStruct((nb, seq_len, G, L), jnp.float32),
        grid=(nb,),
        in_specs=[
            pl.BlockSpec((G, d), lambda i: (i, 0)),              # global emb
            pl.BlockSpec((L, d), lambda i: (i, 0)),              # node bank
            pl.BlockSpec((G, L), lambda i: (i, 0)),              # depot one-hot
            pl.BlockSpec((G, L), lambda i: (i, 0)),              # valid mask
            pl.BlockSpec((2 * d + hp + 1, hp), lambda i: (0, 0)),  # [Wg;We;Wq;bg]
            pl.BlockSpec((hp, d), lambda i: (0, 0)),             # Wp
        ],
        out_specs=pl.BlockSpec((1, seq_len, G, L), lambda i: (i, 0, 0, 0)),
        compiler_params=pltpu.CompilerParams(
            dimension_semantics=("parallel",)),
    )(gemb, nodes_flat, depot_full, valid_full, wcat, wp)

    # Extract each graph's own n-column block (block-diagonal of the G x G*n slab).
    lf = logits_full[..., :G * n].reshape(nb, seq_len, G, G, n)
    diag = jnp.diagonal(lf, axis1=2, axis2=3)                    # (nb, seq_len, n, G)
    ptr_logits = jnp.moveaxis(diag, -1, 1).reshape(nb * G, seq_len, n)[:b]
    return ptr_logits


# ----------------------------------------------------------------------------
# Parameter / input construction and full forward (glue in plain JAX)
# ----------------------------------------------------------------------------
def _normalize_adj(adj):
    n = adj.shape[0]
    a_hat = adj + jnp.eye(n, dtype=jnp.float32)
    deg = jnp.sum(a_hat, axis=-1)
    d_inv_sqrt = 1.0 / jnp.sqrt(jnp.maximum(deg, 1e-6))
    return a_hat * d_inv_sqrt[:, None] * d_inv_sqrt[None, :]


def make_params(key, node_in_dim, gnn_hid, gnn_out, assign_hid, ptr_hid,
                max_trucks):
    ks = jax.random.split(key, 12)
    s = 0.1
    p = {
        # GraphEncoder
        "enc_w1": jax.random.normal(ks[0], (node_in_dim, gnn_hid), jnp.float32) * s,
        "enc_b1": jnp.zeros((1, gnn_hid), jnp.float32),
        "enc_w2": jax.random.normal(ks[1], (gnn_hid, gnn_out), jnp.float32) * s,
        "enc_b2": jnp.zeros((1, gnn_out), jnp.float32),
        # EdgeAssignmentLineGNN
        "asg_w1": jax.random.normal(ks[2], (1 + max_trucks, assign_hid), jnp.float32) * s,
        "asg_b1": jnp.zeros((1, assign_hid), jnp.float32),
        "asg_w2": jax.random.normal(ks[3], (assign_hid, assign_hid), jnp.float32) * s,
        "asg_b2": jnp.zeros((1, assign_hid), jnp.float32),
        "asg_wo": jax.random.normal(ks[4], (assign_hid, max_trucks), jnp.float32) * s,
        "asg_bo": jnp.zeros((1, max_trucks), jnp.float32),
        # InterleavedHardMaskDecoder (pointer)
        "dec_wg": jax.random.normal(ks[5], (gnn_out, ptr_hid), jnp.float32) * s,
        "dec_bg": jnp.zeros((1, ptr_hid), jnp.float32),
        "dec_wq": jax.random.normal(ks[6], (ptr_hid, ptr_hid), jnp.float32) * s,
        "dec_we": jax.random.normal(ks[7], (gnn_out, ptr_hid), jnp.float32) * s,
        "dec_wp": jax.random.normal(ks[8], (ptr_hid, gnn_out), jnp.float32) * s,
    }
    return p


@functools.partial(jax.jit, static_argnames=("seq_len",))
def sequence_routing_forward(params, x_b, adj_norm_b, edge_feats, line_adj_norm,
                             depot_onehot, valid_mask, seq_len):
    # Stage 1: graph encoder (Pallas kernel, gridded over graphs)
    node_emb_b, global_emb = gcn_encoder(
        adj_norm_b, x_b, params["enc_w1"], params["enc_b1"],
        params["enc_w2"], params["enc_b2"])

    # Stage 1b: line-graph edge->truck assignment logits (Pallas kernel)
    lg_logits = line_gnn_assigner(
        line_adj_norm, edge_feats,
        params["asg_w1"], params["asg_b1"],
        params["asg_w2"], params["asg_b2"],
        params["asg_wo"], params["asg_bo"])

    # Stage 2: pointer decoding (Pallas kernel), greedy / no teacher forcing
    ptr_logits = ptr_decoder(
        global_emb, node_emb_b, depot_onehot, valid_mask,
        params["dec_wg"], params["dec_bg"], params["dec_wq"],
        params["dec_we"], params["dec_wp"], seq_len)
    routes = jnp.argmax(ptr_logits, axis=-1).astype(jnp.int32)   # (B, seq_len)
    return lg_logits, routes, ptr_logits


if __name__ == "__main__":
    # Small, module-consistent configuration
    B = 2              # graphs in batch
    N_PER = 8          # nodes per graph
    E = 16             # total line-graph nodes (= edges)
    NODE_IN_DIM = 4
    GNN_HID = 32
    GNN_OUT = 32
    ASSIGN_HID = 32
    PTR_HID = 32
    SEQ_LEN = 8
    MAX_TRUCKS = 3

    key = jax.random.PRNGKey(0)
    k_adj, k_x, k_ladj, k_e, k_par = jax.random.split(key, 5)

    # Per-graph adjacency (symmetric), normalized per graph (equivalent to the
    # block-diagonal batched normalization).
    adj_small = (jax.random.uniform(k_adj, (B, N_PER, N_PER)) > 0.5).astype(jnp.float32)
    adj_small = jnp.maximum(adj_small, jnp.swapaxes(adj_small, 1, 2))
    adj_norm_b = jax.vmap(_normalize_adj)(adj_small)             # (B, N_PER, N_PER)

    # Node features [B, N_PER, node_in_dim]
    x_b = jax.random.normal(k_x, (B, N_PER, NODE_IN_DIM), jnp.float32)

    # Line graph (edges as nodes) adjacency + edge features [E, 1 + max_trucks]
    ladj = (jax.random.uniform(k_ladj, (E, E)) > 0.5).astype(jnp.float32)
    ladj = jnp.maximum(ladj, ladj.T)
    line_adj_norm = _normalize_adj(ladj)
    edge_feats = jax.random.normal(k_e, (E, 1 + MAX_TRUCKS), jnp.float32)

    # Depot indices (local per graph) and valid node masks
    depot_indices = jnp.zeros((B,), jnp.int32)
    depot_onehot = jax.nn.one_hot(depot_indices, N_PER, dtype=jnp.float32)  # (B, N_PER)
    valid_mask = jnp.ones((B, N_PER), jnp.float32)

    params = make_params(k_par, NODE_IN_DIM, GNN_HID, GNN_OUT,
                         ASSIGN_HID, PTR_HID, MAX_TRUCKS)

    lg_logits, routes, ptr_logits = sequence_routing_forward(
        params, x_b, adj_norm_b, edge_feats, line_adj_norm,
        depot_onehot, valid_mask, SEQ_LEN)
    jax.block_until_ready((lg_logits, routes, ptr_logits))

    assert lg_logits.shape == (E, MAX_TRUCKS)
    assert routes.shape == (B, SEQ_LEN)
    assert ptr_logits.shape == (B, SEQ_LEN, N_PER)
    print("KERNEL_OK")
</pallas_src>

<mosaic_0001>
module attributes {stable_mosaic.version = 11 : i64} {
  func.func @_gcn_encoder_kernel(%arg0: i32, %arg1: memref<1x8x8xbf16, #tpu.memory_space<vmem>>, %arg2: memref<1x8x4xbf16, #tpu.memory_space<vmem>>, %arg3: memref<4x32xbf16, #tpu.memory_space<vmem>>, %arg4: memref<1x32xf32, #tpu.memory_space<vmem>>, %arg5: memref<32x32xbf16, #tpu.memory_space<vmem>>, %arg6: memref<1x32xf32, #tpu.memory_space<vmem>>, %arg7: memref<1x8x32xf32, #tpu.memory_space<vmem>>, %arg8: memref<1x1x32xf32, #tpu.memory_space<vmem>>) attributes {dimension_semantics = [#tpu.dimension_semantics<parallel>], iteration_bounds = array<i64: 2>, scalar_prefetch = 0 : i64, scratch_operands = 0 : i64, tpu.core_type = #tpu.core_type<tc>, window_params = [{transform_indices = @transform_0, window_bounds = array<i64: 1, 8, 8>}, {transform_indices = @transform_1, window_bounds = array<i64: 1, 8, 4>}, {pipeline_mode = #tpu.pipeline_mode<synchronous>, transform_indices = @transform_2, window_bounds = array<i64: 4, 32>}, {pipeline_mode = #tpu.pipeline_mode<synchronous>, transform_indices = @transform_3, window_bounds = array<i64: 1, 32>}, {pipeline_mode = #tpu.pipeline_mode<synchronous>, transform_indices = @transform_4, window_bounds = array<i64: 32, 32>}, {pipeline_mode = #tpu.pipeline_mode<synchronous>, transform_indices = @transform_5, window_bounds = array<i64: 1, 32>}, {transform_indices = @transform_6, window_bounds = array<i64: 1, 8, 32>}, {transform_indices = @transform_7, window_bounds = array<i64: 1, 1, 32>}]} {
    %c0 = arith.constant 0 : index
    %c0_0 = arith.constant 0 : index
    %c0_1 = arith.constant 0 : index
    %0 = vector.load %arg1[%c0, %c0_0, %c0_1] : memref<1x8x8xbf16, #tpu.memory_space<vmem>>, vector<1x8x8xbf16>
    %1 = vector.shape_cast %0 : vector<1x8x8xbf16> to vector<8x8xbf16>
    %c0_2 = arith.constant 0 : index
    %c0_3 = arith.constant 0 : index
    %c0_4 = arith.constant 0 : index
    %2 = vector.load %arg2[%c0_2, %c0_3, %c0_4] : memref<1x8x4xbf16, #tpu.memory_space<vmem>>, vector<1x8x4xbf16>
    %3 = vector.shape_cast %2 : vector<1x8x4xbf16> to vector<8x4xbf16>
    %c0_5 = arith.constant 0 : index
    %c0_6 = arith.constant 0 : index
    %4 = vector.load %arg3[%c0_5, %c0_6] : memref<4x32xbf16, #tpu.memory_space<vmem>>, vector<4x32xbf16>
    %cst = arith.constant dense<0.000000e+00> : vector<8x32xf32>
    %5 = tpu.matmul %3, %4, %cst {dimension_numbers = #tpu.dot_dimension_numbers<[1], [0], [0], [1], [0, 0, 1, 1], [], []>} : vector<8x4xbf16>, vector<4x32xbf16>, vector<8x32xf32> -> vector<8x32xf32>
    %6 = arith.truncf %5 : vector<8x32xf32> to vector<8x32xbf16>
    %cst_7 = arith.constant dense<0.000000e+00> : vector<8x32xf32>
    %7 = tpu.matmul %1, %6, %cst_7 {dimension_numbers = #tpu.dot_dimension_numbers<[1], [0], [0], [1], [0, 0, 1, 1], [], []>} : vector<8x8xbf16>, vector<8x32xbf16>, vector<8x32xf32> -> vector<8x32xf32>
    %c0_8 = arith.constant 0 : index
    %c0_9 = arith.constant 0 : index
    %8 = vector.load %arg4[%c0_8, %c0_9] : memref<1x32xf32, #tpu.memory_space<vmem>>, vector<1x32xf32>
    %9 = vector.broadcast %8 : vector<1x32xf32> to vector<8x32xf32>
    %10 = arith.addf %7, %9 : vector<8x32xf32>
    %cst_10 = arith.constant 0.000000e+00 : f32
    %11 = vector.broadcast %cst_10 : f32 to vector<8x32xf32>
    %12 = arith.maximumf %10, %11 : vector<8x32xf32>
    %13 = arith.truncf %12 : vector<8x32xf32> to vector<8x32xbf16>
    %c0_11 = arith.constant 0 : index
    %c0_12 = arith.constant 0 : index
    %14 = vector.load %arg5[%c0_11, %c0_12] : memref<32x32xbf16, #tpu.memory_space<vmem>>, vector<32x32xbf16>
    %cst_13 = arith.constant dense<0.000000e+00> : vector<8x32xf32>
    %15 = tpu.matmul %13, %14, %cst_13 {dimension_numbers = #tpu.dot_dimension_numbers<[1], [0], [0], [1], [0, 0, 1, 1], [], []>} : vector<8x32xbf16>, vector<32x32xbf16>, vector<8x32xf32> -> vector<8x32xf32>
    %16 = arith.truncf %15 : vector<8x32xf32> to vector<8x32xbf16>
    %cst_14 = arith.constant dense<0.000000e+00> : vector<8x32xf32>
    %17 = tpu.matmul %1, %16, %cst_14 {dimension_numbers = #tpu.dot_dimension_numbers<[1], [0], [0], [1], [0, 0, 1, 1], [], []>} : vector<8x8xbf16>, vector<8x32xbf16>, vector<8x32xf32> -> vector<8x32xf32>
    %c0_15 = arith.constant 0 : index
    %c0_16 = arith.constant 0 : index
    %18 = vector.load %arg6[%c0_15, %c0_16] : memref<1x32xf32, #tpu.memory_space<vmem>>, vector<1x32xf32>
    %19 = vector.broadcast %18 : vector<1x32xf32> to vector<8x32xf32>
    %20 = arith.addf %17, %19 : vector<8x32xf32>
    %c0_17 = arith.constant 0 : index
    %c0_18 = arith.constant 0 : index
    %c0_19 = arith.constant 0 : index
    %21 = vector.load %arg7[%c0_17, %c0_18, %c0_19] : memref<1x8x32xf32, #tpu.memory_space<vmem>>, vector<1x8x32xf32>
    %22 = vector.shape_cast %21 : vector<1x8x32xf32> to vector<8x32xf32>
    %23 = vector.shape_cast %20 : vector<8x32xf32> to vector<1x8x32xf32>
    tpu.vector_store %arg7[%c0_17, %c0_18, %c0_19], %23 {strides = array<i32>} : memref<1x8x32xf32, #tpu.memory_space<vmem>>, vector<1x8x32xf32>,
    %cst_20 = arith.constant dense<0.000000e+00> : vector<32xf32>
    %24 = vector.multi_reduction <add>, %20, %cst_20 [0] : vector<8x32xf32> to vector<32xf32>
    %25 = vector.shape_cast %24 : vector<32xf32> to vector<1x32xf32>
    %cst_21 = arith.constant 8.000000e+00 : f32
    %26 = vector.broadcast %cst_21 : f32 to vector<1x32xf32>
    %27 = arith.divf %25, %26 : vector<1x32xf32>
    %c0_22 = arith.constant 0 : index
    %c0_23 = arith.constant 0 : index
    %c0_24 = arith.constant 0 : index
    %28 = vector.load %arg8[%c0_22, %c0_23, %c0_24] : memref<1x1x32xf32, #tpu.memory_space<vmem>>, vector<1x1x32xf32>
    %29 = vector.shape_cast %28 : vector<1x1x32xf32> to vector<1x32xf32>
    %30 = vector.shape_cast %27 : vector<1x32xf32> to vector<1x1x32xf32>
    tpu.vector_store %arg8[%c0_22, %c0_23, %c0_24], %30 {strides = array<i32>} : memref<1x1x32xf32, #tpu.memory_space<vmem>>, vector<1x1x32xf32>,
    return
  }
  func.func @transform_0(%arg0: i32) -> (i32, i32, i32) {
    %c0_i32 = arith.constant 0 : i32
    %c0_i32_0 = arith.constant 0 : i32
    %c0_i32_1 = arith.constant 0 : i32
    return %arg0, %c0_i32, %c0_i32_0 : i32, i32, i32
  }
  func.func @transform_1(%arg0: i32) -> (i32, i32, i32) {
    %c0_i32 = arith.constant 0 : i32
    %c0_i32_0 = arith.constant 0 : i32
    %c0_i32_1 = arith.constant 0 : i32
    return %arg0, %c0_i32, %c0_i32_0 : i32, i32, i32
  }
  func.func @transform_2(%arg0: i32) -> (i32, i32) {
    %c0_i32 = arith.constant 0 : i32
    %c0_i32_0 = arith.constant 0 : i32
    %c0_i32_1 = arith.constant 0 : i32
    return %c0_i32, %c0_i32_0 : i32, i32
  }
  func.func @transform_3(%arg0: i32) -> (i32, i32) {
    %c0_i32 = arith.constant 0 : i32
    %c0_i32_0 = arith.constant 0 : i32
    %c0_i32_1 = arith.constant 0 : i32
    return %c0_i32, %c0_i32_0 : i32, i32
  }
  func.func @transform_4(%arg0: i32) -> (i32, i32) {
    %c0_i32 = arith.constant 0 : i32
    %c0_i32_0 = arith.constant 0 : i32
    %c0_i32_1 = arith.constant 0 : i32
    return %c0_i32, %c0_i32_0 : i32, i32
  }
  func.func @transform_5(%arg0: i32) -> (i32, i32) {
    %c0_i32 = arith.constant 0 : i32
    %c0_i32_0 = arith.constant 0 : i32
    %c0_i32_1 = arith.constant 0 : i32
    return %c0_i32, %c0_i32_0 : i32, i32
  }
  func.func @transform_6(%arg0: i32) -> (i32, i32, i32) {
    %c0_i32 = arith.constant 0 : i32
    %c0_i32_0 = arith.constant 0 : i32
    %c0_i32_1 = arith.constant 0 : i32
    return %arg0, %c0_i32, %c0_i32_0 : i32, i32, i32
  }
  func.func @transform_7(%arg0: i32) -> (i32, i32, i32) {
    %c0_i32 = arith.constant 0 : i32
    %c0_i32_0 = arith.constant 0 : i32
    %c0_i32_1 = arith.constant 0 : i32
    return %arg0, %c0_i32, %c0_i32_0 : i32, i32, i32
  }
}

module attributes {stable_mosaic.version = 11 : i64} {
  func.func @_ptr_decoder_kernel(%arg0: i32, %arg1: memref<2x32xf32, #tpu.memory_space<vmem>>, %arg2: memref<128x32xf32, #tpu.memory_space<vmem>>, %arg3: memref<2x128xf32, #tpu.memory_space<vmem>>, %arg4: memref<2x128xf32, #tpu.memory_space<vmem>>, %arg5: memref<97x32xf32, #tpu.memory_space<vmem>>, %arg6: memref<32x32xf32, #tpu.memory_space<vmem>>, %arg7: memref<1x8x2x128xf32, #tpu.memory_space<vmem>>) attributes {dimension_semantics = [#tpu.dimension_semantics<parallel>], iteration_bounds = array<i64: 1>, scalar_prefetch = 0 : i64, scratch_operands = 0 : i64, tpu.core_type = #tpu.core_type<tc>, window_params = [{transform_indices = @transform_0, window_bounds = array<i64: 2, 32>}, {transform_indices = @transform_1, window_bounds = array<i64: 128, 32>}, {transform_indices = @transform_2, window_bounds = array<i64: 2, 128>}, {transform_indices = @transform_3, window_bounds = array<i64: 2, 128>}, {pipeline_mode = #tpu.pipeline_mode<synchronous>, transform_indices = @transform_4, window_bounds = array<i64: 97, 32>}, {pipeline_mode = #tpu.pipeline_mode<synchronous>, transform_indices = @transform_5, window_bounds = array<i64: 32, 32>}, {transform_indices = @transform_6, window_bounds = array<i64: 1, 8, 2, 128>}]} {
    %c0 = arith.constant 0 : index
    %c0_0 = arith.constant 0 : index
    %0 = vector.load %arg2[%c0, %c0_0] : memref<128x32xf32, #tpu.memory_space<vmem>>, vector<128x32xf32>
    %c0_1 = arith.constant 0 : index
    %c0_2 = arith.constant 0 : index
    %1 = vector.load %arg1[%c0_1, %c0_2] : memref<2x32xf32, #tpu.memory_space<vmem>>, vector<2x32xf32>
    %c0_3 = arith.constant 0 : index
    %c0_4 = arith.constant 0 : index
    %2 = vector.load %arg3[%c0_3, %c0_4] : memref<2x128xf32, #tpu.memory_space<vmem>>, vector<2x128xf32>
    %c0_5 = arith.constant 0 : index
    %c0_6 = arith.constant 0 : index
    %3 = vector.load %arg4[%c0_5, %c0_6] : memref<2x128xf32, #tpu.memory_space<vmem>>, vector<2x128xf32>
    %c0_7 = arith.constant 0 : index
    %c0_8 = arith.constant 0 : index
    %4 = vector.load %arg5[%c0_7, %c0_8] : memref<97x32xf32, #tpu.memory_space<vmem>>, vector<97x32xf32>
    %5 = vector.extract_strided_slice %4 {offsets = [0, 0], sizes = [32, 32], strides = [1, 1]} : vector<97x32xf32> to vector<32x32xf32>
    %6 = vector.extract_strided_slice %4 {offsets = [32, 0], sizes = [32, 32], strides = [1, 1]} : vector<97x32xf32> to vector<32x32xf32>
    %7 = vector.extract_strided_slice %4 {offsets = [64, 0], sizes = [32, 32], strides = [1, 1]} : vector<97x32xf32> to vector<32x32xf32>
    %8 = vector.extract_strided_slice %4 {offsets = [96, 0], sizes = [1, 32], strides = [1, 1]} : vector<97x32xf32> to vector<1x32xf32>
    %c0_9 = arith.constant 0 : index
    %c0_10 = arith.constant 0 : index
    %9 = vector.load %arg6[%c0_9, %c0_10] : memref<32x32xf32, #tpu.memory_space<vmem>>, vector<32x32xf32>
    %cst = arith.constant dense<0.000000e+00> : vector<2x32xf32>
    %10 = tpu.matmul %1, %5, %cst {dimension_numbers = #tpu.dot_dimension_numbers<[1], [0], [0], [1], [0, 0, 1, 1], [], []>} : vector<2x32xf32>, vector<32x32xf32>, vector<2x32xf32> -> vector<2x32xf32>
    %11 = vector.broadcast %8 : vector<1x32xf32> to vector<2x32xf32>
    %12 = arith.addf %10, %11 : vector<2x32xf32>
    %13 = math.tanh %12 : vector<2x32xf32>
    %cst_11 = arith.constant dense<0.000000e+00> : vector<2x32xf32>
    %14 = tpu.matmul %13, %7, %cst_11 {dimension_numbers = #tpu.dot_dimension_numbers<[1], [0], [0], [1], [0, 0, 1, 1], [], []>} : vector<2x32xf32>, vector<32x32xf32>, vector<2x32xf32> -> vector<2x32xf32>
    %cst_12 = arith.constant dense<0.000000e+00> : vector<32x128xf32>
    %15 = tpu.matmul %9, %0, %cst_12 {dimension_numbers = #tpu.dot_dimension_numbers<[1], [1], [0], [0], [0, 0, 1, 0], [], []>} : vector<32x32xf32>, vector<128x32xf32>, vector<32x128xf32> -> vector<32x128xf32>
    %cst_13 = arith.constant dense<0.000000e+00> : vector<2x32xf32>
    %16 = tpu.matmul %2, %0, %cst_13 {dimension_numbers = #tpu.dot_dimension_numbers<[1], [0], [0], [1], [0, 0, 1, 1], [], []>} : vector<2x128xf32>, vector<128x32xf32>, vector<2x32xf32> -> vector<2x32xf32>
    %17 = tpu.iota {dimensions = array<i32: 1>} : vector<2x128xi32>
    %cst_14 = arith.constant 1.000000e+00 : f32
    %18 = vector.broadcast %cst_14 : f32 to vector<2x128xf32>
    %19 = arith.subf %18, %2 : vector<2x128xf32>
    %cst_15 = arith.constant 0.000000e+00 : f32
    %20 = vector.broadcast %cst_15 : f32 to vector<2x128xf32>
    %c0_i32 = arith.constant 0 : i32
    %cst_16 = arith.constant dense<0.000000e+00> : vector<2x32xf32>
    %21 = tpu.matmul %16, %6, %cst_16 {dimension_numbers = #tpu.dot_dimension_numbers<[1], [0], [0], [1], [0, 0, 1, 1], [], []>} : vector<2x32xf32>, vector<32x32xf32>, vector<2x32xf32> -> vector<2x32xf32>
    %22 = arith.addf %14, %21 : vector<2x32xf32>
    %23 = math.tanh %22 : vector<2x32xf32>
    %cst_17 = arith.constant dense<0.000000e+00> : vector<2x128xf32>
    %24 = tpu.matmul %23, %15, %cst_17 {dimension_numbers = #tpu.dot_dimension_numbers<[1], [0], [0], [1], [0, 0, 1, 1], [], []>} : vector<2x32xf32>, vector<32x128xf32>, vector<2x128xf32> -> vector<2x128xf32>
    %cst_18 = arith.constant 0.176776692 : f32
    %25 = vector.broadcast %cst_18 : f32 to vector<2x128xf32>
    %26 = arith.mulf %24, %25 : vector<2x128xf32>
    %cst_19 = arith.constant 5.000000e-01 : f32
    %27 = vector.broadcast %cst_19 : f32 to vector<2x128xf32>
    %28 = arith.cmpf ogt, %3, %27 : vector<2x128xf32>
    %cst_20 = arith.constant 5.000000e-01 : f32
    %29 = vector.broadcast %cst_20 : f32 to vector<2x128xf32>
    %30 = arith.cmpf olt, %20, %29 : vector<2x128xf32>
    %31 = arith.andi %28, %30 : vector<2x128xi1>
    %cst_21 = arith.constant -1.000000e+09 : f32
    %32 = vector.broadcast %cst_21 : f32 to vector<2x128xf32>
    %33 = arith.select %31, %26, %32 : vector<2x128xi1>, vector<2x128xf32>
    %34 = vector.shape_cast %33 : vector<2x128xf32> to vector<1x2x128xf32>
    %c0_22 = arith.constant 0 : index
    %35 = arith.index_cast %c0_i32 : i32 to index
    %c0_23 = arith.constant 0 : index
    %c0_24 = arith.constant 0 : index
    %36 = vector.load %arg7[%c0_22, %35, %c0_23, %c0_24] : memref<1x8x2x128xf32, #tpu.memory_space<vmem>>, vector<1x1x2x128xf32>
    %37 = vector.shape_cast %36 : vector<1x1x2x128xf32> to vector<1x2x128xf32>
    %38 = vector.shape_cast %34 : vector<1x2x128xf32> to vector<1x1x2x128xf32>
    tpu.vector_store %arg7[%c0_22, %35, %c0_23, %c0_24], %38 {strides = array<i32>} : memref<1x8x2x128xf32, #tpu.memory_space<vmem>>, vector<1x1x2x128xf32>,
    %39 = tpu.reduce_index %33 {axis = 1 : i32, kind = #tpu.reduction_kind<arg_max>} : vector<2x128xf32> -> vector<2xi32>
    %40 = vector.shape_cast %39 : vector<2xi32> to vector<2x1xi32>
    %41 = vector.broadcast %40 : vector<2x1xi32> to vector<2x128xi32>
    %42 = arith.cmpi eq, %17, %41 : vector<2x128xi32>
    %43 = arith.extui %42 : vector<2x128xi1> to vector<2x128xi32>
    %44 = arith.sitofp %43 : vector<2x128xi32> to vector<2x128xf32>
    %45 = arith.mulf %44, %19 : vector<2x128xf32>
    %46 = arith.maximumf %20, %45 : vector<2x128xf32>
    %cst_25 = arith.constant dense<0.000000e+00> : vector<2x32xf32>
    %47 = tpu.matmul %44, %0, %cst_25 {dimension_numbers = #tpu.dot_dimension_numbers<[1], [0], [0], [1], [0, 0, 1, 1], [], []>} : vector<2x128xf32>, vector<128x32xf32>, vector<2x32xf32> -> vector<2x32xf32>
    %c1_i32 = arith.constant 1 : i32
    %cst_26 = arith.constant dense<0.000000e+00> : vector<2x32xf32>
    %48 = tpu.matmul %47, %6, %cst_26 {dimension_numbers = #tpu.dot_dimension_numbers<[1], [0], [0], [1], [0, 0, 1, 1], [], []>} : vector<2x32xf32>, vector<32x32xf32>, vector<2x32xf32> -> vector<2x32xf32>
    %49 = arith.addf %14, %48 : vector<2x32xf32>
    %50 = math.tanh %49 : vector<2x32xf32>
    %cst_27 = arith.constant dense<0.000000e+00> : vector<2x128xf32>
    %51 = tpu.matmul %50, %15, %cst_27 {dimension_numbers = #tpu.dot_dimension_numbers<[1], [0], [0], [1], [0, 0, 1, 1], [], []>} : vector<2x32xf32>, vector<32x128xf32>, vector<2x128xf32> -> vector<2x128xf32>
    %cst_28 = arith.constant 0.176776692 : f32
    %52 = vector.broadcast %cst_28 : f32 to vector<2x128xf32>
    %53 = arith.mulf %51, %52 : vector<2x128xf32>
    %cst_29 = arith.constant 5.000000e-01 : f32
    %54 = vector.broadcast %cst_29 : f32 to vector<2x128xf32>
    %55 = arith.cmpf ogt, %3, %54 : vector<2x128xf32>
    %cst_30 = arith.constant 5.000000e-01 : f32
    %56 = vector.broadcast %cst_30 : f32 to vector<2x128xf32>
    %57 = arith.cmpf olt, %46, %56 : vector<2x128xf32>
    %58 = arith.andi %55, %57 : vector<2x128xi1>
    %cst_31 = arith.constant -1.000000e+09 : f32
    %59 = vector.broadcast %cst_31 : f32 to vector<2x128xf32>
    %60 = arith.select %58, %53, %59 : vector<2x128xi1>, vector<2x128xf32>
    %61 = vector.shape_cast %60 : vector<2x128xf32> to vector<1x2x128xf32>
    %c0_32 = arith.constant 0 : index
    %62 = arith.index_cast %c1_i32 : i32 to index
    %c0_33 = arith.constant 0 : index
    %c0_34 = arith.constant 0 : index
    %63 = vector.load %arg7[%c0_32, %62, %c0_33, %c0_34] : memref<1x8x2x128xf32, #tpu.memory_space<vmem>>, vector<1x1x2x128xf32>
    %64 = vector.shape_cast %63 : vector<1x1x2x128xf32> to vector<1x2x128xf32>
    %65 = vector.shape_cast %61 : vector<1x2x128xf32> to vector<1x1x2x128xf32>
    tpu.vector_store %arg7[%c0_32, %62, %c0_33, %c0_34], %65 {strides = array<i32>} : memref<1x8x2x128xf32, #tpu.memory_space<vmem>>, vector<1x1x2x128xf32>,
    %66 = tpu.reduce_index %60 {axis = 1 : i32, kind = #tpu.reduction_kind<arg_max>} : vector<2x128xf32> -> vector<2xi32>
    %67 = vector.shape_cast %66 : vector<2xi32> to vector<2x1xi32>
    %68 = vector.broadcast %67 : vector<2x1xi32> to vector<2x128xi32>
    %69 = arith.cmpi eq, %17, %68 : vector<2x128xi32>
    %70 = arith.extui %69 : vector<2x128xi1> to vector<2x128xi32>
    %71 = arith.sitofp %70 : vector<2x128xi32> to vector<2x128xf32>
    %72 = arith.mulf %71, %19 : vector<2x128xf32>
    %73 = arith.maximumf %46, %72 : vector<2x128xf32>
    %cst_35 = arith.constant dense<0.000000e+00> : vector<2x32xf32>
    %74 = tpu.matmul %71, %0, %cst_35 {dimension_numbers = #tpu.dot_dimension_numbers<[1], [0], [0], [1], [0, 0, 1, 1], [], []>} : vector<2x128xf32>, vector<128x32xf32>, vector<2x32xf32> -> vector<2x32xf32>
    %c2_i32 = arith.constant 2 : i32
    %cst_36 = arith.constant dense<0.000000e+00> : vector<2x32xf32>
    %75 = tpu.matmul %74, %6, %cst_36 {dimension_numbers = #tpu.dot_dimension_numbers<[1], [0], [0], [1], [0, 0, 1, 1], [], []>} : vector<2x32xf32>, vector<32x32xf32>, vector<2x32xf32> -> vector<2x32xf32>
    %76 = arith.addf %14, %75 : vector<2x32xf32>
    %77 = math.tanh %76 : vector<2x32xf32>
    %cst_37 = arith.constant dense<0.000000e+00> : vector<2x128xf32>
    %78 = tpu.matmul %77, %15, %cst_37 {dimension_numbers = #tpu.dot_dimension_numbers<[1], [0], [0], [1], [0, 0, 1, 1], [], []>} : vector<2x32xf32>, vector<32x128xf32>, vector<2x128xf32> -> vector<2x128xf32>
    %cst_38 = arith.constant 0.176776692 : f32
    %79 = vector.broadcast %cst_38 : f32 to vector<2x128xf32>
    %80 = arith.mulf %78, %79 : vector<2x128xf32>
    %cst_39 = arith.constant 5.000000e-01 : f32
    %81 = vector.broadcast %cst_39 : f32 to vector<2x128xf32>
    %82 = arith.cmpf ogt, %3, %81 : vector<2x128xf32>
    %cst_40 = arith.constant 5.000000e-01 : f32
    %83 = vector.broadcast %cst_40 : f32 to vector<2x128xf32>
    %84 = arith.cmpf olt, %73, %83 : vector<2x128xf32>
    %85 = arith.andi %82, %84 : vector<2x128xi1>
    %cst_41 = arith.constant -1.000000e+09 : f32
    %86 = vector.broadcast %cst_41 : f32 to vector<2x128xf32>
    %87 = arith.select %85, %80, %86 : vector<2x128xi1>, vector<2x128xf32>
    %88 = vector.shape_cast %87 : vector<2x128xf32> to vector<1x2x128xf32>
    %c0_42 = arith.constant 0 : index
    %89 = arith.index_cast %c2_i32 : i32 to index
    %c0_43 = arith.constant 0 : index
    %c0_44 = arith.constant 0 : index
    %90 = vector.load %arg7[%c0_42, %89, %c0_43, %c0_44] : memref<1x8x2x128xf32, #tpu.memory_space<vmem>>, vector<1x1x2x128xf32>
    %91 = vector.shape_cast %90 : vector<1x1x2x128xf32> to vector<1x2x128xf32>
    %92 = vector.shape_cast %88 : vector<1x2x128xf32> to vector<1x1x2x128xf32>
    tpu.vector_store %arg7[%c0_42, %89, %c0_43, %c0_44], %92 {strides = array<i32>} : memref<1x8x2x128xf32, #tpu.memory_space<vmem>>, vector<1x1x2x128xf32>,
    %93 = tpu.reduce_index %87 {axis = 1 : i32, kind = #tpu.reduction_kind<arg_max>} : vector<2x128xf32> -> vector<2xi32>
    %94 = vector.shape_cast %93 : vector<2xi32> to vector<2x1xi32>
    %95 = vector.broadcast %94 : vector<2x1xi32> to vector<2x128xi32>
    %96 = arith.cmpi eq, %17, %95 : vector<2x128xi32>
    %97 = arith.extui %96 : vector<2x128xi1> to vector<2x128xi32>
    %98 = arith.sitofp %97 : vector<2x128xi32> to vector<2x128xf32>
    %99 = arith.mulf %98, %19 : vector<2x128xf32>
    %100 = arith.maximumf %73, %99 : vector<2x128xf32>
    %cst_45 = arith.constant dense<0.000000e+00> : vector<2x32xf32>
    %101 = tpu.matmul %98, %0, %cst_45 {dimension_numbers = #tpu.dot_dimension_numbers<[1], [0], [0], [1], [0, 0, 1, 1], [], []>} : vector<2x128xf32>, vector<128x32xf32>, vector<2x32xf32> -> vector<2x32xf32>
    %c3_i32 = arith.constant 3 : i32
    %cst_46 = arith.constant dense<0.000000e+00> : vector<2x32xf32>
    %102 = tpu.matmul %101, %6, %cst_46 {dimension_numbers = #tpu.dot_dimension_numbers<[1], [0], [0], [1], [0, 0, 1, 1], [], []>} : vector<2x32xf32>, vector<32x32xf32>, vector<2x32xf32> -> vector<2x32xf32>
    %103 = arith.addf %14, %102 : vector<2x32xf32>
    %104 = math.tanh %103 : vector<2x32xf32>
    %cst_47 = arith.constant dense<0.000000e+00> : vector<2x128xf32>
    %105 = tpu.matmul %104, %15, %cst_47 {dimension_numbers = #tpu.dot_dimension_numbers<[1], [0], [0], [1], [0, 0, 1, 1], [], []>} : vector<2x32xf32>, vector<32x128xf32>, vector<2x128xf32> -> vector<2x128xf32>
    %cst_48 = arith.constant 0.176776692 : f32
    %106 = vector.broadcast %cst_48 : f32 to vector<2x128xf32>
    %107 = arith.mulf %105, %106 : vector<2x128xf32>
    %cst_49 = arith.constant 5.000000e-01 : f32
    %108 = vector.broadcast %cst_49 : f32 to vector<2x128xf32>
    %109 = arith.cmpf ogt, %3, %108 : vector<2x128xf32>
    %cst_50 = arith.constant 5.000000e-01 : f32
    %110 = vector.broadcast %cst_50 : f32 to vector<2x128xf32>
    %111 = arith.cmpf olt, %100, %110 : vector<2x128xf32>
    %112 = arith.andi %109, %111 : vector<2x128xi1>
    %cst_51 = arith.constant -1.000000e+09 : f32
    %113 = vector.broadcast %cst_51 : f32 to vector<2x128xf32>
    %114 = arith.select %112, %107, %113 : vector<2x128xi1>, vector<2x128xf32>
    %115 = vector.shape_cast %114 : vector<2x128xf32> to vector<1x2x128xf32>
    %c0_52 = arith.constant 0 : index
    %116 = arith.index_cast %c3_i32 : i32 to index
    %c0_53 = arith.constant 0 : index
    %c0_54 = arith.constant 0 : index
    %117 = vector.load %arg7[%c0_52, %116, %c0_53, %c0_54] : memref<1x8x2x128xf32, #tpu.memory_space<vmem>>, vector<1x1x2x128xf32>
    %118 = vector.shape_cast %117 : vector<1x1x2x128xf32> to vector<1x2x128xf32>
    %119 = vector.shape_cast %115 : vector<1x2x128xf32> to vector<1x1x2x128xf32>
    tpu.vector_store %arg7[%c0_52, %116, %c0_53, %c0_54], %119 {strides = array<i32>} : memref<1x8x2x128xf32, #tpu.memory_space<vmem>>, vector<1x1x2x128xf32>,
    %120 = tpu.reduce_index %114 {axis = 1 : i32, kind = #tpu.reduction_kind<arg_max>} : vector<2x128xf32> -> vector<2xi32>
    %121 = vector.shape_cast %120 : vector<2xi32> to vector<2x1xi32>
    %122 = vector.broadcast %121 : vector<2x1xi32> to vector<2x128xi32>
    %123 = arith.cmpi eq, %17, %122 : vector<2x128xi32>
    %124 = arith.extui %123 : vector<2x128xi1> to vector<2x128xi32>
    %125 = arith.sitofp %124 : vector<2x128xi32> to vector<2x128xf32>
    %126 = arith.mulf %125, %19 : vector<2x128xf32>
    %127 = arith.maximumf %100, %126 : vector<2x128xf32>
    %cst_55 = arith.constant dense<0.000000e+00> : vector<2x32xf32>
    %128 = tpu.matmul %125, %0, %cst_55 {dimension_numbers = #tpu.dot_dimension_numbers<[1], [0], [0], [1], [0, 0, 1, 1], [], []>} : vector<2x128xf32>, vector<128x32xf32>, vector<2x32xf32> -> vector<2x32xf32>
    %c4_i32 = arith.constant 4 : i32
    %cst_56 = arith.constant dense<0.000000e+00> : vector<2x32xf32>
    %129 = tpu.matmul %128, %6, %cst_56 {dimension_numbers = #tpu.dot_dimension_numbers<[1], [0], [0], [1], [0, 0, 1, 1], [], []>} : vector<2x32xf32>, vector<32x32xf32>, vector<2x32xf32> -> vector<2x32xf32>
    %130 = arith.addf %14, %129 : vector<2x32xf32>
    %131 = math.tanh %130 : vector<2x32xf32>
    %cst_57 = arith.constant dense<0.000000e+00> : vector<2x128xf32>
    %132 = tpu.matmul %131, %15, %cst_57 {dimension_numbers = #tpu.dot_dimension_numbers<[1], [0], [0], [1], [0, 0, 1, 1], [], []>} : vector<2x32xf32>, vector<32x128xf32>, vector<2x128xf32> -> vector<2x128xf32>
    %cst_58 = arith.constant 0.176776692 : f32
    %133 = vector.broadcast %cst_58 : f32 to vector<2x128xf32>
    %134 = arith.mulf %132, %133 : vector<2x128xf32>
    %cst_59 = arith.constant 5.000000e-01 : f32
    %135 = vector.broadcast %cst_59 : f32 to vector<2x128xf32>
    %136 = arith.cmpf ogt, %3, %135 : vector<2x128xf32>
    %cst_60 = arith.constant 5.000000e-01 : f32
    %137 = vector.broadcast %cst_60 : f32 to vector<2x128xf32>
    %138 = arith.cmpf olt, %127, %137 : vector<2x128xf32>
    %139 = arith.andi %136, %138 : vector<2x128xi1>
    %cst_61 = arith.constant -1.000000e+09 : f32
    %140 = vector.broadcast %cst_61 : f32 to vector<2x128xf32>
    %141 = arith.select %139, %134, %140 : vector<2x128xi1>, vector<2x128xf32>
    %142 = vector.shape_cast %141 : vector<2x128xf32> to vector<1x2x128xf32>
    %c0_62 = arith.constant 0 : index
    %143 = arith.index_cast %c4_i32 : i32 to index
    %c0_63 = arith.constant 0 : index
    %c0_64 = arith.constant 0 : index
    %144 = vector.load %arg7[%c0_62, %143, %c0_63, %c0_64] : memref<1x8x2x128xf32, #tpu.memory_space<vmem>>, vector<1x1x2x128xf32>
    %145 = vector.shape_cast %144 : vector<1x1x2x128xf32> to vector<1x2x128xf32>
    %146 = vector.shape_cast %142 : vector<1x2x128xf32> to vector<1x1x2x128xf32>
    tpu.vector_store %arg7[%c0_62, %143, %c0_63, %c0_64], %146 {strides = array<i32>} : memref<1x8x2x128xf32, #tpu.memory_space<vmem>>, vector<1x1x2x128xf32>,
    %147 = tpu.reduce_index %141 {axis = 1 : i32, kind = #tpu.reduction_kind<arg_max>} : vector<2x128xf32> -> vector<2xi32>
    %148 = vector.shape_cast %147 : vector<2xi32> to vector<2x1xi32>
    %149 = vector.broadcast %148 : vector<2x1xi32> to vector<2x128xi32>
    %150 = arith.cmpi eq, %17, %149 : vector<2x128xi32>
    %151 = arith.extui %150 : vector<2x128xi1> to vector<2x128xi32>
    %152 = arith.sitofp %151 : vector<2x128xi32> to vector<2x128xf32>
    %153 = arith.mulf %152, %19 : vector<2x128xf32>
    %154 = arith.maximumf %127, %153 : vector<2x128xf32>
    %cst_65 = arith.constant dense<0.000000e+00> : vector<2x32xf32>
    %155 = tpu.matmul %152, %0, %cst_65 {dimension_numbers = #tpu.dot_dimension_numbers<[1], [0], [0], [1], [0, 0, 1, 1], [], []>} : vector<2x128xf32>, vector<128x32xf32>, vector<2x32xf32> -> vector<2x32xf32>
    %c5_i32 = arith.constant 5 : i32
    %cst_66 = arith.constant dense<0.000000e+00> : vector<2x32xf32>
    %156 = tpu.matmul %155, %6, %cst_66 {dimension_numbers = #tpu.dot_dimension_numbers<[1], [0], [0], [1], [0, 0, 1, 1], [], []>} : vector<2x32xf32>, vector<32x32xf32>, vector<2x32xf32> -> vector<2x32xf32>
    %157 = arith.addf %14, %156 : vector<2x32xf32>
    %158 = math.tanh %157 : vector<2x32xf32>
    %cst_67 = arith.constant dense<0.000000e+00> : vector<2x128xf32>
    %159 = tpu.matmul %158, %15, %cst_67 {dimension_numbers = #tpu.dot_dimension_numbers<[1], [0], [0], [1], [0, 0, 1, 1], [], []>} : vector<2x32xf32>, vector<32x128xf32>, vector<2x128xf32> -> vector<2x128xf32>
    %cst_68 = arith.constant 0.176776692 : f32
    %160 = vector.broadcast %cst_68 : f32 to vector<2x128xf32>
    %161 = arith.mulf %159, %160 : vector<2x128xf32>
    %cst_69 = arith.constant 5.000000e-01 : f32
    %162 = vector.broadcast %cst_69 : f32 to vector<2x128xf32>
    %163 = arith.cmpf ogt, %3, %162 : vector<2x128xf32>
    %cst_70 = arith.constant 5.000000e-01 : f32
    %164 = vector.broadcast %cst_70 : f32 to vector<2x128xf32>
    %165 = arith.cmpf olt, %154, %164 : vector<2x128xf32>
    %166 = arith.andi %163, %165 : vector<2x128xi1>
    %cst_71 = arith.constant -1.000000e+09 : f32
    %167 = vector.broadcast %cst_71 : f32 to vector<2x128xf32>
    %168 = arith.select %166, %161, %167 : vector<2x128xi1>, vector<2x128xf32>
    %169 = vector.shape_cast %168 : vector<2x128xf32> to vector<1x2x128xf32>
    %c0_72 = arith.constant 0 : index
    %170 = arith.index_cast %c5_i32 : i32 to index
    %c0_73 = arith.constant 0 : index
    %c0_74 = arith.constant 0 : index
    %171 = vector.load %arg7[%c0_72, %170, %c0_73, %c0_74] : memref<1x8x2x128xf32, #tpu.memory_space<vmem>>, vector<1x1x2x128xf32>
    %172 = vector.shape_cast %171 : vector<1x1x2x128xf32> to vector<1x2x128xf32>
    %173 = vector.shape_cast %169 : vector<1x2x128xf32> to vector<1x1x2x128xf32>
    tpu.vector_store %arg7[%c0_72, %170, %c0_73, %c0_74], %173 {strides = array<i32>} : memref<1x8x2x128xf32, #tpu.memory_space<vmem>>, vector<1x1x2x128xf32>,
    %174 = tpu.reduce_index %168 {axis = 1 : i32, kind = #tpu.reduction_kind<arg_max>} : vector<2x128xf32> -> vector<2xi32>
    %175 = vector.shape_cast %174 : vector<2xi32> to vector<2x1xi32>
    %176 = vector.broadcast %175 : vector<2x1xi32> to vector<2x128xi32>
    %177 = arith.cmpi eq, %17, %176 : vector<2x128xi32>
    %178 = arith.extui %177 : vector<2x128xi1> to vector<2x128xi32>
    %179 = arith.sitofp %178 : vector<2x128xi32> to vector<2x128xf32>
    %180 = arith.mulf %179, %19 : vector<2x128xf32>
    %181 = arith.maximumf %154, %180 : vector<2x128xf32>
    %cst_75 = arith.constant dense<0.000000e+00> : vector<2x32xf32>
    %182 = tpu.matmul %179, %0, %cst_75 {dimension_numbers = #tpu.dot_dimension_numbers<[1], [0], [0], [1], [0, 0, 1, 1], [], []>} : vector<2x128xf32>, vector<128x32xf32>, vector<2x32xf32> -> vector<2x32xf32>
    %c6_i32 = arith.constant 6 : i32
    %cst_76 = arith.constant dense<0.000000e+00> : vector<2x32xf32>
    %183 = tpu.matmul %182, %6, %cst_76 {dimension_numbers = #tpu.dot_dimension_numbers<[1], [0], [0], [1], [0, 0, 1, 1], [], []>} : vector<2x32xf32>, vector<32x32xf32>, vector<2x32xf32> -> vector<2x32xf32>
    %184 = arith.addf %14, %183 : vector<2x32xf32>
    %185 = math.tanh %184 : vector<2x32xf32>
    %cst_77 = arith.constant dense<0.000000e+00> : vector<2x128xf32>
    %186 = tpu.matmul %185, %15, %cst_77 {dimension_numbers = #tpu.dot_dimension_numbers<[1], [0], [0], [1], [0, 0, 1, 1], [], []>} : vector<2x32xf32>, vector<32x128xf32>, vector<2x128xf32> -> vector<2x128xf32>
    %cst_78 = arith.constant 0.176776692 : f32
    %187 = vector.broadcast %cst_78 : f32 to vector<2x128xf32>
    %188 = arith.mulf %186, %187 : vector<2x128xf32>
    %cst_79 = arith.constant 5.000000e-01 : f32
    %189 = vector.broadcast %cst_79 : f32 to vector<2x128xf32>
    %190 = arith.cmpf ogt, %3, %189 : vector<2x128xf32>
    %cst_80 = arith.constant 5.000000e-01 : f32
    %191 = vector.broadcast %cst_80 : f32 to vector<2x128xf32>
    %192 = arith.cmpf olt, %181, %191 : vector<2x128xf32>
    %193 = arith.andi %190, %192 : vector<2x128xi1>
    %cst_81 = arith.constant -1.000000e+09 : f32
    %194 = vector.broadcast %cst_81 : f32 to vector<2x128xf32>
    %195 = arith.select %193, %188, %194 : vector<2x128xi1>, vector<2x128xf32>
    %196 = vector.shape_cast %195 : vector<2x128xf32> to vector<1x2x128xf32>
    %c0_82 = arith.constant 0 : index
    %197 = arith.index_cast %c6_i32 : i32 to index
    %c0_83 = arith.constant 0 : index
    %c0_84 = arith.constant 0 : index
    %198 = vector.load %arg7[%c0_82, %197, %c0_83, %c0_84] : memref<1x8x2x128xf32, #tpu.memory_space<vmem>>, vector<1x1x2x128xf32>
    %199 = vector.shape_cast %198 : vector<1x1x2x128xf32> to vector<1x2x128xf32>
    %200 = vector.shape_cast %196 : vector<1x2x128xf32> to vector<1x1x2x128xf32>
    tpu.vector_store %arg7[%c0_82, %197, %c0_83, %c0_84], %200 {strides = array<i32>} : memref<1x8x2x128xf32, #tpu.memory_space<vmem>>, vector<1x1x2x128xf32>,
    %201 = tpu.reduce_index %195 {axis = 1 : i32, kind = #tpu.reduction_kind<arg_max>} : vector<2x128xf32> -> vector<2xi32>
    %202 = vector.shape_cast %201 : vector<2xi32> to vector<2x1xi32>
    %203 = vector.broadcast %202 : vector<2x1xi32> to vector<2x128xi32>
    %204 = arith.cmpi eq, %17, %203 : vector<2x128xi32>
    %205 = arith.extui %204 : vector<2x128xi1> to vector<2x128xi32>
    %206 = arith.sitofp %205 : vector<2x128xi32> to vector<2x128xf32>
    %207 = arith.mulf %206, %19 : vector<2x128xf32>
    %208 = arith.maximumf %181, %207 : vector<2x128xf32>
    %cst_85 = arith.constant dense<0.000000e+00> : vector<2x32xf32>
    %209 = tpu.matmul %206, %0, %cst_85 {dimension_numbers = #tpu.dot_dimension_numbers<[1], [0], [0], [1], [0, 0, 1, 1], [], []>} : vector<2x128xf32>, vector<128x32xf32>, vector<2x32xf32> -> vector<2x32xf32>
    %c7_i32 = arith.constant 7 : i32
    %cst_86 = arith.constant dense<0.000000e+00> : vector<2x32xf32>
    %210 = tpu.matmul %209, %6, %cst_86 {dimension_numbers = #tpu.dot_dimension_numbers<[1], [0], [0], [1], [0, 0, 1, 1], [], []>} : vector<2x32xf32>, vector<32x32xf32>, vector<2x32xf32> -> vector<2x32xf32>
    %211 = arith.addf %14, %210 : vector<2x32xf32>
    %212 = math.tanh %211 : vector<2x32xf32>
    %cst_87 = arith.constant dense<0.000000e+00> : vector<2x128xf32>
    %213 = tpu.matmul %212, %15, %cst_87 {dimension_numbers = #tpu.dot_dimension_numbers<[1], [0], [0], [1], [0, 0, 1, 1], [], []>} : vector<2x32xf32>, vector<32x128xf32>, vector<2x128xf32> -> vector<2x128xf32>
    %cst_88 = arith.constant 0.176776692 : f32
    %214 = vector.broadcast %cst_88 : f32 to vector<2x128xf32>
    %215 = arith.mulf %213, %214 : vector<2x128xf32>
    %cst_89 = arith.constant 5.000000e-01 : f32
    %216 = vector.broadcast %cst_89 : f32 to vector<2x128xf32>
    %217 = arith.cmpf ogt, %3, %216 : vector<2x128xf32>
    %cst_90 = arith.constant 5.000000e-01 : f32
    %218 = vector.broadcast %cst_90 : f32 to vector<2x128xf32>
    %219 = arith.cmpf olt, %208, %218 : vector<2x128xf32>
    %220 = arith.andi %217, %219 : vector<2x128xi1>
    %cst_91 = arith.constant -1.000000e+09 : f32
    %221 = vector.broadcast %cst_91 : f32 to vector<2x128xf32>
    %222 = arith.select %220, %215, %221 : vector<2x128xi1>, vector<2x128xf32>
    %223 = vector.shape_cast %222 : vector<2x128xf32> to vector<1x2x128xf32>
    %c0_92 = arith.constant 0 : index
    %224 = arith.index_cast %c7_i32 : i32 to index
    %c0_93 = arith.constant 0 : index
    %c0_94 = arith.constant 0 : index
    %225 = vector.load %arg7[%c0_92, %224, %c0_93, %c0_94] : memref<1x8x2x128xf32, #tpu.memory_space<vmem>>, vector<1x1x2x128xf32>
    %226 = vector.shape_cast %225 : vector<1x1x2x128xf32> to vector<1x2x128xf32>
    %227 = vector.shape_cast %223 : vector<1x2x128xf32> to vector<1x1x2x128xf32>
    tpu.vector_store %arg7[%c0_92, %224, %c0_93, %c0_94], %227 {strides = array<i32>} : memref<1x8x2x128xf32, #tpu.memory_space<vmem>>, vector<1x1x2x128xf32>,
    %228 = tpu.reduce_index %222 {axis = 1 : i32, kind = #tpu.reduction_kind<arg_max>} : vector<2x128xf32> -> vector<2xi32>
    %229 = vector.shape_cast %228 : vector<2xi32> to vector<2x1xi32>
    %230 = vector.broadcast %229 : vector<2x1xi32> to vector<2x128xi32>
    %231 = arith.cmpi eq, %17, %230 : vector<2x128xi32>
    %232 = arith.extui %231 : vector<2x128xi1> to vector<2x128xi32>
    %233 = arith.sitofp %232 : vector<2x128xi32> to vector<2x128xf32>
    %234 = arith.mulf %233, %19 : vector<2x128xf32>
    %235 = arith.maximumf %208, %234 : vector<2x128xf32>
    %cst_95 = arith.constant dense<0.000000e+00> : vector<2x32xf32>
    %236 = tpu.matmul %233, %0, %cst_95 {dimension_numbers = #tpu.dot_dimension_numbers<[1], [0], [0], [1], [0, 0, 1, 1], [], []>} : vector<2x128xf32>, vector<128x32xf32>, vector<2x32xf32> -> vector<2x32xf32>
    %c8_i32 = arith.constant 8 : i32
    return
  }
  func.func @transform_0(%arg0: i32) -> (i32, i32) {
    %c0_i32 = arith.constant 0 : i32
    %c0_i32_0 = arith.constant 0 : i32
    return %arg0, %c0_i32 : i32, i32
  }
  func.func @transform_1(%arg0: i32) -> (i32, i32) {
    %c0_i32 = arith.constant 0 : i32
    %c0_i32_0 = arith.constant 0 : i32
    return %arg0, %c0_i32 : i32, i32
  }
  func.func @transform_2(%arg0: i32) -> (i32, i32) {
    %c0_i32 = arith.constant 0 : i32
    %c0_i32_0 = arith.constant 0 : i32
    return %arg0, %c0_i32 : i32, i32
  }
  func.func @transform_3(%arg0: i32) -> (i32, i32) {
    %c0_i32 = arith.constant 0 : i32
    %c0_i32_0 = arith.constant 0 : i32
    return %arg0, %c0_i32 : i32, i32
  }
  func.func @transform_4(%arg0: i32) -> (i32, i32) {
    %c0_i32 = arith.constant 0 : i32
    %c0_i32_0 = arith.constant 0 : i32
    %c0_i32_1 = arith.constant 0 : i32
    return %c0_i32, %c0_i32_0 : i32, i32
  }
  func.func @transform_5(%arg0: i32) -> (i32, i32) {
    %c0_i32 = arith.constant 0 : i32
    %c0_i32_0 = arith.constant 0 : i32
    %c0_i32_1 = arith.constant 0 : i32
    return %c0_i32, %c0_i32_0 : i32, i32
  }
  func.func @transform_6(%arg0: i32) -> (i32, i32, i32, i32) {
    %c0_i32 = arith.constant 0 : i32
    %c0_i32_0 = arith.constant 0 : i32
    %c0_i32_1 = arith.constant 0 : i32
    %c0_i32_2 = arith.constant 0 : i32
    return %arg0, %c0_i32, %c0_i32_0, %c0_i32_1 : i32, i32, i32, i32
  }
}

module attributes {stable_mosaic.version = 11 : i64} {
  func.func @_line_gnn_kernel(%arg0: memref<16x16xbf16, #tpu.memory_space<vmem>>, %arg1: memref<16x4xbf16, #tpu.memory_space<vmem>>, %arg2: memref<4x32xbf16, #tpu.memory_space<vmem>>, %arg3: memref<1x32xf32, #tpu.memory_space<vmem>>, %arg4: memref<32x32xbf16, #tpu.memory_space<vmem>>, %arg5: memref<1x32xf32, #tpu.memory_space<vmem>>, %arg6: memref<32x3xbf16, #tpu.memory_space<vmem>>, %arg7: memref<1x3xf32, #tpu.memory_space<vmem>>, %arg8: memref<16x3xf32, #tpu.memory_space<vmem>>) attributes {dimension_semantics = [], scalar_prefetch = 0 : i64, scratch_operands = 0 : i64, tpu.core_type = #tpu.core_type<tc>} {
    %c0 = arith.constant 0 : index
    %c0_0 = arith.constant 0 : index
    %0 = vector.load %arg0[%c0, %c0_0] : memref<16x16xbf16, #tpu.memory_space<vmem>>, vector<16x16xbf16>
    %c0_1 = arith.constant 0 : index
    %c0_2 = arith.constant 0 : index
    %1 = vector.load %arg1[%c0_1, %c0_2] : memref<16x4xbf16, #tpu.memory_space<vmem>>, vector<16x4xbf16>
    %c0_3 = arith.constant 0 : index
    %c0_4 = arith.constant 0 : index
    %2 = vector.load %arg2[%c0_3, %c0_4] : memref<4x32xbf16, #tpu.memory_space<vmem>>, vector<4x32xbf16>
    %cst = arith.constant dense<0.000000e+00> : vector<16x32xf32>
    %3 = tpu.matmul %1, %2, %cst {dimension_numbers = #tpu.dot_dimension_numbers<[1], [0], [0], [1], [0, 0, 1, 1], [], []>} : vector<16x4xbf16>, vector<4x32xbf16>, vector<16x32xf32> -> vector<16x32xf32>
    %4 = arith.truncf %3 : vector<16x32xf32> to vector<16x32xbf16>
    %cst_5 = arith.constant dense<0.000000e+00> : vector<16x32xf32>
    %5 = tpu.matmul %0, %4, %cst_5 {dimension_numbers = #tpu.dot_dimension_numbers<[1], [0], [0], [1], [0, 0, 1, 1], [], []>} : vector<16x16xbf16>, vector<16x32xbf16>, vector<16x32xf32> -> vector<16x32xf32>
    %c0_6 = arith.constant 0 : index
    %c0_7 = arith.constant 0 : index
    %6 = vector.load %arg3[%c0_6, %c0_7] : memref<1x32xf32, #tpu.memory_space<vmem>>, vector<1x32xf32>
    %7 = vector.broadcast %6 : vector<1x32xf32> to vector<16x32xf32>
    %8 = arith.addf %5, %7 : vector<16x32xf32>
    %cst_8 = arith.constant 0.000000e+00 : f32
    %9 = vector.broadcast %cst_8 : f32 to vector<16x32xf32>
    %10 = arith.maximumf %8, %9 : vector<16x32xf32>
    %11 = arith.truncf %10 : vector<16x32xf32> to vector<16x32xbf16>
    %c0_9 = arith.constant 0 : index
    %c0_10 = arith.constant 0 : index
    %12 = vector.load %arg4[%c0_9, %c0_10] : memref<32x32xbf16, #tpu.memory_space<vmem>>, vector<32x32xbf16>
    %cst_11 = arith.constant dense<0.000000e+00> : vector<16x32xf32>
    %13 = tpu.matmul %11, %12, %cst_11 {dimension_numbers = #tpu.dot_dimension_numbers<[1], [0], [0], [1], [0, 0, 1, 1], [], []>} : vector<16x32xbf16>, vector<32x32xbf16>, vector<16x32xf32> -> vector<16x32xf32>
    %14 = arith.truncf %13 : vector<16x32xf32> to vector<16x32xbf16>
    %cst_12 = arith.constant dense<0.000000e+00> : vector<16x32xf32>
    %15 = tpu.matmul %0, %14, %cst_12 {dimension_numbers = #tpu.dot_dimension_numbers<[1], [0], [0], [1], [0, 0, 1, 1], [], []>} : vector<16x16xbf16>, vector<16x32xbf16>, vector<16x32xf32> -> vector<16x32xf32>
    %c0_13 = arith.constant 0 : index
    %c0_14 = arith.constant 0 : index
    %16 = vector.load %arg5[%c0_13, %c0_14] : memref<1x32xf32, #tpu.memory_space<vmem>>, vector<1x32xf32>
    %17 = vector.broadcast %16 : vector<1x32xf32> to vector<16x32xf32>
    %18 = arith.addf %15, %17 : vector<16x32xf32>
    %cst_15 = arith.constant 0.000000e+00 : f32
    %19 = vector.broadcast %cst_15 : f32 to vector<16x32xf32>
    %20 = arith.maximumf %18, %19 : vector<16x32xf32>
    %21 = arith.truncf %20 : vector<16x32xf32> to vector<16x32xbf16>
    %c0_16 = arith.constant 0 : index
    %c0_17 = arith.constant 0 : index
    %22 = vector.load %arg6[%c0_16, %c0_17] : memref<32x3xbf16, #tpu.memory_space<vmem>>, vector<32x3xbf16>
    %cst_18 = arith.constant dense<0.000000e+00> : vector<16x3xf32>
    %23 = tpu.matmul %21, %22, %cst_18 {dimension_numbers = #tpu.dot_dimension_numbers<[1], [0], [0], [1], [0, 0, 1, 1], [], []>} : vector<16x32xbf16>, vector<32x3xbf16>, vector<16x3xf32> -> vector<16x3xf32>
    %c0_19 = arith.constant 0 : index
    %c0_20 = arith.constant 0 : index
    %24 = vector.load %arg7[%c0_19, %c0_20] : memref<1x3xf32, #tpu.memory_space<vmem>>, vector<1x3xf32>
    %25 = vector.broadcast %24 : vector<1x3xf32> to vector<16x3xf32>
    %26 = arith.addf %23, %25 : vector<16x3xf32>
    %c0_21 = arith.constant 0 : index
    %c0_22 = arith.constant 0 : index
    %27 = vector.load %arg8[%c0_21, %c0_22] : memref<16x3xf32, #tpu.memory_space<vmem>>, vector<16x3xf32>
    tpu.vector_store %arg8[%c0_21, %c0_22], %26 {strides = array<i32>} : memref<16x3xf32, #tpu.memory_space<vmem>>, vector<16x3xf32>,
    return
  }
}

</mosaic_0001>

<llo_original>
// kernel: sequence_routing_forward.3
$region0: #{sequence_routing_forward.3}
  #allocation0 [shape = 'u32[]', space=smem, size = 0x4, offset = 0x4, fixed_abs, tag = 'smem constant byte address 0x4 - core index']
  #allocation1 [shape = 'u32[144,128]{1,0:T(1,128)}', space=vmem, size = 0x12000, scoped, tag = 'internal scratch']
  %s0 = inlined_call_operand.vmem [shape: bf16[2,8,8], index: 0, kind: input, shape index: {}]
  %s1 = inlined_call_operand.vmem [shape: bf16[2,8,4], index: 1, kind: input, shape index: {}]
  %s2 = inlined_call_operand.vmem [shape: bf16[4,32], index: 2, kind: input, shape index: {}]
  %s3 = inlined_call_operand.vmem [shape: f32[1,32], index: 3, kind: input, shape index: {}]
  %s4 = inlined_call_operand.vmem [shape: bf16[32,32], index: 4, kind: input, shape index: {}]
  %s5 = inlined_call_operand.vmem [shape: f32[1,32], index: 5, kind: input, shape index: {}]
  %s6 = inlined_call_operand.vmem [shape: f32[2,8,32], index: 6, kind: output, shape index: {0}]
  %s7 = inlined_call_operand.vmem [shape: f32[2,1,32], index: 7, kind: output, shape index: {1}]
  %8 = xla_tuple %s6, %s7
  %s9 = sld [smem:[#allocation0]]
  $region65: #{sequence_routing_forward.3} parent=0
    _
  %s11 = ssub.s32 1, %s9
  %s12 = scalar_select 0, %s11, %s9
  loop: start=0, step=1, limit=4
  $region2: #{sequence_routing_forward.3} parent=0 // loop_pre_header
    _
  $region3: #{sequence_routing_forward.3} parent=0 // loop_header
    %s14 = sphi 0, %s18
    %p15 = scmp.ge.s32.totalorder %s14, 4
    %s24 = sphi 0, %s26
    %s27 = sphi 0, %s24
    %s28 = sphi 0, %s27
    %s44 = sphi 0, %s28
    %s50 = sphi 0, %s52
    %s53 = sphi 0, %s50
    %s54 = sphi 0, %s53
    %s70 = sphi 0, %s54
    %s74 = sphi 0, %s74
    %s76 = sphi 0, %s74
    %s77 = sphi 0, %s76
    %s91 = sphi 0, %s77
    %s95 = sphi 0, %s95
    %s97 = sphi 0, %s95
    %s98 = sphi 0, %s97
    %s112 = sphi 0, %s98
    %s116 = sphi 0, %s116
    %s118 = sphi 0, %s116
    %s119 = sphi 0, %s118
    %s133 = sphi 0, %s119
    %s137 = sphi 0, %s137
    %s139 = sphi 0, %s137
    %s140 = sphi 0, %s139
    %s154 = sphi 0, %s140
    %s160 = sphi 0, %s162
    %s163 = sphi 0, %s160
    %s164 = sphi 0, %s163
    %s180 = sphi 0, %s164
    %s186 = sphi 0, %s188
    %s189 = sphi 0, %s186
    %s190 = sphi 0, %s189
    %s206 = sphi 0, %s190
  $region4: #{sequence_routing_forward.3} parent=0 // loop_header_branch
    %17 = sbr.rel (%p15) target = $region8
  $region5: #{sequence_routing_forward.3} parent=0 // loop_body
    %s19 = ssub.s32 %s14, 1
    %s20 = ssub.s32 %s14, 2
    %s21 = sadd.s32 %s14, 1
    %s22 = ssub.s32 %s14, %s21
    %p23 = scmp.eq.s32.totalorder %s22, 0
    %s25 = sadd.s32 %s24, 1
    %s26 = scalar_select %p23, %s24, %s25
    %p29 = pneg %p23
    %p30 = scmp.eq.s32.totalorder %s14, 1
    %p31 = por %p29, %p30
    %p32 = scmp.ne.s32.totalorder %s24, %s27
    %p33 = scmp.eq.s32.totalorder %s14, 0
    %p34 = por %p32, %p33
    %p35 = scmp.ne.s32.totalorder %s24, %s27
    %p36 = scmp.eq.s32.totalorder %s19, 1
    %p37 = por %p35, %p36
    %p38 = scmp.ne.s32.totalorder %s27, %s28
    %p39 = scmp.eq.s32.totalorder %s19, 0
    %p40 = por %p38, %p39
    %p41 = scmp.ne.s32.totalorder %s27, %s28
    %p42 = scmp.eq.s32.totalorder %s20, 1
    %p43 = por %p41, %p42
    %p45 = scmp.ne.s32.totalorder %s28, %s44
    %p46 = scmp.eq.s32.totalorder %s20, 0
    %p47 = por %p45, %p46
    %s48 = ssub.s32 %s14, %s21
    %p49 = scmp.eq.s32.totalorder %s48, 0
    %s51 = sadd.s32 %s50, 1
    %s52 = scalar_select %p49, %s50, %s51
    %p55 = pneg %p49
    %p56 = scmp.eq.s32.totalorder %s14, 1
    %p57 = por %p55, %p56
    %p58 = scmp.ne.s32.totalorder %s50, %s53
    %p59 = scmp.eq.s32.totalorder %s14, 0
    %p60 = por %p58, %p59
    %p61 = scmp.ne.s32.totalorder %s50, %s53
    %p62 = scmp.eq.s32.totalorder %s19, 1
    %p63 = por %p61, %p62
    %p64 = scmp.ne.s32.totalorder %s53, %s54
    %p65 = scmp.eq.s32.totalorder %s19, 0
    %p66 = por %p64, %p65
    %p67 = scmp.ne.s32.totalorder %s53, %s54
    %p68 = scmp.eq.s32.totalorder %s20, 1
    %p69 = por %p67, %p68
    %p71 = scmp.ne.s32.totalorder %s54, %s70
    %p72 = scmp.eq.s32.totalorder %s20, 0
    %p73 = por %p71, %p72
    %s75 = sadd.s32 %s74, 1
    %p78 = scmp.eq.s32.totalorder %s14, 1
    %p79 = scmp.ne.s32.totalorder %s74, %s76
    %p80 = scmp.eq.s32.totalorder %s14, 0
    %p81 = por %p79, %p80
    %p82 = scmp.ne.s32.totalorder %s74, %s76
    %p83 = scmp.eq.s32.totalorder %s19, 1
    %p84 = por %p82, %p83
    %p85 = scmp.ne.s32.totalorder %s76, %s77
    %p86 = scmp.eq.s32.totalorder %s19, 0
    %p87 = por %p85, %p86
    %p88 = scmp.ne.s32.totalorder %s76, %s77
    %p89 = scmp.eq.s32.totalorder %s20, 1
    %p90 = por %p88, %p89
    %p92 = scmp.ne.s32.totalorder %s77, %s91
    %p93 = scmp.eq.s32.totalorder %s20, 0
    %p94 = por %p92, %p93
    %s96 = sadd.s32 %s95, 1
    %p99 = scmp.eq.s32.totalorder %s14, 1
    %p100 = scmp.ne.s32.totalorder %s95, %s97
    %p101 = scmp.eq.s32.totalorder %s14, 0
    %p102 = por %p100, %p101
    %p103 = scmp.ne.s32.totalorder %s95, %s97
    %p104 = scmp.eq.s32.totalorder %s19, 1
    %p105 = por %p103, %p104
    %p106 = scmp.ne.s32.totalorder %s97, %s98
    %p107 = scmp.eq.s32.totalorder %s19, 0
    %p108 = por %p106, %p107
    %p109 = scmp.ne.s32.totalorder %s97, %s98
    %p110 = scmp.eq.s32.totalorder %s20, 1
    %p111 = por %p109, %p110
    %p113 = scmp.ne.s32.totalorder %s98, %s112
    %p114 = scmp.eq.s32.totalorder %s20, 0
    %p115 = por %p113, %p114
    %s117 = sadd.s32 %s116, 1
    %p120 = scmp.eq.s32.totalorder %s14, 1
    %p121 = scmp.ne.s32.totalorder %s116, %s118
    %p122 = scmp.eq.s32.totalorder %s14, 0
    %p123 = por %p121, %p122
    %p124 = scmp.ne.s32.totalorder %s116, %s118
    %p125 = scmp.eq.s32.totalorder %s19, 1
    %p126 = por %p124, %p125
    %p127 = scmp.ne.s32.totalorder %s118, %s119
    %p128 = scmp.eq.s32.totalorder %s19, 0
    %p129 = por %p127, %p128
    %p130 = scmp.ne.s32.totalorder %s118, %s119
    %p131 = scmp.eq.s32.totalorder %s20, 1
    %p132 = por %p130, %p131
    %p134 = scmp.ne.s32.totalorder %s119, %s133
    %p135 = scmp.eq.s32.totalorder %s20, 0
    %p136 = por %p134, %p135
    %s138 = sadd.s32 %s137, 1
    %p141 = scmp.eq.s32.totalorder %s14, 1
    %p142 = scmp.ne.s32.totalorder %s137, %s139
    %p143 = scmp.eq.s32.totalorder %s14, 0
    %p144 = por %p142, %p143
    %p145 = scmp.ne.s32.totalorder %s137, %s139
    %p146 = scmp.eq.s32.totalorder %s19, 1
    %p147 = por %p145, %p146
    %p148 = scmp.ne.s32.totalorder %s139, %s140
    %p149 = scmp.eq.s32.totalorder %s19, 0
    %p150 = por %p148, %p149
    %p151 = scmp.ne.s32.totalorder %s139, %s140
    %p152 = scmp.eq.s32.totalorder %s20, 1
    %p153 = por %p151, %p152
    %p155 = scmp.ne.s32.totalorder %s140, %s154
    %p156 = scmp.eq.s32.totalorder %s20, 0
    %p157 = por %p155, %p156
    %s158 = ssub.s32 %s14, %s21
    %p159 = scmp.eq.s32.totalorder %s158, 0
    %s161 = sadd.s32 %s160, 1
    %s162 = scalar_select %p159, %s160, %s161
    %p165 = pneg %p159
    %p166 = scmp.eq.s32.totalorder %s14, 1
    %p167 = por %p165, %p166
    %p168 = scmp.ne.s32.totalorder %s160, %s163
    %p169 = scmp.eq.s32.totalorder %s14, 0
    %p170 = por %p168, %p169
    %p171 = scmp.ne.s32.totalorder %s160, %s163
    %p172 = scmp.eq.s32.totalorder %s19, 1
    %p173 = por %p171, %p172
    %p174 = scmp.ne.s32.totalorder %s163, %s164
    %p175 = scmp.eq.s32.totalorder %s19, 0
    %p176 = por %p174, %p175
    %p177 = scmp.ne.s32.totalorder %s163, %s164
    %p178 = scmp.eq.s32.totalorder %s20, 1
    %p179 = por %p177, %p178
    %p181 = scmp.ne.s32.totalorder %s164, %s180
    %p182 = scmp.eq.s32.totalorder %s20, 0
    %p183 = por %p181, %p182
    %s184 = ssub.s32 %s14, %s21
    %p185 = scmp.eq.s32.totalorder %s184, 0
    %s187 = sadd.s32 %s186, 1
    %s188 = scalar_select %p185, %s186, %s187
    %p191 = pneg %p185
    %p192 = scmp.eq.s32.totalorder %s14, 1
    %p193 = por %p191, %p192
    %p194 = scmp.ne.s32.totalorder %s186, %s189
    %p195 = scmp.eq.s32.totalorder %s14, 0
    %p196 = por %p194, %p195
    %p197 = scmp.ne.s32.totalorder %s186, %s189
    %p198 = scmp.eq.s32.totalorder %s19, 1
    %p199 = por %p197, %p198
    %p200 = scmp.ne.s32.totalorder %s189, %s190
    %p201 = scmp.eq.s32.totalorder %s19, 0
    %p202 = por %p200, %p201
    %p203 = scmp.ne.s32.totalorder %s189, %s190
    %p204 = scmp.eq.s32.totalorder %s20, 1
    %p205 = por %p203, %p204
    %p207 = scmp.ne.s32.totalorder %s190, %s206
    %p208 = scmp.eq.s32.totalorder %s20, 0
    %p209 = por %p207, %p208
    %p210 = scmp.le.s32.totalorder 1, %s14
    %p211 = scmp.lt.s32.totalorder %s14, 3
    %p212 = pnand %p210, %p211
    %p213 = pneg %p212
    // Predicated region
    $region9: #{sequence_routing_forward.3} parent=5 // pred_check
      _
    $region10: #{sequence_routing_forward.3} parent=5 // pred_check_branch
      %215 = sbr.rel (%p212) target = $region12
    $region11: #{sequence_routing_forward.3} parent=5 // pred_region
      %s216 = ssub.s32 %s14, 1
      // Predicated region
      $region13: #{sequence_routing_forward.3} parent=11 // pred_check
        %p217 = pneg %p87
      $region14: #{sequence_routing_forward.3} parent=11 // pred_check_branch
        %219 = sbr.rel (%p217) target = $region16
      $region15: #{sequence_routing_forward.3} parent=11 // pred_region
        _
      $region16: #{sequence_routing_forward.3} parent=11 // pred_fallthru
        _
      // Predicated region
      $region17: #{sequence_routing_forward.3} parent=11 // pred_check
        %p220 = pneg %p108
      $region18: #{sequence_routing_forward.3} parent=11 // pred_check_branch
        %222 = sbr.rel (%p220) target = $region20
      $region19: #{sequence_routing_forward.3} parent=11 // pred_region
        _
      $region20: #{sequence_routing_forward.3} parent=11 // pred_fallthru
        _
      // Predicated region
      $region21: #{sequence_routing_forward.3} parent=11 // pred_check
        %p223 = pneg %p129
      $region22: #{sequence_routing_forward.3} parent=11 // pred_check_branch
        %225 = sbr.rel (%p223) target = $region24
      $region23: #{sequence_routing_forward.3} parent=11 // pred_region
        _
      $region24: #{sequence_routing_forward.3} parent=11 // pred_fallthru
        _
      // Predicated region
      $region25: #{sequence_routing_forward.3} parent=11 // pred_check
        %p226 = pneg %p150
      $region26: #{sequence_routing_forward.3} parent=11 // pred_check_branch
        %228 = sbr.rel (%p226) target = $region28
      $region27: #{sequence_routing_forward.3} parent=11 // pred_region
        _
      $region28: #{sequence_routing_forward.3} parent=11 // pred_fallthru
        _
    $region12: #{sequence_routing_forward.3} parent=5 // pred_fallthru
      _
    %p229 = scmp.lt.s32.totalorder %s14, 2
    // Predicated region
    $region29: #{sequence_routing_forward.3} parent=5 // pred_check
      %p230 = pneg %p229
    $region30: #{sequence_routing_forward.3} parent=5 // pred_check_branch
      %232 = sbr.rel (%p230) target = $region32
    $region31: #{sequence_routing_forward.3} parent=5 // pred_region
      // Predicated region
      $region33: #{sequence_routing_forward.3} parent=31 // pred_check
        %p233 = pneg %p34
      $region34: #{sequence_routing_forward.3} parent=31 // pred_check_branch
        %235 = sbr.rel (%p233) target = $region36
      $region35: #{sequence_routing_forward.3} parent=31 // pred_region
        %p236 = scmp.lt.s32.totalorder %s14, 1
        %s237 = scalar_select %p236, %s14, 1
        %s238 = smul.addr %s237, 4
        %s239 = scalar_lea.vmem %s0, %s238
      $region36: #{sequence_routing_forward.3} parent=31 // pred_fallthru
        _
      // Predicated region
      $region37: #{sequence_routing_forward.3} parent=31 // pred_check
        %p240 = pneg %p60
      $region38: #{sequence_routing_forward.3} parent=31 // pred_check_branch
        %242 = sbr.rel (%p240) target = $region40
      $region39: #{sequence_routing_forward.3} parent=31 // pred_region
        %p243 = scmp.lt.s32.totalorder %s14, 1
        %s244 = scalar_select %p243, %s14, 1
        %s245 = smul.addr %s244, 4
        %s246 = scalar_lea.vmem %s1, %s245
      $region40: #{sequence_routing_forward.3} parent=31 // pred_fallthru
        _
    $region32: #{sequence_routing_forward.3} parent=5 // pred_fallthru
      _
    %p247 = scmp.le.s32.totalorder 1, %s14
    %p248 = scmp.lt.s32.totalorder %s14, 3
    %p249 = pnand %p247, %p248
    %p250 = pneg %p249
    // Predicated region
    $region41: #{sequence_routing_forward.3} parent=5 // pred_check
      _
    $region42: #{sequence_routing_forward.3} parent=5 // pred_check_branch
      %252 = sbr.rel (%p249) target = $region44
    $region43: #{sequence_routing_forward.3} parent=5 // pred_region
      %s253 = ssub.s32 %s14, 1
      %p254 = scmp.lt.s32.totalorder %s19, 1
      %s255 = scalar_select %p254, %s19, 1
      %s256 = smul.addr %s255, 4
      %s257 = scalar_lea.vmem %s0, %s256
      %p258 = pneg %p40
      %p259 = pneg %p37
      %p260 = scmp.lt.s32.totalorder %s19, 1
      %s261 = scalar_select %p260, %s19, 1
      %s262 = smul.addr %s261, 4
      %s263 = scalar_lea.vmem %s1, %s262
      %p264 = pneg %p66
      %p265 = pneg %p63
      %p266 = pneg %p87
      %p267 = pneg %p84
      %p268 = pneg %p108
      %p269 = pneg %p105
      %p270 = pneg %p129
      %p271 = pneg %p126
      %p272 = pneg %p150
      %p273 = pneg %p147
      %p274 = pneg %p176
      %p275 = pneg %p173
      %p276 = scmp.lt.s32.totalorder %s19, 1
      %s277 = scalar_select %p276, %s19, 1
      %s278 = smul.addr %s277, 8
      %s279 = scalar_lea.vmem %s6, %s278
      %p280 = pneg %p202
      %p281 = pneg %p199
      %p282 = scmp.lt.s32.totalorder %s19, 1
      %s283 = scalar_select %p282, %s19, 1
      %s284 = scalar_lea.vmem %s7, %s283
      %p285 = scmp.lt.s32.totalorder %s19, 1
      %s286 = scalar_select %p285, %s19, 1
      %s287 = smul.addr %s286, 4
      %s288 = scalar_lea.vmem %s0, %s287
      %p289 = scmp.lt.s32.totalorder %s19, 1
      %s290 = scalar_select %p289, %s19, 1
      %s291 = smul.addr %s290, 4
      %s292 = scalar_lea.vmem %s1, %s291
      %p293 = scmp.lt.s32.totalorder %s19, 1
      %s294 = scalar_select %p293, %s19, 1
      %s295 = smul.addr %s294, 8
      %s296 = scalar_lea.vmem %s6, %s295
      %p297 = scmp.lt.s32.totalorder %s19, 1
      %s298 = scalar_select %p297, %s19, 1
      %s299 = scalar_lea.vmem %s7, %s298
      %v301 = vld [vmem:[%s288] sm:$0xf]
      %v302 = vld [vmem:[%s292] sm:$0xf]
      %v303 = vld [vmem:[%s2] sm:$0x3]
      %vm304 = vcmask 31744
      %v306 = vsel %vm304, %v302, 0
      %vm308 = vcmask 1041408
      %v310 = vsel %vm308, %v303, 0
      %312 = vmatprep.subr.bf16.mxu0 0
      %313 = vmatpush1.bf16.msra.mxu0 %v310
      %314 = vmatprep.subr.bf16.mxu0 0
      %315 = vmatpush1.bf16.msra.mxu0 0
      %316 = vmatprep.subr.bf16.mxu0 0
      %317 = vmatpush1.bf16.msra.mxu0 0
      %318 = vmatprep.subr.bf16.mxu0 0
      %319 = vmatpush1.bf16.msra.mxu0 0
      %320 = vmatprep.subr.bf16.mxu0 0
      %321 = vmatpush1.bf16.msra.mxu0 0
      %322 = vmatprep.subr.bf16.mxu0 0
      %323 = vmatpush1.bf16.msra.mxu0 0
      %324 = vmatprep.subr.bf16.mxu0 0
      %325 = vmatpush1.bf16.msra.mxu0 0
      %326 = vmatprep.subr.bf16.mxu0 0
      %327 = vmatpush1.bf16.msra.mxu0 0
      %328 = vmatprep.subr.bf16.mxu0 0
      %329 = vmatpush1.bf16.msra.mxu0 0
      %330 = vmatprep.subr.bf16.mxu0 0
      %331 = vmatpush1.bf16.msra.mxu0 0
      %332 = vmatprep.subr.bf16.mxu0 0
      %333 = vmatpush1.bf16.msra.mxu0 0
      %334 = vmatprep.subr.bf16.mxu0 0
      %335 = vmatpush1.bf16.msra.mxu0 0
      %336 = vmatprep.subr.bf16.mxu0 0
      %337 = vmatpush1.bf16.msra.mxu0 0
      %338 = vmatprep.subr.bf16.mxu0 0
      %339 = vmatpush1.bf16.msra.mxu0 0
      %340 = vmatprep.subr.bf16.mxu0 0
      %341 = vmatpush1.bf16.msra.mxu0 0
      %342 = vmatprep.subr.bf16.mxu0 0
      %343 = vmatpush1.bf16.msra.mxu0 0
      %344 = vmatprep.mubr.bf16.mxu0 0
      %345 = vmatmul.mubr.bf16.gmra.mrb[0].mxu0 %v306
      %v346 = vpop.f32.mrb[0].mxu0
      %v347 = vadd.f32 0.0, %v346
      %v348 = vpop.f32.mrb[0].mxu0
      %v349 = vpop.f32.mrb[0].mxu0
      %v350 = vpop.f32.mrb[0].mxu0
      %351 = vdwg.mxu0
      %v352 = vpack.c.bf16 %v347, %v347
      %v353 = vld [vmem:[%s3] sm:$0x1]
      %v355 = vlaneseq
      %v356 = vshrl.u32 %v355, 7
      %v357 = vsub.s32 0, %v356
      %v358 = vrot.slane %v353, %v357
      %vm360 = vcmask 64512
      %v362 = vsel %vm360, %v301, 0
      %vm364 = vcmask 1043456
      %v366 = vsel %vm364, %v352, 0
      %368 = vmatprep.subr.bf16.mxu0 0
      %369 = vmatpush1.bf16.msra.mxu0 %v366
      %370 = vmatprep.subr.bf16.mxu0 0
      %371 = vmatpush1.bf16.msra.mxu0 0
      %372 = vmatprep.subr.bf16.mxu0 0
      %373 = vmatpush1.bf16.msra.mxu0 0
      %374 = vmatprep.subr.bf16.mxu0 0
      %375 = vmatpush1.bf16.msra.mxu0 0
      %376 = vmatprep.subr.bf16.mxu0 0
      %377 = vmatpush1.bf16.msra.mxu0 0
      %378 = vmatprep.subr.bf16.mxu0 0
      %379 = vmatpush1.bf16.msra.mxu0 0
      %380 = vmatprep.subr.bf16.mxu0 0
      %381 = vmatpush1.bf16.msra.mxu0 0
      %382 = vmatprep.subr.bf16.mxu0 0
      %383 = vmatpush1.bf16.msra.mxu0 0
      %384 = vmatprep.subr.bf16.mxu0 0
      %385 = vmatpush1.bf16.msra.mxu0 0
      %386 = vmatprep.subr.bf16.mxu0 0
      %387 = vmatpush1.bf16.msra.mxu0 0
      %388 = vmatprep.subr.bf16.mxu0 0
      %389 = vmatpush1.bf16.msra.mxu0 0
      %390 = vmatprep.subr.bf16.mxu0 0
      %391 = vmatpush1.bf16.msra.mxu0 0
      %392 = vmatprep.subr.bf16.mxu0 0
      %393 = vmatpush1.bf16.msra.mxu0 0
      %394 = vmatprep.subr.bf16.mxu0 0
      %395 = vmatpush1.bf16.msra.mxu0 0
      %396 = vmatprep.subr.bf16.mxu0 0
      %397 = vmatpush1.bf16.msra.mxu0 0
      %398 = vmatprep.subr.bf16.mxu0 0
      %399 = vmatpush1.bf16.msra.mxu0 0
      %400 = vmatprep.mubr.bf16.mxu0 0
      %401 = vmatmul.mubr.bf16.gmra.mrb[0].mxu0 %v362
      %v402 = vpop.f32.mrb[0].mxu0
      %v403 = vadd.f32 %v358, %v402
      %v404 = vpop.f32.mrb[0].mxu0
      %v405 = vpop.f32.mrb[0].mxu0
      %v406 = vpop.f32.mrb[0].mxu0
      %407 = vdwg.mxu0
      %v408 = vmax.f32 %v403, 0.0
      %v409 = vpack.c.bf16 %v408, %v408
      %v410 = vld [vmem:[%s4] sm:$0xf]
      %v411 = vld [vmem:[%s4 + $0x4] sm:$0xf]
      %v412 = vld [vmem:[%s4 + $0x8] sm:$0xf]
      %v413 = vld [vmem:[%s4 + $0xc] sm:$0xf]
      %v418 = vunpack.c.l.b16 %v410
      %v419 = vunpack.c.l.b16 %v411
      %v420 = vunpack.c.l.b16 %v412
      %v421 = vunpack.c.l.b16 %v413
      %v422 = vpack.c.b16 %v419, %v418
      %v423 = vpack.c.b16 %v421, %v420
      %vm426 = vcmask 261120
      %v428 = vsel %vm426, %v409, 0
      %430 = vmatprep.subr.bf16.mxu0 0
      %431 = vmatpush1.bf16.msra.mxu0 %v422
      %432 = vmatprep.subr.bf16.mxu0 0
      %433 = vmatpush1.bf16.msra.mxu0 %v423
      %434 = vmatprep.subr.bf16.mxu0 0
      %435 = vmatpush1.bf16.msra.mxu0 0
      %436 = vmatprep.subr.bf16.mxu0 0
      %437 = vmatpush1.bf16.msra.mxu0 0
      %438 = vmatprep.subr.bf16.mxu0 0
      %439 = vmatpush1.bf16.msra.mxu0 0
      %440 = vmatprep.subr.bf16.mxu0 0
      %441 = vmatpush1.bf16.msra.mxu0 0
      %442 = vmatprep.subr.bf16.mxu0 0
      %443 = vmatpush1.bf16.msra.mxu0 0
      %444 = vmatprep.subr.bf16.mxu0 0
      %445 = vmatpush1.bf16.msra.mxu0 0
      %446 = vmatprep.subr.bf16.mxu0 0
      %447 = vmatpush1.bf16.msra.mxu0 0
      %448 = vmatprep.subr.bf16.mxu0 0
      %449 = vmatpush1.bf16.msra.mxu0 0
      %450 = vmatprep.subr.bf16.mxu0 0
      %451 = vmatpush1.bf16.msra.mxu0 0
      %452 = vmatprep.subr.bf16.mxu0 0
      %453 = vmatpush1.bf16.msra.mxu0 0
      %454 = vmatprep.subr.bf16.mxu0 0
      %455 = vmatpush1.bf16.msra.mxu0 0
      %456 = vmatprep.subr.bf16.mxu0 0
      %457 = vmatpush1.bf16.msra.mxu0 0
      %458 = vmatprep.subr.bf16.mxu0 0
      %459 = vmatpush1.bf16.msra.mxu0 0
      %460 = vmatprep.subr.bf16.mxu0 0
      %461 = vmatpush1.bf16.msra.mxu0 0
      %462 = vmatprep.mubr.bf16.mxu0 0
      %463 = vmatmul.mubr.bf16.gmra.mrb[0].mxu0 %v428
      %v464 = vpop.f32.mrb[0].mxu0
      %v465 = vadd.f32 0.0, %v464
      %v466 = vpop.f32.mrb[0].mxu0
      %v467 = vpop.f32.mrb[0].mxu0
      %v468 = vpop.f32.mrb[0].mxu0
      %469 = vdwg.mxu0
      %v470 = vpack.c.bf16 %v465, %v465
      %v471 = vld [vmem:[%s5] sm:$0x1]
      %v473 = vlaneseq
      %v474 = vshrl.u32 %v473, 7
      %v475 = vsub.s32 0, %v474
      %v476 = vrot.slane %v471, %v475
      %v479 = vsel %vm364, %v470, 0
      %481 = vmatprep.subr.bf16.mxu0 0
      %482 = vmatpush1.bf16.msra.mxu0 %v479
      %483 = vmatprep.subr.bf16.mxu0 0
      %484 = vmatpush1.bf16.msra.mxu0 0
      %485 = vmatprep.subr.bf16.mxu0 0
      %486 = vmatpush1.bf16.msra.mxu0 0
      %487 = vmatprep.subr.bf16.mxu0 0
      %488 = vmatpush1.bf16.msra.mxu0 0
      %489 = vmatprep.subr.bf16.mxu0 0
      %490 = vmatpush1.bf16.msra.mxu0 0
      %491 = vmatprep.subr.bf16.mxu0 0
      %492 = vmatpush1.bf16.msra.mxu0 0
      %493 = vmatprep.subr.bf16.mxu0 0
      %494 = vmatpush1.bf16.msra.mxu0 0
      %495 = vmatprep.subr.bf16.mxu0 0
      %496 = vmatpush1.bf16.msra.mxu0 0
      %497 = vmatprep.subr.bf16.mxu0 0
      %498 = vmatpush1.bf16.msra.mxu0 0
      %499 = vmatprep.subr.bf16.mxu0 0
      %500 = vmatpush1.bf16.msra.mxu0 0
      %501 = vmatprep.subr.bf16.mxu0 0
      %502 = vmatpush1.bf16.msra.mxu0 0
      %503 = vmatprep.subr.bf16.mxu0 0
      %504 = vmatpush1.bf16.msra.mxu0 0
      %505 = vmatprep.subr.bf16.mxu0 0
      %506 = vmatpush1.bf16.msra.mxu0 0
      %507 = vmatprep.subr.bf16.mxu0 0
      %508 = vmatpush1.bf16.msra.mxu0 0
      %509 = vmatprep.subr.bf16.mxu0 0
      %510 = vmatpush1.bf16.msra.mxu0 0
      %511 = vmatprep.subr.bf16.mxu0 0
      %512 = vmatpush1.bf16.msra.mxu0 0
      %513 = vmatprep.mubr.bf16.mxu0 0
      %514 = vmatmul.mubr.bf16.gmra.mrb[0].mxu0 %v362
      %v515 = vpop.f32.mrb[0].mxu0
      %v516 = vadd.f32 %v476, %v515
      %v517 = vpop.f32.mrb[0].mxu0
      %v518 = vpop.f32.mrb[0].mxu0
      %v519 = vpop.f32.mrb[0].mxu0
      %520 = vdwg.mxu0
      %521 = vst.msk [vmem:[%s296] sm:$0xff] %vm426, %v516
      %v522 = vsel %vm426, %v516, 0.0
      %v523 = vrot.slane %v522, 4
      %v524 = vadd.f32 %v522, %v523
      %v525 = vrot.slane %v524, 2
      %v526 = vadd.f32 %v524, %v525
      %v527 = vrot.slane %v526, 1
      %v528 = vadd.f32 %v526, %v527
      %v529 = vrcp.pop 8.0
      %v530 = vmul.f32 %v528, %v529
      %vm531 = vcmask 253952
      %532 = vst.msk [vmem:[%s299] sm:$0x1] %vm531, %v530
      %p533 = scmp.lt.s32.totalorder %s19, 1
      %s534 = scalar_select %p533, %s19, 1
      %s535 = smul.addr %s534, 8
      %s536 = scalar_lea.vmem %s6, %s535
      %p537 = scmp.lt.s32.totalorder %s19, 1
      %s538 = scalar_select %p537, %s19, 1
      %s539 = scalar_lea.vmem %s7, %s538
      // Predicated region
      $region45: #{sequence_routing_forward.3} parent=43 // pred_check
        %p540 = pneg %p173
      $region46: #{sequence_routing_forward.3} parent=43 // pred_check_branch
        %542 = sbr.rel (%p540) target = $region48
      $region47: #{sequence_routing_forward.3} parent=43 // pred_region
        _
      $region48: #{sequence_routing_forward.3} parent=43 // pred_fallthru
        _
      // Predicated region
      $region49: #{sequence_routing_forward.3} parent=43 // pred_check
        %p543 = pneg %p199
      $region50: #{sequence_routing_forward.3} parent=43 // pred_check_branch
        %545 = sbr.rel (%p543) target = $region52
      $region51: #{sequence_routing_forward.3} parent=43 // pred_region
        _
      $region52: #{sequence_routing_forward.3} parent=43 // pred_fallthru
        _
    $region44: #{sequence_routing_forward.3} parent=5 // pred_fallthru
      _
    %p546 = scmp.le.s32.totalorder 2, %s14
    // Predicated region
    $region53: #{sequence_routing_forward.3} parent=5 // pred_check
      %p547 = pneg %p546
    $region54: #{sequence_routing_forward.3} parent=5 // pred_check_branch
      %549 = sbr.rel (%p547) target = $region56
    $region55: #{sequence_routing_forward.3} parent=5 // pred_region
      %s550 = ssub.s32 %s14, 2
      // Predicated region
      $region57: #{sequence_routing_forward.3} parent=55 // pred_check
        %p551 = pneg %p179
      $region58: #{sequence_routing_forward.3} parent=55 // pred_check_branch
        %553 = sbr.rel (%p551) target = $region60
      $region59: #{sequence_routing_forward.3} parent=55 // pred_region
        %p554 = scmp.lt.s32.totalorder %s20, 1
        %s555 = scalar_select %p554, %s20, 1
        %s556 = smul.addr %s555, 8
        %s557 = scalar_lea.vmem %s6, %s556
      $region60: #{sequence_routing_forward.3} parent=55 // pred_fallthru
        _
      // Predicated region
      $region61: #{sequence_routing_forward.3} parent=55 // pred_check
        %p558 = pneg %p205
      $region62: #{sequence_routing_forward.3} parent=55 // pred_check_branch
        %560 = sbr.rel (%p558) target = $region64
      $region63: #{sequence_routing_forward.3} parent=55 // pred_region
        %p561 = scmp.lt.s32.totalorder %s20, 1
        %s562 = scalar_select %p561, %s20, 1
        %s563 = scalar_lea.vmem %s7, %s562
      $region64: #{sequence_routing_forward.3} parent=55 // pred_fallthru
        _
    $region56: #{sequence_routing_forward.3} parent=5 // pred_fallthru
      _
  $region6: #{sequence_routing_forward.3} parent=0 // loop_footer
    %s18 = sadd.s32 1, %s14
  $region7: #{sequence_routing_forward.3} parent=0 // loop_footer_branch
    %13 = sbr.rel target = $region3
  $region8: #{sequence_routing_forward.3} parent=0 // loop_exit
    _

// kernel: sequence_routing_forward.4
$region0: #{sequence_routing_forward.4}
  #allocation0 [shape = 'u32[]', space=smem, size = 0x4, offset = 0x4, fixed_abs, tag = 'smem constant byte address 0x4 - core index']
  #allocation1 [shape = 'u32[144,128]{1,0:T(1,128)}', space=vmem, size = 0x12000, scoped, tag = 'internal scratch']
  %s0 = inlined_call_operand.vmem [shape: bf16[16,16], index: 0, kind: input, shape index: {}]
  %s1 = inlined_call_operand.vmem [shape: bf16[16,4], index: 1, kind: input, shape index: {}]
  %s2 = inlined_call_operand.vmem [shape: bf16[4,32], index: 2, kind: input, shape index: {}]
  %s3 = inlined_call_operand.vmem [shape: f32[1,32], index: 3, kind: input, shape index: {}]
  %s4 = inlined_call_operand.vmem [shape: bf16[32,32], index: 4, kind: input, shape index: {}]
  %s5 = inlined_call_operand.vmem [shape: f32[1,32], index: 5, kind: input, shape index: {}]
  %s6 = inlined_call_operand.vmem [shape: bf16[32,3], index: 6, kind: input, shape index: {}]
  %s7 = inlined_call_operand.vmem [shape: f32[1,3], index: 7, kind: input, shape index: {}]
  %s8 = inlined_call_operand.vmem [shape: f32[16,3], index: 8, kind: output, shape index: {}]
  %s9 = sld [smem:[#allocation0]]
  $region42: #{sequence_routing_forward.4} parent=0
    _
  %s11 = ssub.s32 1, %s9
  %s12 = scalar_select 0, %s11, %s9
  // Predicated region
  $region2: #{sequence_routing_forward.4} parent=0 // pred_check
    _
  $region3: #{sequence_routing_forward.4} parent=0 // pred_check_branch
    %14 = sbr.rel (0) target = $region5
  $region4: #{sequence_routing_forward.4} parent=0 // pred_region
    _
  $region5: #{sequence_routing_forward.4} parent=0 // pred_fallthru
    _
  // Predicated region
  $region6: #{sequence_routing_forward.4} parent=0 // pred_check
    _
  $region7: #{sequence_routing_forward.4} parent=0 // pred_check_branch
    %16 = sbr.rel (0) target = $region9
  $region8: #{sequence_routing_forward.4} parent=0 // pred_region
    _
  $region9: #{sequence_routing_forward.4} parent=0 // pred_fallthru
    _
  // Predicated region
  $region10: #{sequence_routing_forward.4} parent=0 // pred_check
    _
  $region11: #{sequence_routing_forward.4} parent=0 // pred_check_branch
    %18 = sbr.rel (0) target = $region13
  $region12: #{sequence_routing_forward.4} parent=0 // pred_region
    _
  $region13: #{sequence_routing_forward.4} parent=0 // pred_fallthru
    _
  // Predicated region
  $region14: #{sequence_routing_forward.4} parent=0 // pred_check
    _
  $region15: #{sequence_routing_forward.4} parent=0 // pred_check_branch
    %20 = sbr.rel (0) target = $region17
  $region16: #{sequence_routing_forward.4} parent=0 // pred_region
    _
  $region17: #{sequence_routing_forward.4} parent=0 // pred_fallthru
    _
  // Predicated region
  $region18: #{sequence_routing_forward.4} parent=0 // pred_check
    _
  $region19: #{sequence_routing_forward.4} parent=0 // pred_check_branch
    %22 = sbr.rel (0) target = $region21
  $region20: #{sequence_routing_forward.4} parent=0 // pred_region
    _
  $region21: #{sequence_routing_forward.4} parent=0 // pred_fallthru
    _
  // Predicated region
  $region22: #{sequence_routing_forward.4} parent=0 // pred_check
    _
  $region23: #{sequence_routing_forward.4} parent=0 // pred_check_branch
    %24 = sbr.rel (0) target = $region25
  $region24: #{sequence_routing_forward.4} parent=0 // pred_region
    _
  $region25: #{sequence_routing_forward.4} parent=0 // pred_fallthru
    _
  // Predicated region
  $region26: #{sequence_routing_forward.4} parent=0 // pred_check
    _
  $region27: #{sequence_routing_forward.4} parent=0 // pred_check_branch
    %26 = sbr.rel (0) target = $region29
  $region28: #{sequence_routing_forward.4} parent=0 // pred_region
    _
  $region29: #{sequence_routing_forward.4} parent=0 // pred_fallthru
    _
  // Predicated region
  $region30: #{sequence_routing_forward.4} parent=0 // pred_check
    _
  $region31: #{sequence_routing_forward.4} parent=0 // pred_check_branch
    %28 = sbr.rel (0) target = $region33
  $region32: #{sequence_routing_forward.4} parent=0 // pred_region
    _
  $region33: #{sequence_routing_forward.4} parent=0 // pred_fallthru
    _
  %v30 = vld [vmem:[%s0] sm:$0xf]
  %v31 = vld [vmem:[%s0 + $0x4] sm:$0xf]
  %v32 = vld [vmem:[%s1] sm:$0xf]
  %v33 = vld [vmem:[%s1 + $0x4] sm:$0xf]
  %v34 = vld [vmem:[%s2] sm:$0x3]
  %v37 = vunpack.c.l.b16 %v32
  %v38 = vunpack.c.l.b16 %v33
  %v39 = vpack.c.b16 %v38, %v37
  %vm40 = vcmask 31744
  %v42 = vsel %vm40, %v39, 0
  %vm44 = vcmask 1041408
  %v46 = vsel %vm44, %v34, 0
  %48 = vmatprep.subr.bf16.mxu0 0
  %49 = vmatpush1.bf16.msra.mxu0 %v46
  %50 = vmatprep.subr.bf16.mxu0 0
  %51 = vmatpush1.bf16.msra.mxu0 0
  %52 = vmatprep.subr.bf16.mxu0 0
  %53 = vmatpush1.bf16.msra.mxu0 0
  %54 = vmatprep.subr.bf16.mxu0 0
  %55 = vmatpush1.bf16.msra.mxu0 0
  %56 = vmatprep.subr.bf16.mxu0 0
  %57 = vmatpush1.bf16.msra.mxu0 0
  %58 = vmatprep.subr.bf16.mxu0 0
  %59 = vmatpush1.bf16.msra.mxu0 0
  %60 = vmatprep.subr.bf16.mxu0 0
  %61 = vmatpush1.bf16.msra.mxu0 0
  %62 = vmatprep.subr.bf16.mxu0 0
  %63 = vmatpush1.bf16.msra.mxu0 0
  %64 = vmatprep.subr.bf16.mxu0 0
  %65 = vmatpush1.bf16.msra.mxu0 0
  %66 = vmatprep.subr.bf16.mxu0 0
  %67 = vmatpush1.bf16.msra.mxu0 0
  %68 = vmatprep.subr.bf16.mxu0 0
  %69 = vmatpush1.bf16.msra.mxu0 0
  %70 = vmatprep.subr.bf16.mxu0 0
  %71 = vmatpush1.bf16.msra.mxu0 0
  %72 = vmatprep.subr.bf16.mxu0 0
  %73 = vmatpush1.bf16.msra.mxu0 0
  %74 = vmatprep.subr.bf16.mxu0 0
  %75 = vmatpush1.bf16.msra.mxu0 0
  %76 = vmatprep.subr.bf16.mxu0 0
  %77 = vmatpush1.bf16.msra.mxu0 0
  %78 = vmatprep.subr.bf16.mxu0 0
  %79 = vmatpush1.bf16.msra.mxu0 0
  %80 = vmatprep.mubr.bf16.mxu0 0
  %81 = vmatmul.mubr.bf16.gmra.mrb[0].mxu0 %v42
  %v82 = vpop.f32.mrb[0].mxu0
  %v83 = vadd.f32 0.0, %v82
  %v84 = vpop.f32.mrb[0].mxu0
  %v85 = vpop.f32.mrb[0].mxu0
  %v86 = vadd.f32 0.0, %v85
  %v87 = vpop.f32.mrb[0].mxu0
  %88 = vdwg.mxu0
  %v89 = vpack.c.bf16 %v86, %v83
  %v90 = vld [vmem:[%s3] sm:$0x1]
  %v92 = vlaneseq
  %v93 = vshrl.u32 %v92, 7
  %v94 = vsub.s32 0, %v93
  %v95 = vrot.slane %v90, %v94
  %v99 = vunpack.c.l.b16 %v30
  %v100 = vunpack.c.l.b16 %v31
  %v101 = vpack.c.b16 %v100, %v99
  %vm102 = vcmask 130048
  %v104 = vsel %vm102, %v101, 0
  %106 = vmatprep.subr.bf16.mxu0 0
  %107 = vmatpush1.bf16.msra.mxu0 %v89
  %108 = vmatprep.subr.bf16.mxu0 0
  %109 = vmatpush1.bf16.msra.mxu0 0
  %110 = vmatprep.subr.bf16.mxu0 0
  %111 = vmatpush1.bf16.msra.mxu0 0
  %112 = vmatprep.subr.bf16.mxu0 0
  %113 = vmatpush1.bf16.msra.mxu0 0
  %114 = vmatprep.subr.bf16.mxu0 0
  %115 = vmatpush1.bf16.msra.mxu0 0
  %116 = vmatprep.subr.bf16.mxu0 0
  %117 = vmatpush1.bf16.msra.mxu0 0
  %118 = vmatprep.subr.bf16.mxu0 0
  %119 = vmatpush1.bf16.msra.mxu0 0
  %120 = vmatprep.subr.bf16.mxu0 0
  %121 = vmatpush1.bf16.msra.mxu0 0
  %122 = vmatprep.subr.bf16.mxu0 0
  %123 = vmatpush1.bf16.msra.mxu0 0
  %124 = vmatprep.subr.bf16.mxu0 0
  %125 = vmatpush1.bf16.msra.mxu0 0
  %126 = vmatprep.subr.bf16.mxu0 0
  %127 = vmatpush1.bf16.msra.mxu0 0
  %128 = vmatprep.subr.bf16.mxu0 0
  %129 = vmatpush1.bf16.msra.mxu0 0
  %130 = vmatprep.subr.bf16.mxu0 0
  %131 = vmatpush1.bf16.msra.mxu0 0
  %132 = vmatprep.subr.bf16.mxu0 0
  %133 = vmatpush1.bf16.msra.mxu0 0
  %134 = vmatprep.subr.bf16.mxu0 0
  %135 = vmatpush1.bf16.msra.mxu0 0
  %136 = vmatprep.subr.bf16.mxu0 0
  %137 = vmatpush1.bf16.msra.mxu0 0
  %138 = vmatprep.mubr.bf16.mxu0 0
  %139 = vmatmul.mubr.bf16.gmra.mrb[0].mxu0 %v104
  %v140 = vpop.f32.mrb[0].mxu0
  %v141 = vadd.f32 %v95, %v140
  %v142 = vpop.f32.mrb[0].mxu0
  %v143 = vpop.f32.mrb[0].mxu0
  %v144 = vadd.f32 %v95, %v143
  %v145 = vpop.f32.mrb[0].mxu0
  %146 = vdwg.mxu0
  %v147 = vmax.f32 %v141, 0.0
  %v148 = vmax.f32 %v144, 0.0
  %v149 = vpack.c.bf16 %v148, %v147
  %v150 = vld [vmem:[%s4] sm:$0xf]
  %v151 = vld [vmem:[%s4 + $0x4] sm:$0xf]
  %v152 = vld [vmem:[%s4 + $0x8] sm:$0xf]
  %v153 = vld [vmem:[%s4 + $0xc] sm:$0xf]
  %v158 = vunpack.c.l.b16 %v150
  %v159 = vunpack.c.l.b16 %v151
  %v160 = vunpack.c.l.b16 %v152
  %v161 = vunpack.c.l.b16 %v153
  %v162 = vpack.c.b16 %v159, %v158
  %v163 = vpack.c.b16 %v161, %v160
  %vm166 = vcmask 261120
  %v168 = vsel %vm166, %v149, 0
  %170 = vmatprep.subr.bf16.mxu0 0
  %171 = vmatpush1.bf16.msra.mxu0 %v162
  %172 = vmatprep.subr.bf16.mxu0 0
  %173 = vmatpush1.bf16.msra.mxu0 %v163
  %174 = vmatprep.subr.bf16.mxu0 0
  %175 = vmatpush1.bf16.msra.mxu0 0
  %176 = vmatprep.subr.bf16.mxu0 0
  %177 = vmatpush1.bf16.msra.mxu0 0
  %178 = vmatprep.subr.bf16.mxu0 0
  %179 = vmatpush1.bf16.msra.mxu0 0
  %180 = vmatprep.subr.bf16.mxu0 0
  %181 = vmatpush1.bf16.msra.mxu0 0
  %182 = vmatprep.subr.bf16.mxu0 0
  %183 = vmatpush1.bf16.msra.mxu0 0
  %184 = vmatprep.subr.bf16.mxu0 0
  %185 = vmatpush1.bf16.msra.mxu0 0
  %186 = vmatprep.subr.bf16.mxu0 0
  %187 = vmatpush1.bf16.msra.mxu0 0
  %188 = vmatprep.subr.bf16.mxu0 0
  %189 = vmatpush1.bf16.msra.mxu0 0
  %190 = vmatprep.subr.bf16.mxu0 0
  %191 = vmatpush1.bf16.msra.mxu0 0
  %192 = vmatprep.subr.bf16.mxu0 0
  %193 = vmatpush1.bf16.msra.mxu0 0
  %194 = vmatprep.subr.bf16.mxu0 0
  %195 = vmatpush1.bf16.msra.mxu0 0
  %196 = vmatprep.subr.bf16.mxu0 0
  %197 = vmatpush1.bf16.msra.mxu0 0
  %198 = vmatprep.subr.bf16.mxu0 0
  %199 = vmatpush1.bf16.msra.mxu0 0
  %200 = vmatprep.subr.bf16.mxu0 0
  %201 = vmatpush1.bf16.msra.mxu0 0
  %202 = vmatprep.mubr.bf16.mxu0 0
  %203 = vmatmul.mubr.bf16.gmra.mrb[0].mxu0 %v168
  %v204 = vpop.f32.mrb[0].mxu0
  %v205 = vadd.f32 0.0, %v204
  %v206 = vpop.f32.mrb[0].mxu0
  %v207 = vpop.f32.mrb[0].mxu0
  %v208 = vadd.f32 0.0, %v207
  %v209 = vpop.f32.mrb[0].mxu0
  %210 = vdwg.mxu0
  %v211 = vpack.c.bf16 %v208, %v205
  %v212 = vld [vmem:[%s5] sm:$0x1]
  %v214 = vlaneseq
  %v215 = vshrl.u32 %v214, 7
  %v216 = vsub.s32 0, %v215
  %v217 = vrot.slane %v212, %v216
  %219 = vmatprep.subr.bf16.mxu0 0
  %220 = vmatpush1.bf16.msra.mxu0 %v211
  %221 = vmatprep.subr.bf16.mxu0 0
  %222 = vmatpush1.bf16.msra.mxu0 0
  %223 = vmatprep.subr.bf16.mxu0 0
  %224 = vmatpush1.bf16.msra.mxu0 0
  %225 = vmatprep.subr.bf16.mxu0 0
  %226 = vmatpush1.bf16.msra.mxu0 0
  %227 = vmatprep.subr.bf16.mxu0 0
  %228 = vmatpush1.bf16.msra.mxu0 0
  %229 = vmatprep.subr.bf16.mxu0 0
  %230 = vmatpush1.bf16.msra.mxu0 0
  %231 = vmatprep.subr.bf16.mxu0 0
  %232 = vmatpush1.bf16.msra.mxu0 0
  %233 = vmatprep.subr.bf16.mxu0 0
  %234 = vmatpush1.bf16.msra.mxu0 0
  %235 = vmatprep.subr.bf16.mxu0 0
  %236 = vmatpush1.bf16.msra.mxu0 0
  %237 = vmatprep.subr.bf16.mxu0 0
  %238 = vmatpush1.bf16.msra.mxu0 0
  %239 = vmatprep.subr.bf16.mxu0 0
  %240 = vmatpush1.bf16.msra.mxu0 0
  %241 = vmatprep.subr.bf16.mxu0 0
  %242 = vmatpush1.bf16.msra.mxu0 0
  %243 = vmatprep.subr.bf16.mxu0 0
  %244 = vmatpush1.bf16.msra.mxu0 0
  %245 = vmatprep.subr.bf16.mxu0 0
  %246 = vmatpush1.bf16.msra.mxu0 0
  %247 = vmatprep.subr.bf16.mxu0 0
  %248 = vmatpush1.bf16.msra.mxu0 0
  %249 = vmatprep.subr.bf16.mxu0 0
  %250 = vmatpush1.bf16.msra.mxu0 0
  %251 = vmatprep.mubr.bf16.mxu0 0
  %252 = vmatmul.mubr.bf16.gmra.mrb[0].mxu0 %v104
  %v253 = vpop.f32.mrb[0].mxu0
  %v254 = vadd.f32 %v217, %v253
  %v255 = vpop.f32.mrb[0].mxu0
  %v256 = vpop.f32.mrb[0].mxu0
  %v257 = vadd.f32 %v217, %v256
  %v258 = vpop.f32.mrb[0].mxu0
  %259 = vdwg.mxu0
  %v260 = vmax.f32 %v254, 0.0
  %v261 = vmax.f32 %v257, 0.0
  %v262 = vpack.c.bf16 %v261, %v260
  %v263 = vld [vmem:[%s6] sm:$0xf]
  %v264 = vld [vmem:[%s6 + $0x4] sm:$0xf]
  %v265 = vld [vmem:[%s6 + $0x8] sm:$0xf]
  %v266 = vld [vmem:[%s6 + $0xc] sm:$0xf]
  %v267 = vld [vmem:[%s7] sm:$0x1]
  %v269 = vlaneseq
  %v270 = vshrl.u32 %v269, 7
  %v271 = vsub.s32 0, %v270
  %v272 = vrot.slane %v267, %v271
  %v278 = vunpack.c.l.b16 %v263
  %v279 = vunpack.c.l.b16 %v264
  %v280 = vunpack.c.l.b16 %v265
  %v281 = vunpack.c.l.b16 %v266
  %v282 = vpack.c.b16 %v279, %v278
  %v283 = vpack.c.b16 %v281, %v280
  %v287 = vsel %vm166, %v262, 0
  %289 = vmatprep.subr.bf16.mxu0 0
  %290 = vmatpush1.bf16.msra.mxu0 %v282
  %291 = vmatprep.subr.bf16.mxu0 0
  %292 = vmatpush1.bf16.msra.mxu0 %v283
  %293 = vmatprep.subr.bf16.mxu0 0
  %294 = vmatpush1.bf16.msra.mxu0 0
  %295 = vmatprep.subr.bf16.mxu0 0
  %296 = vmatpush1.bf16.msra.mxu0 0
  %297 = vmatprep.subr.bf16.mxu0 0
  %298 = vmatpush1.bf16.msra.mxu0 0
  %299 = vmatprep.subr.bf16.mxu0 0
  %300 = vmatpush1.bf16.msra.mxu0 0
  %301 = vmatprep.subr.bf16.mxu0 0
  %302 = vmatpush1.bf16.msra.mxu0 0
  %303 = vmatprep.subr.bf16.mxu0 0
  %304 = vmatpush1.bf16.msra.mxu0 0
  %305 = vmatprep.subr.bf16.mxu0 0
  %306 = vmatpush1.bf16.msra.mxu0 0
  %307 = vmatprep.subr.bf16.mxu0 0
  %308 = vmatpush1.bf16.msra.mxu0 0
  %309 = vmatprep.subr.bf16.mxu0 0
  %310 = vmatpush1.bf16.msra.mxu0 0
  %311 = vmatprep.subr.bf16.mxu0 0
  %312 = vmatpush1.bf16.msra.mxu0 0
  %313 = vmatprep.subr.bf16.mxu0 0
  %314 = vmatpush1.bf16.msra.mxu0 0
  %315 = vmatprep.subr.bf16.mxu0 0
  %316 = vmatpush1.bf16.msra.mxu0 0
  %317 = vmatprep.subr.bf16.mxu0 0
  %318 = vmatpush1.bf16.msra.mxu0 0
  %319 = vmatprep.subr.bf16.mxu0 0
  %320 = vmatpush1.bf16.msra.mxu0 0
  %321 = vmatprep.mubr.bf16.mxu0 0
  %322 = vmatmul.mubr.bf16.gmra.mrb[0].mxu0 %v287
  %v323 = vpop.f32.mrb[0].mxu0
  %v324 = vadd.f32 %v272, %v323
  %v325 = vpop.f32.mrb[0].mxu0
  %v326 = vpop.f32.mrb[0].mxu0
  %v327 = vadd.f32 %v272, %v326
  %v328 = vpop.f32.mrb[0].mxu0
  %329 = vdwg.mxu0
  %vm330 = vcmask 23552
  %331 = vst.msk [vmem:[%s8] sm:$0xff] %vm330, %v324
  %332 = vst.msk [vmem:[%s8 + $0x8] sm:$0xff] %vm330, %v327
  // Predicated region
  $region34: #{sequence_routing_forward.4} parent=0 // pred_check
    _
  $region35: #{sequence_routing_forward.4} parent=0 // pred_check_branch
    %334 = sbr.rel (0) target = $region37
  $region36: #{sequence_routing_forward.4} parent=0 // pred_region
    _
  $region37: #{sequence_routing_forward.4} parent=0 // pred_fallthru
    _
  // Predicated region
  $region38: #{sequence_routing_forward.4} parent=0 // pred_check
    _
  $region39: #{sequence_routing_forward.4} parent=0 // pred_check_branch
    %336 = sbr.rel (0) target = $region41
  $region40: #{sequence_routing_forward.4} parent=0 // pred_region
    _
  $region41: #{sequence_routing_forward.4} parent=0 // pred_fallthru
    _

// kernel: sequence_routing_forward.5
$region0: #{sequence_routing_forward.5}
  #allocation0 [shape = 'u32[]', space=smem, size = 0x4, offset = 0x4, fixed_abs, tag = 'smem constant byte address 0x4 - core index']
  #allocation1 [shape = 'u32[144,128]{1,0:T(1,128)}', space=vmem, size = 0x12000, scoped, tag = 'internal scratch']
  %s0 = inlined_call_operand.vmem [shape: f32[2,32], index: 0, kind: input, shape index: {}]
  %s1 = inlined_call_operand.vmem [shape: f32[128,32], index: 1, kind: input, shape index: {}]
  %s2 = inlined_call_operand.vmem [shape: f32[2,128], index: 2, kind: input, shape index: {}]
  %s3 = inlined_call_operand.vmem [shape: f32[2,128], index: 3, kind: input, shape index: {}]
  %s4 = inlined_call_operand.vmem [shape: f32[97,32], index: 4, kind: input, shape index: {}]
  %s5 = inlined_call_operand.vmem [shape: f32[32,32], index: 5, kind: input, shape index: {}]
  %s6 = inlined_call_operand.vmem [shape: f32[1,8,2,128], index: 6, kind: output, shape index: {}]
  %s7 = sld [smem:[#allocation0]]
  $region34: #{sequence_routing_forward.5} parent=0
    _
  %s9 = ssub.s32 1, %s7
  %s10 = scalar_select 0, %s9, %s7
  // Predicated region
  $region2: #{sequence_routing_forward.5} parent=0 // pred_check
    _
  $region3: #{sequence_routing_forward.5} parent=0 // pred_check_branch
    %12 = sbr.rel (0) target = $region5
  $region4: #{sequence_routing_forward.5} parent=0 // pred_region
    _
  $region5: #{sequence_routing_forward.5} parent=0 // pred_fallthru
    _
  // Predicated region
  $region6: #{sequence_routing_forward.5} parent=0 // pred_check
    _
  $region7: #{sequence_routing_forward.5} parent=0 // pred_check_branch
    %14 = sbr.rel (0) target = $region9
  $region8: #{sequence_routing_forward.5} parent=0 // pred_region
    _
  $region9: #{sequence_routing_forward.5} parent=0 // pred_fallthru
    _
  // Predicated region
  $region10: #{sequence_routing_forward.5} parent=0 // pred_check
    _
  $region11: #{sequence_routing_forward.5} parent=0 // pred_check_branch
    %16 = sbr.rel (0) target = $region13
  $region12: #{sequence_routing_forward.5} parent=0 // pred_region
    _
  $region13: #{sequence_routing_forward.5} parent=0 // pred_fallthru
    _
  // Predicated region
  $region14: #{sequence_routing_forward.5} parent=0 // pred_check
    _
  $region15: #{sequence_routing_forward.5} parent=0 // pred_check_branch
    %18 = sbr.rel (0) target = $region17
  $region16: #{sequence_routing_forward.5} parent=0 // pred_region
    _
  $region17: #{sequence_routing_forward.5} parent=0 // pred_fallthru
    _
  // Predicated region
  $region18: #{sequence_routing_forward.5} parent=0 // pred_check
    _
  $region19: #{sequence_routing_forward.5} parent=0 // pred_check_branch
    %20 = sbr.rel (0) target = $region21
  $region20: #{sequence_routing_forward.5} parent=0 // pred_region
    _
  $region21: #{sequence_routing_forward.5} parent=0 // pred_fallthru
    _
  // Predicated region
  $region22: #{sequence_routing_forward.5} parent=0 // pred_check
    _
  $region23: #{sequence_routing_forward.5} parent=0 // pred_check_branch
    %22 = sbr.rel (0) target = $region25
  $region24: #{sequence_routing_forward.5} parent=0 // pred_region
    _
  $region25: #{sequence_routing_forward.5} parent=0 // pred_fallthru
    _
  %v23 = vld [vmem:[%s1] sm:$0xff]
  %v24 = vld [vmem:[%s1 + $0x8] sm:$0xff]
  %v25 = vld [vmem:[%s1 + $0x10] sm:$0xff]
  %v26 = vld [vmem:[%s1 + $0x18] sm:$0xff]
  %v27 = vld [vmem:[%s1 + $0x20] sm:$0xff]
  %v28 = vld [vmem:[%s1 + $0x28] sm:$0xff]
  %v29 = vld [vmem:[%s1 + $0x30] sm:$0xff]
  %v30 = vld [vmem:[%s1 + $0x38] sm:$0xff]
  %v31 = vld [vmem:[%s1 + $0x40] sm:$0xff]
  %v32 = vld [vmem:[%s1 + $0x48] sm:$0xff]
  %v33 = vld [vmem:[%s1 + $0x50] sm:$0xff]
  %v34 = vld [vmem:[%s1 + $0x58] sm:$0xff]
  %v35 = vld [vmem:[%s1 + $0x60] sm:$0xff]
  %v36 = vld [vmem:[%s1 + $0x68] sm:$0xff]
  %v37 = vld [vmem:[%s1 + $0x70] sm:$0xff]
  %v38 = vld [vmem:[%s1 + $0x78] sm:$0xff]
  %v39 = vld [vmem:[%s0] sm:$0x3]
  %v40 = vld [vmem:[%s2] sm:$0x3]
  %v41 = vld [vmem:[%s3] sm:$0x3]
  %v42 = vld [vmem:[%s4] sm:$0xff]
  %v43 = vld [vmem:[%s4 + $0x8] sm:$0xff]
  %v44 = vld [vmem:[%s4 + $0x10] sm:$0xff]
  %v45 = vld [vmem:[%s4 + $0x18] sm:$0xff]
  %v46 = vld [vmem:[%s4 + $0x20] sm:$0xff]
  %v47 = vld [vmem:[%s4 + $0x28] sm:$0xff]
  %v48 = vld [vmem:[%s4 + $0x30] sm:$0xff]
  %v49 = vld [vmem:[%s4 + $0x38] sm:$0xff]
  %v50 = vld [vmem:[%s4 + $0x40] sm:$0xff]
  %v51 = vld [vmem:[%s4 + $0x48] sm:$0xff]
  %v52 = vld [vmem:[%s4 + $0x50] sm:$0xff]
  %v53 = vld [vmem:[%s4 + $0x58] sm:$0xff]
  %v54 = vld [vmem:[%s4 + $0x60] sm:$0x1]
  %v55 = vld [vmem:[%s5] sm:$0xff]
  %v56 = vld [vmem:[%s5 + $0x8] sm:$0xff]
  %v57 = vld [vmem:[%s5 + $0x10] sm:$0xff]
  %v58 = vld [vmem:[%s5 + $0x18] sm:$0xff]
  %v59 = vlaneseq
  %v60 = vshrl.u32 %v59, 7
  %v61 = vsub.s32 0, %v60
  %v62 = vrot.slane %v54, %v61
  %vm63 = vcmask 261120
  %v65 = vsel %vm63, %v39, 0
  %67 = vmatprep.subr.mxu0 0.0
  %68 = vmatpush1.msra.mxu0 %v42
  %69 = vmatprep.subr.mxu0 0.0
  %70 = vmatpush1.msra.mxu0 %v43
  %71 = vmatprep.subr.mxu0 0.0
  %72 = vmatpush1.msra.mxu0 %v44
  %73 = vmatprep.subr.mxu0 0.0
  %74 = vmatpush1.msra.mxu0 %v45
  %75 = vmatprep.subr.mxu0 0.0
  %76 = vmatpush1.msra.mxu0 0.0
  %77 = vmatprep.subr.mxu0 0.0
  %78 = vmatpush1.msra.mxu0 0.0
  %79 = vmatprep.subr.mxu0 0.0
  %80 = vmatpush1.msra.mxu0 0.0
  %81 = vmatprep.subr.mxu0 0.0
  %82 = vmatpush1.msra.mxu0 0.0
  %83 = vmatprep.subr.mxu0 0.0
  %84 = vmatpush1.msra.mxu0 0.0
  %85 = vmatprep.subr.mxu0 0.0
  %86 = vmatpush1.msra.mxu0 0.0
  %87 = vmatprep.subr.mxu0 0.0
  %88 = vmatpush1.msra.mxu0 0.0
  %89 = vmatprep.subr.mxu0 0.0
  %90 = vmatpush1.msra.mxu0 0.0
  %91 = vmatprep.subr.mxu0 0.0
  %92 = vmatpush1.msra.mxu0 0.0
  %93 = vmatprep.subr.mxu0 0.0
  %94 = vmatpush1.msra.mxu0 0.0
  %95 = vmatprep.subr.mxu0 0.0
  %96 = vmatpush1.msra.mxu0 0.0
  %97 = vmatprep.subr.mxu0 0.0
  %98 = vmatpush1.msra.mxu0 0.0
  %99 = vmatprep.subr.mxu0 0.0
  %100 = vmatpush1.msra.mxu0 0.0
  %101 = vmatprep.subr.mxu0 0.0
  %102 = vmatpush1.msra.mxu0 0.0
  %103 = vmatprep.subr.mxu0 0.0
  %104 = vmatpush1.msra.mxu0 0.0
  %105 = vmatprep.subr.mxu0 0.0
  %106 = vmatpush1.msra.mxu0 0.0
  %107 = vmatprep.subr.mxu0 0.0
  %108 = vmatpush1.msra.mxu0 0.0
  %109 = vmatprep.subr.mxu0 0.0
  %110 = vmatpush1.msra.mxu0 0.0
  %111 = vmatprep.subr.mxu0 0.0
  %112 = vmatpush1.msra.mxu0 0.0
  %113 = vmatprep.subr.mxu0 0.0
  %114 = vmatpush1.msra.mxu0 0.0
  %115 = vmatprep.subr.mxu0 0.0
  %116 = vmatpush1.msra.mxu0 0.0
  %117 = vmatprep.subr.mxu0 0.0
  %118 = vmatpush1.msra.mxu0 0.0
  %119 = vmatprep.subr.mxu0 0.0
  %120 = vmatpush1.msra.mxu0 0.0
  %121 = vmatprep.subr.mxu0 0.0
  %122 = vmatpush1.msra.mxu0 0.0
  %123 = vmatprep.subr.mxu0 0.0
  %124 = vmatpush1.msra.mxu0 0.0
  %125 = vmatprep.subr.mxu0 0.0
  %126 = vmatpush1.msra.mxu0 0.0
  %127 = vmatprep.subr.mxu0 0.0
  %128 = vmatpush1.msra.mxu0 0.0
  %129 = vmatprep.subr.mxu0 0.0
  %130 = vmatpush1.msra.mxu0 0.0
  %131 = vmatprep.mubr.f32.mxu0 0.0
  %132 = vmatmul.mubr.f32.gmra.mrb[0].mxu0 %v65
  %v133 = vpop.f32.mrb[0].mxu0
  %v134 = vadd.f32 %v62, %v133
  %v135 = vpop.f32.mrb[0].mxu0
  %136 = vdwg.mxu0
  %v137 = vtanh.pop %v134
  %v139 = vsel %vm63, %v137, 0
  %141 = vmatprep.subr.mxu0 0.0
  %142 = vmatpush1.msra.mxu0 %v50
  %143 = vmatprep.subr.mxu0 0.0
  %144 = vmatpush1.msra.mxu0 %v51
  %145 = vmatprep.subr.mxu0 0.0
  %146 = vmatpush1.msra.mxu0 %v52
  %147 = vmatprep.subr.mxu0 0.0
  %148 = vmatpush1.msra.mxu0 %v53
  %149 = vmatprep.subr.mxu0 0.0
  %150 = vmatpush1.msra.mxu0 0.0
  %151 = vmatprep.subr.mxu0 0.0
  %152 = vmatpush1.msra.mxu0 0.0
  %153 = vmatprep.subr.mxu0 0.0
  %154 = vmatpush1.msra.mxu0 0.0
  %155 = vmatprep.subr.mxu0 0.0
  %156 = vmatpush1.msra.mxu0 0.0
  %157 = vmatprep.subr.mxu0 0.0
  %158 = vmatpush1.msra.mxu0 0.0
  %159 = vmatprep.subr.mxu0 0.0
  %160 = vmatpush1.msra.mxu0 0.0
  %161 = vmatprep.subr.mxu0 0.0
  %162 = vmatpush1.msra.mxu0 0.0
  %163 = vmatprep.subr.mxu0 0.0
  %164 = vmatpush1.msra.mxu0 0.0
  %165 = vmatprep.subr.mxu0 0.0
  %166 = vmatpush1.msra.mxu0 0.0
  %167 = vmatprep.subr.mxu0 0.0
  %168 = vmatpush1.msra.mxu0 0.0
  %169 = vmatprep.subr.mxu0 0.0
  %170 = vmatpush1.msra.mxu0 0.0
  %171 = vmatprep.subr.mxu0 0.0
  %172 = vmatpush1.msra.mxu0 0.0
  %173 = vmatprep.subr.mxu0 0.0
  %174 = vmatpush1.msra.mxu0 0.0
  %175 = vmatprep.subr.mxu0 0.0
  %176 = vmatpush1.msra.mxu0 0.0
  %177 = vmatprep.subr.mxu0 0.0
  %178 = vmatpush1.msra.mxu0 0.0
  %179 = vmatprep.subr.mxu0 0.0
  %180 = vmatpush1.msra.mxu0 0.0
  %181 = vmatprep.subr.mxu0 0.0
  %182 = vmatpush1.msra.mxu0 0.0
  %183 = vmatprep.subr.mxu0 0.0
  %184 = vmatpush1.msra.mxu0 0.0
  %185 = vmatprep.subr.mxu0 0.0
  %186 = vmatpush1.msra.mxu0 0.0
  %187 = vmatprep.subr.mxu0 0.0
  %188 = vmatpush1.msra.mxu0 0.0
  %189 = vmatprep.subr.mxu0 0.0
  %190 = vmatpush1.msra.mxu0 0.0
  %191 = vmatprep.subr.mxu0 0.0
  %192 = vmatpush1.msra.mxu0 0.0
  %193 = vmatprep.subr.mxu0 0.0
  %194 = vmatpush1.msra.mxu0 0.0
  %195 = vmatprep.subr.mxu0 0.0
  %196 = vmatpush1.msra.mxu0 0.0
  %197 = vmatprep.subr.mxu0 0.0
  %198 = vmatpush1.msra.mxu0 0.0
  %199 = vmatprep.subr.mxu0 0.0
  %200 = vmatpush1.msra.mxu0 0.0
  %201 = vmatprep.subr.mxu0 0.0
  %202 = vmatpush1.msra.mxu0 0.0
  %203 = vmatprep.subr.mxu0 0.0
  %204 = vmatpush1.msra.mxu0 0.0
  %205 = vmatprep.mubr.f32.mxu0 0.0
  %206 = vmatmul.mubr.f32.gmra.mrb[0].mxu0 %v139
  %v207 = vpop.f32.mrb[0].mxu0
  %v208 = vadd.f32 0.0, %v207
  %v209 = vpop.f32.mrb[0].mxu0
  %210 = vdwg.mxu0
  %v212 = vsel %vm63, %v55, 0
  %v215 = vsel %vm63, %v56, 0
  %v218 = vsel %vm63, %v57, 0
  %v221 = vsel %vm63, %v58, 0
  %v224 = vsel %vm63, %v23, 0
  %v227 = vsel %vm63, %v24, 0
  %v230 = vsel %vm63, %v25, 0
  %v233 = vsel %vm63, %v26, 0
  %v236 = vsel %vm63, %v27, 0
  %v239 = vsel %vm63, %v28, 0
  %v242 = vsel %vm63, %v29, 0
  %v245 = vsel %vm63, %v30, 0
  %v248 = vsel %vm63, %v31, 0
  %v251 = vsel %vm63, %v32, 0
  %v254 = vsel %vm63, %v33, 0
  %v257 = vsel %vm63, %v34, 0
  %v260 = vsel %vm63, %v35, 0
  %v263 = vsel %vm63, %v36, 0
  %v266 = vsel %vm63, %v37, 0
  %v269 = vsel %vm63, %v38, 0
  %271 = vmatprep.subr.mxu0 0.0
  %272 = vmatpush1.xpose.msra.mxu0 %v224
  %273 = vmatprep.subr.mxu0 0.0
  %274 = vmatpush1.xpose.msra.mxu0 %v227
  %275 = vmatprep.subr.mxu0 0.0
  %276 = vmatpush1.xpose.msra.mxu0 %v230
  %277 = vmatprep.subr.mxu0 0.0
  %278 = vmatpush1.xpose.msra.mxu0 %v233
  %279 = vmatprep.subr.mxu0 0.0
  %280 = vmatpush1.xpose.msra.mxu0 %v236
  %281 = vmatprep.subr.mxu0 0.0
  %282 = vmatpush1.xpose.msra.mxu0 %v239
  %283 = vmatprep.subr.mxu0 0.0
  %284 = vmatpush1.xpose.msra.mxu0 %v242
  %285 = vmatprep.subr.mxu0 0.0
  %286 = vmatpush1.xpose.msra.mxu0 %v245
  %287 = vmatprep.subr.mxu0 0.0
  %288 = vmatpush1.xpose.msra.mxu0 %v248
  %289 = vmatprep.subr.mxu0 0.0
  %290 = vmatpush1.xpose.msra.mxu0 %v251
  %291 = vmatprep.subr.mxu0 0.0
  %292 = vmatpush1.xpose.msra.mxu0 %v254
  %293 = vmatprep.subr.mxu0 0.0
  %294 = vmatpush1.xpose.msra.mxu0 %v257
  %295 = vmatprep.subr.mxu0 0.0
  %296 = vmatpush1.xpose.msra.mxu0 %v260
  %297 = vmatprep.subr.mxu0 0.0
  %298 = vmatpush1.xpose.msra.mxu0 %v263
  %299 = vmatprep.subr.mxu0 0.0
  %300 = vmatpush1.xpose.msra.mxu0 %v266
  %301 = vmatprep.subr.mxu0 0.0
  %302 = vmatpush1.xpose.msra.mxu0 %v269
  %303 = vmatprep.subr.mxu0 0.0
  %304 = vmatpush1.xpose.msra.mxu0 0.0
  %305 = vmatprep.subr.mxu0 0.0
  %306 = vmatpush1.xpose.msra.mxu0 0.0
  %307 = vmatprep.subr.mxu0 0.0
  %308 = vmatpush1.xpose.msra.mxu0 0.0
  %309 = vmatprep.subr.mxu0 0.0
  %310 = vmatpush1.xpose.msra.mxu0 0.0
  %311 = vmatprep.subr.mxu0 0.0
  %312 = vmatpush1.xpose.msra.mxu0 0.0
  %313 = vmatprep.subr.mxu0 0.0
  %314 = vmatpush1.xpose.msra.mxu0 0.0
  %315 = vmatprep.subr.mxu0 0.0
  %316 = vmatpush1.xpose.msra.mxu0 0.0
  %317 = vmatprep.subr.mxu0 0.0
  %318 = vmatpush1.xpose.msra.mxu0 0.0
  %319 = vmatprep.subr.mxu0 0.0
  %320 = vmatpush1.xpose.msra.mxu0 0.0
  %321 = vmatprep.subr.mxu0 0.0
  %322 = vmatpush1.xpose.msra.mxu0 0.0
  %323 = vmatprep.subr.mxu0 0.0
  %324 = vmatpush1.xpose.msra.mxu0 0.0
  %325 = vmatprep.subr.mxu0 0.0
  %326 = vmatpush1.xpose.msra.mxu0 0.0
  %327 = vmatprep.subr.mxu0 0.0
  %328 = vmatpush1.xpose.msra.mxu0 0.0
  %329 = vmatprep.subr.mxu0 0.0
  %330 = vmatpush1.xpose.msra.mxu0 0.0
  %331 = vmatprep.subr.mxu0 0.0
  %332 = vmatpush1.xpose.msra.mxu0 0.0
  %333 = vmatprep.subr.mxu0 0.0
  %334 = vmatpush1.xpose.msra.mxu0 0.0
  %335 = vmatprep.mubr.f32.mxu0 0.0
  %336 = vmatmul.mubr.f32.gmra.mrb[0].mxu0 %v212
  %v337 = vpop.f32.mrb[0].mxu0
  %v338 = vadd.f32 0.0, %v337
  %v339 = vpop.f32.mrb[0].mxu0
  %340 = vmatprep.mubr.f32.mxu0 0.0
  %341 = vmatmul.mubr.f32.gmra.mrb[0].mxu0 %v215
  %v342 = vpop.f32.mrb[0].mxu0
  %v343 = vadd.f32 0.0, %v342
  %v344 = vpop.f32.mrb[0].mxu0
  %345 = vmatprep.mubr.f32.mxu0 0.0
  %346 = vmatmul.mubr.f32.gmra.mrb[0].mxu0 %v218
  %v347 = vpop.f32.mrb[0].mxu0
  %v348 = vadd.f32 0.0, %v347
  %v349 = vpop.f32.mrb[0].mxu0
  %350 = vmatprep.mubr.f32.mxu0 0.0
  %351 = vmatmul.mubr.f32.gmra.mrb[0].mxu0 %v221
  %v352 = vpop.f32.mrb[0].mxu0
  %v353 = vadd.f32 0.0, %v352
  %v354 = vpop.f32.mrb[0].mxu0
  %355 = vdwg.mxu0
  %356 = vmatprep.subr.mxu0 0.0
  %357 = vmatpush1.msra.mxu0 %v23
  %358 = vmatprep.subr.mxu0 0.0
  %359 = vmatpush1.msra.mxu0 %v24
  %360 = vmatprep.subr.mxu0 0.0
  %361 = vmatpush1.msra.mxu0 %v25
  %362 = vmatprep.subr.mxu0 0.0
  %363 = vmatpush1.msra.mxu0 %v26
  %364 = vmatprep.subr.mxu0 0.0
  %365 = vmatpush1.msra.mxu0 %v27
  %366 = vmatprep.subr.mxu0 0.0
  %367 = vmatpush1.msra.mxu0 %v28
  %368 = vmatprep.subr.mxu0 0.0
  %369 = vmatpush1.msra.mxu0 %v29
  %370 = vmatprep.subr.mxu0 0.0
  %371 = vmatpush1.msra.mxu0 %v30
  %372 = vmatprep.subr.mxu0 0.0
  %373 = vmatpush1.msra.mxu0 %v31
  %374 = vmatprep.subr.mxu0 0.0
  %375 = vmatpush1.msra.mxu0 %v32
  %376 = vmatprep.subr.mxu0 0.0
  %377 = vmatpush1.msra.mxu0 %v33
  %378 = vmatprep.subr.mxu0 0.0
  %379 = vmatpush1.msra.mxu0 %v34
  %380 = vmatprep.subr.mxu0 0.0
  %381 = vmatpush1.msra.mxu0 %v35
  %382 = vmatprep.subr.mxu0 0.0
  %383 = vmatpush1.msra.mxu0 %v36
  %384 = vmatprep.subr.mxu0 0.0
  %385 = vmatpush1.msra.mxu0 %v37
  %386 = vmatprep.subr.mxu0 0.0
  %387 = vmatpush1.msra.mxu0 %v38
  %388 = vmatprep.subr.mxu0 0.0
  %389 = vmatpush1.msra.mxu0 0.0
  %390 = vmatprep.subr.mxu0 0.0
  %391 = vmatpush1.msra.mxu0 0.0
  %392 = vmatprep.subr.mxu0 0.0
  %393 = vmatpush1.msra.mxu0 0.0
  %394 = vmatprep.subr.mxu0 0.0
  %395 = vmatpush1.msra.mxu0 0.0
  %396 = vmatprep.subr.mxu0 0.0
  %397 = vmatpush1.msra.mxu0 0.0
  %398 = vmatprep.subr.mxu0 0.0
  %399 = vmatpush1.msra.mxu0 0.0
  %400 = vmatprep.subr.mxu0 0.0
  %401 = vmatpush1.msra.mxu0 0.0
  %402 = vmatprep.subr.mxu0 0.0
  %403 = vmatpush1.msra.mxu0 0.0
  %404 = vmatprep.subr.mxu0 0.0
  %405 = vmatpush1.msra.mxu0 0.0
  %406 = vmatprep.subr.mxu0 0.0
  %407 = vmatpush1.msra.mxu0 0.0
  %408 = vmatprep.subr.mxu0 0.0
  %409 = vmatpush1.msra.mxu0 0.0
  %410 = vmatprep.subr.mxu0 0.0
  %411 = vmatpush1.msra.mxu0 0.0
  %412 = vmatprep.subr.mxu0 0.0
  %413 = vmatpush1.msra.mxu0 0.0
  %414 = vmatprep.subr.mxu0 0.0
  %415 = vmatpush1.msra.mxu0 0.0
  %416 = vmatprep.subr.mxu0 0.0
  %417 = vmatpush1.msra.mxu0 0.0
  %418 = vmatprep.subr.mxu0 0.0
  %419 = vmatpush1.msra.mxu0 0.0
  %420 = vmatprep.mubr.f32.mxu0 0.0
  %421 = vmatmul.mubr.f32.gmra.mrb[0].mxu0 %v40
  %v422 = vpop.f32.mrb[0].mxu0
  %v423 = vadd.f32 0.0, %v422
  %v424 = vpop.f32.mrb[0].mxu0
  %425 = vdwg.mxu0
  %v426 = vlaneseq
  %v427 = vand.u32 %v426, 127
  %v428 = vsub.f32 1.0, %v40
  %v430 = vsel %vm63, %v423, 0
  %432 = vmatprep.subr.mxu0 0.0
  %433 = vmatpush1.msra.mxu0 %v46
  %434 = vmatprep.subr.mxu0 0.0
  %435 = vmatpush1.msra.mxu0 %v47
  %436 = vmatprep.subr.mxu0 0.0
  %437 = vmatpush1.msra.mxu0 %v48
  %438 = vmatprep.subr.mxu0 0.0
  %439 = vmatpush1.msra.mxu0 %v49
  %440 = vmatprep.subr.mxu0 0.0
  %441 = vmatpush1.msra.mxu0 0.0
  %442 = vmatprep.subr.mxu0 0.0
  %443 = vmatpush1.msra.mxu0 0.0
  %444 = vmatprep.subr.mxu0 0.0
  %445 = vmatpush1.msra.mxu0 0.0
  %446 = vmatprep.subr.mxu0 0.0
  %447 = vmatpush1.msra.mxu0 0.0
  %448 = vmatprep.subr.mxu0 0.0
  %449 = vmatpush1.msra.mxu0 0.0
  %450 = vmatprep.subr.mxu0 0.0
  %451 = vmatpush1.msra.mxu0 0.0
  %452 = vmatprep.subr.mxu0 0.0
  %453 = vmatpush1.msra.mxu0 0.0
  %454 = vmatprep.subr.mxu0 0.0
  %455 = vmatpush1.msra.mxu0 0.0
  %456 = vmatprep.subr.mxu0 0.0
  %457 = vmatpush1.msra.mxu0 0.0
  %458 = vmatprep.subr.mxu0 0.0
  %459 = vmatpush1.msra.mxu0 0.0
  %460 = vmatprep.subr.mxu0 0.0
  %461 = vmatpush1.msra.mxu0 0.0
  %462 = vmatprep.subr.mxu0 0.0
  %463 = vmatpush1.msra.mxu0 0.0
  %464 = vmatprep.subr.mxu0 0.0
  %465 = vmatpush1.msra.mxu0 0.0
  %466 = vmatprep.subr.mxu0 0.0
  %467 = vmatpush1.msra.mxu0 0.0
  %468 = vmatprep.subr.mxu0 0.0
  %469 = vmatpush1.msra.mxu0 0.0
  %470 = vmatprep.subr.mxu0 0.0
  %471 = vmatpush1.msra.mxu0 0.0
  %472 = vmatprep.subr.mxu0 0.0
  %473 = vmatpush1.msra.mxu0 0.0
  %474 = vmatprep.subr.mxu0 0.0
  %475 = vmatpush1.msra.mxu0 0.0
  %476 = vmatprep.subr.mxu0 0.0
  %477 = vmatpush1.msra.mxu0 0.0
  %478 = vmatprep.subr.mxu0 0.0
  %479 = vmatpush1.msra.mxu0 0.0
  %480 = vmatprep.subr.mxu0 0.0
  %481 = vmatpush1.msra.mxu0 0.0
  %482 = vmatprep.subr.mxu0 0.0
  %483 = vmatpush1.msra.mxu0 0.0
  %484 = vmatprep.subr.mxu0 0.0
  %485 = vmatpush1.msra.mxu0 0.0
  %486 = vmatprep.subr.mxu0 0.0
  %487 = vmatpush1.msra.mxu0 0.0
  %488 = vmatprep.subr.mxu0 0.0
  %489 = vmatpush1.msra.mxu0 0.0
  %490 = vmatprep.subr.mxu0 0.0
  %491 = vmatpush1.msra.mxu0 0.0
  %492 = vmatprep.subr.mxu0 0.0
  %493 = vmatpush1.msra.mxu0 0.0
  %494 = vmatprep.subr.mxu0 0.0
  %495 = vmatpush1.msra.mxu0 0.0
  %496 = vmatprep.mubr.f32.mxu0 0.0
  %497 = vmatmul.mubr.f32.gmra.mrb[0].mxu0 %v430
  %v498 = vpop.f32.mrb[0].mxu0
  %v499 = vadd.f32 0.0, %v498
  %v500 = vpop.f32.mrb[0].mxu0
  %501 = vdwg.mxu0
  %v502 = vadd.f32 %v208, %v499
  %v503 = vtanh.pop %v502
  %v505 = vsel %vm63, %v503, 0
  %507 = vmatprep.subr.mxu0 0.0
  %508 = vmatpush1.msra.mxu0 %v338
  %509 = vmatprep.subr.mxu0 0.0
  %510 = vmatpush1.msra.mxu0 %v343
  %511 = vmatprep.subr.mxu0 0.0
  %512 = vmatpush1.msra.mxu0 %v348
  %513 = vmatprep.subr.mxu0 0.0
  %514 = vmatpush1.msra.mxu0 %v353
  %515 = vmatprep.subr.mxu0 0.0
  %516 = vmatpush1.msra.mxu0 0.0
  %517 = vmatprep.subr.mxu0 0.0
  %518 = vmatpush1.msra.mxu0 0.0
  %519 = vmatprep.subr.mxu0 0.0
  %520 = vmatpush1.msra.mxu0 0.0
  %521 = vmatprep.subr.mxu0 0.0
  %522 = vmatpush1.msra.mxu0 0.0
  %523 = vmatprep.subr.mxu0 0.0
  %524 = vmatpush1.msra.mxu0 0.0
  %525 = vmatprep.subr.mxu0 0.0
  %526 = vmatpush1.msra.mxu0 0.0
  %527 = vmatprep.subr.mxu0 0.0
  %528 = vmatpush1.msra.mxu0 0.0
  %529 = vmatprep.subr.mxu0 0.0
  %530 = vmatpush1.msra.mxu0 0.0
  %531 = vmatprep.subr.mxu0 0.0
  %532 = vmatpush1.msra.mxu0 0.0
  %533 = vmatprep.subr.mxu0 0.0
  %534 = vmatpush1.msra.mxu0 0.0
  %535 = vmatprep.subr.mxu0 0.0
  %536 = vmatpush1.msra.mxu0 0.0
  %537 = vmatprep.subr.mxu0 0.0
  %538 = vmatpush1.msra.mxu0 0.0
  %539 = vmatprep.subr.mxu0 0.0
  %540 = vmatpush1.msra.mxu0 0.0
  %541 = vmatprep.subr.mxu0 0.0
  %542 = vmatpush1.msra.mxu0 0.0
  %543 = vmatprep.subr.mxu0 0.0
  %544 = vmatpush1.msra.mxu0 0.0
  %545 = vmatprep.subr.mxu0 0.0
  %546 = vmatpush1.msra.mxu0 0.0
  %547 = vmatprep.subr.mxu0 0.0
  %548 = vmatpush1.msra.mxu0 0.0
  %549 = vmatprep.subr.mxu0 0.0
  %550 = vmatpush1.msra.mxu0 0.0
  %551 = vmatprep.subr.mxu0 0.0
  %552 = vmatpush1.msra.mxu0 0.0
  %553 = vmatprep.subr.mxu0 0.0
  %554 = vmatpush1.msra.mxu0 0.0
  %555 = vmatprep.subr.mxu0 0.0
  %556 = vmatpush1.msra.mxu0 0.0
  %557 = vmatprep.subr.mxu0 0.0
  %558 = vmatpush1.msra.mxu0 0.0
  %559 = vmatprep.subr.mxu0 0.0
  %560 = vmatpush1.msra.mxu0 0.0
  %561 = vmatprep.subr.mxu0 0.0
  %562 = vmatpush1.msra.mxu0 0.0
  %563 = vmatprep.subr.mxu0 0.0
  %564 = vmatpush1.msra.mxu0 0.0
  %565 = vmatprep.subr.mxu0 0.0
  %566 = vmatpush1.msra.mxu0 0.0
  %567 = vmatprep.subr.mxu0 0.0
  %568 = vmatpush1.msra.mxu0 0.0
  %569 = vmatprep.subr.mxu0 0.0
  %570 = vmatpush1.msra.mxu0 0.0
  %571 = vmatprep.mubr.f32.mxu0 0.0
  %572 = vmatmul.mubr.f32.gmra.mrb[0].mxu0 %v505
  %v573 = vpop.f32.mrb[0].mxu0
  %v574 = vadd.f32 0.0, %v573
  %v575 = vpop.f32.mrb[0].mxu0
  %576 = vdwg.mxu0
  %v577 = vmul.f32 %v574, 0.17677669
  %vm578 = vcmp.gt.f32.partialorder %v41, 0.5
  %vm579 = vcmp.lt.f32.partialorder 0.0, 0.5
  %vm580 = vmand %vm578, %vm579
  %v581 = vsel %vm580, %v577, -1e+09
  %582 = vst [vmem:[%s6] sm:$0x3] %v581
  %vm583 = vcmask 1041408
  %v584 = vsel %vm583, %v581, -inf
  %585 = vmax.index.xlane.f32.xlu0 %v584
  %v586 = vpop.xlane.xlu0 %585
  %vm587 = vcmp.eq.s32.totalorder %v427, %v586
  %v588 = vsel %vm587, 1, 0
  %v589 = vcvt.s32.f32 %v588
  %v590 = vmul.f32 %v589, %v428
  %v591 = vmax.f32 %v590, 0.0
  %592 = vmatprep.subr.mxu0 0.0
  %593 = vmatpush1.msra.mxu0 %v23
  %594 = vmatprep.subr.mxu0 0.0
  %595 = vmatpush1.msra.mxu0 %v24
  %596 = vmatprep.subr.mxu0 0.0
  %597 = vmatpush1.msra.mxu0 %v25
  %598 = vmatprep.subr.mxu0 0.0
  %599 = vmatpush1.msra.mxu0 %v26
  %600 = vmatprep.subr.mxu0 0.0
  %601 = vmatpush1.msra.mxu0 %v27
  %602 = vmatprep.subr.mxu0 0.0
  %603 = vmatpush1.msra.mxu0 %v28
  %604 = vmatprep.subr.mxu0 0.0
  %605 = vmatpush1.msra.mxu0 %v29
  %606 = vmatprep.subr.mxu0 0.0
  %607 = vmatpush1.msra.mxu0 %v30
  %608 = vmatprep.subr.mxu0 0.0
  %609 = vmatpush1.msra.mxu0 %v31
  %610 = vmatprep.subr.mxu0 0.0
  %611 = vmatpush1.msra.mxu0 %v32
  %612 = vmatprep.subr.mxu0 0.0
  %613 = vmatpush1.msra.mxu0 %v33
  %614 = vmatprep.subr.mxu0 0.0
  %615 = vmatpush1.msra.mxu0 %v34
  %616 = vmatprep.subr.mxu0 0.0
  %617 = vmatpush1.msra.mxu0 %v35
  %618 = vmatprep.subr.mxu0 0.0
  %619 = vmatpush1.msra.mxu0 %v36
  %620 = vmatprep.subr.mxu0 0.0
  %621 = vmatpush1.msra.mxu0 %v37
  %622 = vmatprep.subr.mxu0 0.0
  %623 = vmatpush1.msra.mxu0 %v38
  %624 = vmatprep.subr.mxu0 0.0
  %625 = vmatpush1.msra.mxu0 0.0
  %626 = vmatprep.subr.mxu0 0.0
  %627 = vmatpush1.msra.mxu0 0.0
  %628 = vmatprep.subr.mxu0 0.0
  %629 = vmatpush1.msra.mxu0 0.0
  %630 = vmatprep.subr.mxu0 0.0
  %631 = vmatpush1.msra.mxu0 0.0
  %632 = vmatprep.subr.mxu0 0.0
  %633 = vmatpush1.msra.mxu0 0.0
  %634 = vmatprep.subr.mxu0 0.0
  %635 = vmatpush1.msra.mxu0 0.0
  %636 = vmatprep.subr.mxu0 0.0
  %637 = vmatpush1.msra.mxu0 0.0
  %638 = vmatprep.subr.mxu0 0.0
  %639 = vmatpush1.msra.mxu0 0.0
  %640 = vmatprep.subr.mxu0 0.0
  %641 = vmatpush1.msra.mxu0 0.0
  %642 = vmatprep.subr.mxu0 0.0
  %643 = vmatpush1.msra.mxu0 0.0
  %644 = vmatprep.subr.mxu0 0.0
  %645 = vmatpush1.msra.mxu0 0.0
  %646 = vmatprep.subr.mxu0 0.0
  %647 = vmatpush1.msra.mxu0 0.0
  %648 = vmatprep.subr.mxu0 0.0
  %649 = vmatpush1.msra.mxu0 0.0
  %650 = vmatprep.subr.mxu0 0.0
  %651 = vmatpush1.msra.mxu0 0.0
  %652 = vmatprep.subr.mxu0 0.0
  %653 = vmatpush1.msra.mxu0 0.0
  %654 = vmatprep.subr.mxu0 0.0
  %655 = vmatpush1.msra.mxu0 0.0
  %656 = vmatprep.mubr.f32.mxu0 0.0
  %657 = vmatmul.mubr.f32.gmra.mrb[0].mxu0 %v589
  %v658 = vpop.f32.mrb[0].mxu0
  %v659 = vadd.f32 0.0, %v658
  %v660 = vpop.f32.mrb[0].mxu0
  %661 = vdwg.mxu0
  %v663 = vsel %vm63, %v659, 0
  %665 = vmatprep.subr.mxu0 0.0
  %666 = vmatpush1.msra.mxu0 %v46
  %667 = vmatprep.subr.mxu0 0.0
  %668 = vmatpush1.msra.mxu0 %v47
  %669 = vmatprep.subr.mxu0 0.0
  %670 = vmatpush1.msra.mxu0 %v48
  %671 = vmatprep.subr.mxu0 0.0
  %672 = vmatpush1.msra.mxu0 %v49
  %673 = vmatprep.subr.mxu0 0.0
  %674 = vmatpush1.msra.mxu0 0.0
  %675 = vmatprep.subr.mxu0 0.0
  %676 = vmatpush1.msra.mxu0 0.0
  %677 = vmatprep.subr.mxu0 0.0
  %678 = vmatpush1.msra.mxu0 0.0
  %679 = vmatprep.subr.mxu0 0.0
  %680 = vmatpush1.msra.mxu0 0.0
  %681 = vmatprep.subr.mxu0 0.0
  %682 = vmatpush1.msra.mxu0 0.0
  %683 = vmatprep.subr.mxu0 0.0
  %684 = vmatpush1.msra.mxu0 0.0
  %685 = vmatprep.subr.mxu0 0.0
  %686 = vmatpush1.msra.mxu0 0.0
  %687 = vmatprep.subr.mxu0 0.0
  %688 = vmatpush1.msra.mxu0 0.0
  %689 = vmatprep.subr.mxu0 0.0
  %690 = vmatpush1.msra.mxu0 0.0
  %691 = vmatprep.subr.mxu0 0.0
  %692 = vmatpush1.msra.mxu0 0.0
  %693 = vmatprep.subr.mxu0 0.0
  %694 = vmatpush1.msra.mxu0 0.0
  %695 = vmatprep.subr.mxu0 0.0
  %696 = vmatpush1.msra.mxu0 0.0
  %697 = vmatprep.subr.mxu0 0.0
  %698 = vmatpush1.msra.mxu0 0.0
  %699 = vmatprep.subr.mxu0 0.0
  %700 = vmatpush1.msra.mxu0 0.0
  %701 = vmatprep.subr.mxu0 0.0
  %702 = vmatpush1.msra.mxu0 0.0
  %703 = vmatprep.subr.mxu0 0.0
  %704 = vmatpush1.msra.mxu0 0.0
  %705 = vmatprep.subr.mxu0 0.0
  %706 = vmatpush1.msra.mxu0 0.0
  %707 = vmatprep.subr.mxu0 0.0
  %708 = vmatpush1.msra.mxu0 0.0
  %709 = vmatprep.subr.mxu0 0.0
  %710 = vmatpush1.msra.mxu0 0.0
  %711 = vmatprep.subr.mxu0 0.0
  %712 = vmatpush1.msra.mxu0 0.0
  %713 = vmatprep.subr.mxu0 0.0
  %714 = vmatpush1.msra.mxu0 0.0
  %715 = vmatprep.subr.mxu0 0.0
  %716 = vmatpush1.msra.mxu0 0.0
  %717 = vmatprep.subr.mxu0 0.0
  %718 = vmatpush1.msra.mxu0 0.0
  %719 = vmatprep.subr.mxu0 0.0
  %720 = vmatpush1.msra.mxu0 0.0
  %721 = vmatprep.subr.mxu0 0.0
  %722 = vmatpush1.msra.mxu0 0.0
  %723 = vmatprep.subr.mxu0 0.0
  %724 = vmatpush1.msra.mxu0 0.0
  %725 = vmatprep.subr.mxu0 0.0
  %726 = vmatpush1.msra.mxu0 0.0
  %727 = vmatprep.subr.mxu0 0.0
  %728 = vmatpush1.msra.mxu0 0.0
  %729 = vmatprep.mubr.f32.mxu0 0.0
  %730 = vmatmul.mubr.f32.gmra.mrb[0].mxu0 %v663
  %v731 = vpop.f32.mrb[0].mxu0
  %v732 = vadd.f32 0.0, %v731
  %v733 = vpop.f32.mrb[0].mxu0
  %734 = vdwg.mxu0
  %v735 = vadd.f32 %v208, %v732
  %v736 = vtanh.pop %v735
  %v738 = vsel %vm63, %v736, 0
  %740 = vmatprep.subr.mxu0 0.0
  %741 = vmatpush1.msra.mxu0 %v338
  %742 = vmatprep.subr.mxu0 0.0
  %743 = vmatpush1.msra.mxu0 %v343
  %744 = vmatprep.subr.mxu0 0.0
  %745 = vmatpush1.msra.mxu0 %v348
  %746 = vmatprep.subr.mxu0 0.0
  %747 = vmatpush1.msra.mxu0 %v353
  %748 = vmatprep.subr.mxu0 0.0
  %749 = vmatpush1.msra.mxu0 0.0
  %750 = vmatprep.subr.mxu0 0.0
  %751 = vmatpush1.msra.mxu0 0.0
  %752 = vmatprep.subr.mxu0 0.0
  %753 = vmatpush1.msra.mxu0 0.0
  %754 = vmatprep.subr.mxu0 0.0
  %755 = vmatpush1.msra.mxu0 0.0
  %756 = vmatprep.subr.mxu0 0.0
  %757 = vmatpush1.msra.mxu0 0.0
  %758 = vmatprep.subr.mxu0 0.0
  %759 = vmatpush1.msra.mxu0 0.0
  %760 = vmatprep.subr.mxu0 0.0
  %761 = vmatpush1.msra.mxu0 0.0
  %762 = vmatprep.subr.mxu0 0.0
  %763 = vmatpush1.msra.mxu0 0.0
  %764 = vmatprep.subr.mxu0 0.0
  %765 = vmatpush1.msra.mxu0 0.0
  %766 = vmatprep.subr.mxu0 0.0
  %767 = vmatpush1.msra.mxu0 0.0
  %768 = vmatprep.subr.mxu0 0.0
  %769 = vmatpush1.msra.mxu0 0.0
  %770 = vmatprep.subr.mxu0 0.0
  %771 = vmatpush1.msra.mxu0 0.0
  %772 = vmatprep.subr.mxu0 0.0
  %773 = vmatpush1.msra.mxu0 0.0
  %774 = vmatprep.subr.mxu0 0.0
  %775 = vmatpush1.msra.mxu0 0.0
  %776 = vmatprep.subr.mxu0 0.0
  %777 = vmatpush1.msra.mxu0 0.0
  %778 = vmatprep.subr.mxu0 0.0
  %779 = vmatpush1.msra.mxu0 0.0
  %780 = vmatprep.subr.mxu0 0.0
  %781 = vmatpush1.msra.mxu0 0.0
  %782 = vmatprep.subr.mxu0 0.0
  %783 = vmatpush1.msra.mxu0 0.0
  %784 = vmatprep.subr.mxu0 0.0
  %785 = vmatpush1.msra.mxu0 0.0
  %786 = vmatprep.subr.mxu0 0.0
  %787 = vmatpush1.msra.mxu0 0.0
  %788 = vmatprep.subr.mxu0 0.0
  %789 = vmatpush1.msra.mxu0 0.0
  %790 = vmatprep.subr.mxu0 0.0
  %791 = vmatpush1.msra.mxu0 0.0
  %792 = vmatprep.subr.mxu0 0.0
  %793 = vmatpush1.msra.mxu0 0.0
  %794 = vmatprep.subr.mxu0 0.0
  %795 = vmatpush1.msra.mxu0 0.0
  %796 = vmatprep.subr.mxu0 0.0
  %797 = vmatpush1.msra.mxu0 0.0
  %798 = vmatprep.subr.mxu0 0.0
  %799 = vmatpush1.msra.mxu0 0.0
  %800 = vmatprep.subr.mxu0 0.0
  %801 = vmatpush1.msra.mxu0 0.0
  %802 = vmatprep.subr.mxu0 0.0
  %803 = vmatpush1.msra.mxu0 0.0
  %804 = vmatprep.mubr.f32.mxu0 0.0
  %805 = vmatmul.mubr.f32.gmra.mrb[0].mxu0 %v738
  %v806 = vpop.f32.mrb[0].mxu0
  %v807 = vadd.f32 0.0, %v806
  %v808 = vpop.f32.mrb[0].mxu0
  %809 = vdwg.mxu0
  %v810 = vmul.f32 %v807, 0.17677669
  %vm811 = vcmp.lt.f32.partialorder %v591, 0.5
  %vm812 = vmand %vm578, %vm811
  %v813 = vsel %vm812, %v810, -1e+09
  %s814 = scalar_lea.vmem %s6, 2
  %815 = vst [vmem:[%s814] sm:$0x3] %v813
  %v816 = vsel %vm583, %v813, -inf
  %817 = vmax.index.xlane.f32.xlu0 %v816
  %v818 = vpop.xlane.xlu0 %817
  %vm819 = vcmp.eq.s32.totalorder %v427, %v818
  %v820 = vsel %vm819, 1, 0
  %v821 = vcvt.s32.f32 %v820
  %v822 = vmul.f32 %v821, %v428
  %v823 = vmax.f32 %v591, %v822
  %824 = vmatprep.subr.mxu0 0.0
  %825 = vmatpush1.msra.mxu0 %v23
  %826 = vmatprep.subr.mxu0 0.0
  %827 = vmatpush1.msra.mxu0 %v24
  %828 = vmatprep.subr.mxu0 0.0
  %829 = vmatpush1.msra.mxu0 %v25
  %830 = vmatprep.subr.mxu0 0.0
  %831 = vmatpush1.msra.mxu0 %v26
  %832 = vmatprep.subr.mxu0 0.0
  %833 = vmatpush1.msra.mxu0 %v27
  %834 = vmatprep.subr.mxu0 0.0
  %835 = vmatpush1.msra.mxu0 %v28
  %836 = vmatprep.subr.mxu0 0.0
  %837 = vmatpush1.msra.mxu0 %v29
  %838 = vmatprep.subr.mxu0 0.0
  %839 = vmatpush1.msra.mxu0 %v30
  %840 = vmatprep.subr.mxu0 0.0
  %841 = vmatpush1.msra.mxu0 %v31
  %842 = vmatprep.subr.mxu0 0.0
  %843 = vmatpush1.msra.mxu0 %v32
  %844 = vmatprep.subr.mxu0 0.0
  %845 = vmatpush1.msra.mxu0 %v33
  %846 = vmatprep.subr.mxu0 0.0
  %847 = vmatpush1.msra.mxu0 %v34
  %848 = vmatprep.subr.mxu0 0.0
  %849 = vmatpush1.msra.mxu0 %v35
  %850 = vmatprep.subr.mxu0 0.0
  %851 = vmatpush1.msra.mxu0 %v36
  %852 = vmatprep.subr.mxu0 0.0
  %853 = vmatpush1.msra.mxu0 %v37
  %854 = vmatprep.subr.mxu0 0.0
  %855 = vmatpush1.msra.mxu0 %v38
  %856 = vmatprep.subr.mxu0 0.0
  %857 = vmatpush1.msra.mxu0 0.0
  %858 = vmatprep.subr.mxu0 0.0
  %859 = vmatpush1.msra.mxu0 0.0
  %860 = vmatprep.subr.mxu0 0.0
  %861 = vmatpush1.msra.mxu0 0.0
  %862 = vmatprep.subr.mxu0 0.0
  %863 = vmatpush1.msra.mxu0 0.0
  %864 = vmatprep.subr.mxu0 0.0
  %865 = vmatpush1.msra.mxu0 0.0
  %866 = vmatprep.subr.mxu0 0.0
  %867 = vmatpush1.msra.mxu0 0.0
  %868 = vmatprep.subr.mxu0 0.0
  %869 = vmatpush1.msra.mxu0 0.0
  %870 = vmatprep.subr.mxu0 0.0
  %871 = vmatpush1.msra.mxu0 0.0
  %872 = vmatprep.subr.mxu0 0.0
  %873 = vmatpush1.msra.mxu0 0.0
  %874 = vmatprep.subr.mxu0 0.0
  %875 = vmatpush1.msra.mxu0 0.0
  %876 = vmatprep.subr.mxu0 0.0
  %877 = vmatpush1.msra.mxu0 0.0
  %878 = vmatprep.subr.mxu0 0.0
  %879 = vmatpush1.msra.mxu0 0.0
  %880 = vmatprep.subr.mxu0 0.0
  %881 = vmatpush1.msra.mxu0 0.0
  %882 = vmatprep.subr.mxu0 0.0
  %883 = vmatpush1.msra.mxu0 0.0
  %884 = vmatprep.subr.mxu0 0.0
  %885 = vmatpush1.msra.mxu0 0.0
  %886 = vmatprep.subr.mxu0 0.0
  %887 = vmatpush1.msra.mxu0 0.0
  %888 = vmatprep.mubr.f32.mxu0 0.0
  %889 = vmatmul.mubr.f32.gmra.mrb[0].mxu0 %v821
  %v890 = vpop.f32.mrb[0].mxu0
  %v891 = vadd.f32 0.0, %v890
  %v892 = vpop.f32.mrb[0].mxu0
  %893 = vdwg.mxu0
  %v895 = vsel %vm63, %v891, 0
  %897 = vmatprep.subr.mxu0 0.0
  %898 = vmatpush1.msra.mxu0 %v46
  %899 = vmatprep.subr.mxu0 0.0
  %900 = vmatpush1.msra.mxu0 %v47
  %901 = vmatprep.subr.mxu0 0.0
  %902 = vmatpush1.msra.mxu0 %v48
  %903 = vmatprep.subr.mxu0 0.0
  %904 = vmatpush1.msra.mxu0 %v49
  %905 = vmatprep.subr.mxu0 0.0
  %906 = vmatpush1.msra.mxu0 0.0
  %907 = vmatprep.subr.mxu0 0.0
  %908 = vmatpush1.msra.mxu0 0.0
  %909 = vmatprep.subr.mxu0 0.0
  %910 = vmatpush1.msra.mxu0 0.0
  %911 = vmatprep.subr.mxu0 0.0
  %912 = vmatpush1.msra.mxu0 0.0
  %913 = vmatprep.subr.mxu0 0.0
  %914 = vmatpush1.msra.mxu0 0.0
  %915 = vmatprep.subr.mxu0 0.0
  %916 = vmatpush1.msra.mxu0 0.0
  %917 = vmatprep.subr.mxu0 0.0
  %918 = vmatpush1.msra.mxu0 0.0
  %919 = vmatprep.subr.mxu0 0.0
  %920 = vmatpush1.msra.mxu0 0.0
  %921 = vmatprep.subr.mxu0 0.0
  %922 = vmatpush1.msra.mxu0 0.0
  %923 = vmatprep.subr.mxu0 0.0
  %924 = vmatpush1.msra.mxu0 0.0
  %925 = vmatprep.subr.mxu0 0.0
  %926 = vmatpush1.msra.mxu0 0.0
  %927 = vmatprep.subr.mxu0 0.0
  %928 = vmatpush1.msra.mxu0 0.0
  %929 = vmatprep.subr.mxu0 0.0
  %930 = vmatpush1.msra.mxu0 0.0
  %931 = vmatprep.subr.mxu0 0.0
  %932 = vmatpush1.msra.mxu0 0.0
  %933 = vmatprep.subr.mxu0 0.0
  %934 = vmatpush1.msra.mxu0 0.0
  %935 = vmatprep.subr.mxu0 0.0
  %936 = vmatpush1.msra.mxu0 0.0
  %937 = vmatprep.subr.mxu0 0.0
  %938 = vmatpush1.msra.mxu0 0.0
  %939 = vmatprep.subr.mxu0 0.0
  %940 = vmatpush1.msra.mxu0 0.0
  %941 = vmatprep.subr.mxu0 0.0
  %942 = vmatpush1.msra.mxu0 0.0
  %943 = vmatprep.subr.mxu0 0.0
  %944 = vmatpush1.msra.mxu0 0.0
  %945 = vmatprep.subr.mxu0 0.0
  %946 = vmatpush1.msra.mxu0 0.0
  %947 = vmatprep.subr.mxu0 0.0
  %948 = vmatpush1.msra.mxu0 0.0
  %949 = vmatprep.subr.mxu0 0.0
  %950 = vmatpush1.msra.mxu0 0.0
  %951 = vmatprep.subr.mxu0 0.0
  %952 = vmatpush1.msra.mxu0 0.0
  %953 = vmatprep.subr.mxu0 0.0
  %954 = vmatpush1.msra.mxu0 0.0
  %955 = vmatprep.subr.mxu0 0.0
  %956 = vmatpush1.msra.mxu0 0.0
  %957 = vmatprep.subr.mxu0 0.0
  %958 = vmatpush1.msra.mxu0 0.0
  %959 = vmatprep.subr.mxu0 0.0
  %960 = vmatpush1.msra.mxu0 0.0
  %961 = vmatprep.mubr.f32.mxu0 0.0
  %962 = vmatmul.mubr.f32.gmra.mrb[0].mxu0 %v895
  %v963 = vpop.f32.mrb[0].mxu0
  %v964 = vadd.f32 0.0, %v963
  %v965 = vpop.f32.mrb[0].mxu0
  %966 = vdwg.mxu0
  %v967 = vadd.f32 %v208, %v964
  %v968 = vtanh.pop %v967
  %v970 = vsel %vm63, %v968, 0
  %972 = vmatprep.subr.mxu0 0.0
  %973 = vmatpush1.msra.mxu0 %v338
  %974 = vmatprep.subr.mxu0 0.0
  %975 = vmatpush1.msra.mxu0 %v343
  %976 = vmatprep.subr.mxu0 0.0
  %977 = vmatpush1.msra.mxu0 %v348
  %978 = vmatprep.subr.mxu0 0.0
  %979 = vmatpush1.msra.mxu0 %v353
  %980 = vmatprep.subr.mxu0 0.0
  %981 = vmatpush1.msra.mxu0 0.0
  %982 = vmatprep.subr.mxu0 0.0
  %983 = vmatpush1.msra.mxu0 0.0
  %984 = vmatprep.subr.mxu0 0.0
  %985 = vmatpush1.msra.mxu0 0.0
  %986 = vmatprep.subr.mxu0 0.0
  %987 = vmatpush1.msra.mxu0 0.0
  %988 = vmatprep.subr.mxu0 0.0
  %989 = vmatpush1.msra.mxu0 0.0
  %990 = vmatprep.subr.mxu0 0.0
  %991 = vmatpush1.msra.mxu0 0.0
  %992 = vmatprep.subr.mxu0 0.0
  %993 = vmatpush1.msra.mxu0 0.0
  %994 = vmatprep.subr.mxu0 0.0
  %995 = vmatpush1.msra.mxu0 0.0
  %996 = vmatprep.subr.mxu0 0.0
  %997 = vmatpush1.msra.mxu0 0.0
  %998 = vmatprep.subr.mxu0 0.0
  %999 = vmatpush1.msra.mxu0 0.0
  %1000 = vmatprep.subr.mxu0 0.0
  %1001 = vmatpush1.msra.mxu0 0.0
  %1002 = vmatprep.subr.mxu0 0.0
  %1003 = vmatpush1.msra.mxu0 0.0
  %1004 = vmatprep.subr.mxu0 0.0
  %1005 = vmatpush1.msra.mxu0 0.0
  %1006 = vmatprep.subr.mxu0 0.0
  %1007 = vmatpush1.msra.mxu0 0.0
  %1008 = vmatprep.subr.mxu0 0.0
  %1009 = vmatpush1.msra.mxu0 0.0
  %1010 = vmatprep.subr.mxu0 0.0
  %1011 = vmatpush1.msra.mxu0 0.0
  %1012 = vmatprep.subr.mxu0 0.0
  %1013 = vmatpush1.msra.mxu0 0.0
  %1014 = vmatprep.subr.mxu0 0.0
  %1015 = vmatpush1.msra.mxu0 0.0
  %1016 = vmatprep.subr.mxu0 0.0
  %1017 = vmatpush1.msra.mxu0 0.0
  %1018 = vmatprep.subr.mxu0 0.0
  %1019 = vmatpush1.msra.mxu0 0.0
  %1020 = vmatprep.subr.mxu0 0.0
  %1021 = vmatpush1.msra.mxu0 0.0
  %1022 = vmatprep.subr.mxu0 0.0
  %1023 = vmatpush1.msra.mxu0 0.0
  %1024 = vmatprep.subr.mxu0 0.0
  %1025 = vmatpush1.msra.mxu0 0.0
  %1026 = vmatprep.subr.mxu0 0.0
  %1027 = vmatpush1.msra.mxu0 0.0
  %1028 = vmatprep.subr.mxu0 0.0
  %1029 = vmatpush1.msra.mxu0 0.0
  %1030 = vmatprep.subr.mxu0 0.0
  %1031 = vmatpush1.msra.mxu0 0.0
  %1032 = vmatprep.subr.mxu0 0.0
  %1033 = vmatpush1.msra.mxu0 0.0
  %1034 = vmatprep.subr.mxu0 0.0
  %1035 = vmatpush1.msra.mxu0 0.0
  %1036 = vmatprep.mubr.f32.mxu0 0.0
  %1037 = vmatmul.mubr.f32.gmra.mrb[0].mxu0 %v970
  %v1038 = vpop.f32.mrb[0].mxu0
  %v1039 = vadd.f32 0.0, %v1038
  %v1040 = vpop.f32.mrb[0].mxu0
  %1041 = vdwg.mxu0
  %v1042 = vmul.f32 %v1039, 0.17677669
  %vm1043 = vcmp.lt.f32.partialorder %v823, 0.5
  %vm1044 = vmand %vm578, %vm1043
  %v1045 = vsel %vm1044, %v1042, -1e+09
  %s1046 = scalar_lea.vmem %s6, 4
  %1047 = vst [vmem:[%s1046] sm:$0x3] %v1045
  %v1048 = vsel %vm583, %v1045, -inf
  %1049 = vmax.index.xlane.f32.xlu0 %v1048
  %v1050 = vpop.xlane.xlu0 %1049
  %vm1051 = vcmp.eq.s32.totalorder %v427, %v1050
  %v1052 = vsel %vm1051, 1, 0
  %v1053 = vcvt.s32.f32 %v1052
  %v1054 = vmul.f32 %v1053, %v428
  %v1055 = vmax.f32 %v823, %v1054
  %1056 = vmatprep.subr.mxu0 0.0
  %1057 = vmatpush1.msra.mxu0 %v23
  %1058 = vmatprep.subr.mxu0 0.0
  %1059 = vmatpush1.msra.mxu0 %v24
  %1060 = vmatprep.subr.mxu0 0.0
  %1061 = vmatpush1.msra.mxu0 %v25
  %1062 = vmatprep.subr.mxu0 0.0
  %1063 = vmatpush1.msra.mxu0 %v26
  %1064 = vmatprep.subr.mxu0 0.0
  %1065 = vmatpush1.msra.mxu0 %v27
  %1066 = vmatprep.subr.mxu0 0.0
  %1067 = vmatpush1.msra.mxu0 %v28
  %1068 = vmatprep.subr.mxu0 0.0
  %1069 = vmatpush1.msra.mxu0 %v29
  %1070 = vmatprep.subr.mxu0 0.0
  %1071 = vmatpush1.msra.mxu0 %v30
  %1072 = vmatprep.subr.mxu0 0.0
  %1073 = vmatpush1.msra.mxu0 %v31
  %1074 = vmatprep.subr.mxu0 0.0
  %1075 = vmatpush1.msra.mxu0 %v32
  %1076 = vmatprep.subr.mxu0 0.0
  %1077 = vmatpush1.msra.mxu0 %v33
  %1078 = vmatprep.subr.mxu0 0.0
  %1079 = vmatpush1.msra.mxu0 %v34
  %1080 = vmatprep.subr.mxu0 0.0
  %1081 = vmatpush1.msra.mxu0 %v35
  %1082 = vmatprep.subr.mxu0 0.0
  %1083 = vmatpush1.msra.mxu0 %v36
  %1084 = vmatprep.subr.mxu0 0.0
  %1085 = vmatpush1.msra.mxu0 %v37
  %1086 = vmatprep.subr.mxu0 0.0
  %1087 = vmatpush1.msra.mxu0 %v38
  %1088 = vmatprep.subr.mxu0 0.0
  %1089 = vmatpush1.msra.mxu0 0.0
  %1090 = vmatprep.subr.mxu0 0.0
  %1091 = vmatpush1.msra.mxu0 0.0
  %1092 = vmatprep.subr.mxu0 0.0
  %1093 = vmatpush1.msra.mxu0 0.0
  %1094 = vmatprep.subr.mxu0 0.0
  %1095 = vmatpush1.msra.mxu0 0.0
  %1096 = vmatprep.subr.mxu0 0.0
  %1097 = vmatpush1.msra.mxu0 0.0
  %1098 = vmatprep.subr.mxu0 0.0
  %1099 = vmatpush1.msra.mxu0 0.0
  %1100 = vmatprep.subr.mxu0 0.0
  %1101 = vmatpush1.msra.mxu0 0.0
  %1102 = vmatprep.subr.mxu0 0.0
  %1103 = vmatpush1.msra.mxu0 0.0
  %1104 = vmatprep.subr.mxu0 0.0
  %1105 = vmatpush1.msra.mxu0 0.0
  %1106 = vmatprep.subr.mxu0 0.0
  %1107 = vmatpush1.msra.mxu0 0.0
  %1108 = vmatprep.subr.mxu0 0.0
  %1109 = vmatpush1.msra.mxu0 0.0
  %1110 = vmatprep.subr.mxu0 0.0
  %1111 = vmatpush1.msra.mxu0 0.0
  %1112 = vmatprep.subr.mxu0 0.0
  %1113 = vmatpush1.msra.mxu0 0.0
  %1114 = vmatprep.subr.mxu0 0.0
  %1115 = vmatpush1.msra.mxu0 0.0
  %1116 = vmatprep.subr.mxu0 0.0
  %1117 = vmatpush1.msra.mxu0 0.0
  %1118 = vmatprep.subr.mxu0 0.0
  %1119 = vmatpush1.msra.mxu0 0.0
  %1120 = vmatprep.mubr.f32.mxu0 0.0
  %1121 = vmatmul.mubr.f32.gmra.mrb[0].mxu0 %v1053
  %v1122 = vpop.f32.mrb[0].mxu0
  %v1123 = vadd.f32 0.0, %v1122
  %v1124 = vpop.f32.mrb[0].mxu0
  %1125 = vdwg.mxu0
  %v1127 = vsel %vm63, %v1123, 0
  %1129 = vmatprep.subr.mxu0 0.0
  %1130 = vmatpush1.msra.mxu0 %v46
  %1131 = vmatprep.subr.mxu0 0.0
  %1132 = vmatpush1.msra.mxu0 %v47
  %1133 = vmatprep.subr.mxu0 0.0
  %1134 = vmatpush1.msra.mxu0 %v48
  %1135 = vmatprep.subr.mxu0 0.0
  %1136 = vmatpush1.msra.mxu0 %v49
  %1137 = vmatprep.subr.mxu0 0.0
  %1138 = vmatpush1.msra.mxu0 0.0
  %1139 = vmatprep.subr.mxu0 0.0
  %1140 = vmatpush1.msra.mxu0 0.0
  %1141 = vmatprep.subr.mxu0 0.0
  %1142 = vmatpush1.msra.mxu0 0.0
  %1143 = vmatprep.subr.mxu0 0.0
  %1144 = vmatpush1.msra.mxu0 0.0
  %1145 = vmatprep.subr.mxu0 0.0
  %1146 = vmatpush1.msra.mxu0 0.0
  %1147 = vmatprep.subr.mxu0 0.0
  %1148 = vmatpush1.msra.mxu0 0.0
  %1149 = vmatprep.subr.mxu0 0.0
  %1150 = vmatpush1.msra.mxu0 0.0
  %1151 = vmatprep.subr.mxu0 0.0
  %1152 = vmatpush1.msra.mxu0 0.0
  %1153 = vmatprep.subr.mxu0 0.0
  %1154 = vmatpush1.msra.mxu0 0.0
  %1155 = vmatprep.subr.mxu0 0.0
  %1156 = vmatpush1.msra.mxu0 0.0
  %1157 = vmatprep.subr.mxu0 0.0
  %1158 = vmatpush1.msra.mxu0 0.0
  %1159 = vmatprep.subr.mxu0 0.0
  %1160 = vmatpush1.msra.mxu0 0.0
  %1161 = vmatprep.subr.mxu0 0.0
  %1162 = vmatpush1.msra.mxu0 0.0
  %1163 = vmatprep.subr.mxu0 0.0
  %1164 = vmatpush1.msra.mxu0 0.0
  %1165 = vmatprep.subr.mxu0 0.0
  %1166 = vmatpush1.msra.mxu0 0.0
  %1167 = vmatprep.subr.mxu0 0.0
  %1168 = vmatpush1.msra.mxu0 0.0
  %1169 = vmatprep.subr.mxu0 0.0
  %1170 = vmatpush1.msra.mxu0 0.0
  %1171 = vmatprep.subr.mxu0 0.0
  %1172 = vmatpush1.msra.mxu0 0.0
  %1173 = vmatprep.subr.mxu0 0.0
  %1174 = vmatpush1.msra.mxu0 0.0
  %1175 = vmatprep.subr.mxu0 0.0
  %1176 = vmatpush1.msra.mxu0 0.0
  %1177 = vmatprep.subr.mxu0 0.0
  %1178 = vmatpush1.msra.mxu0 0.0
  %1179 = vmatprep.subr.mxu0 0.0
  %1180 = vmatpush1.msra.mxu0 0.0
  %1181 = vmatprep.subr.mxu0 0.0
  %1182 = vmatpush1.msra.mxu0 0.0
  %1183 = vmatprep.subr.mxu0 0.0
  %1184 = vmatpush1.msra.mxu0 0.0
  %1185 = vmatprep.subr.mxu0 0.0
  %1186 = vmatpush1.msra.mxu0 0.0
  %1187 = vmatprep.subr.mxu0 0.0
  %1188 = vmatpush1.msra.mxu0 0.0
  %1189 = vmatprep.subr.mxu0 0.0
  %1190 = vmatpush1.msra.mxu0 0.0
  %1191 = vmatprep.subr.mxu0 0.0
  %1192 = vmatpush1.msra.mxu0 0.0
  %1193 = vmatprep.mubr.f32.mxu0 0.0
  %1194 = vmatmul.mubr.f32.gmra.mrb[0].mxu0 %v1127
  %v1195 = vpop.f32.mrb[0].mxu0
  %v1196 = vadd.f32 0.0, %v1195
  %v1197 = vpop.f32.mrb[0].mxu0
  %1198 = vdwg.mxu0
  %v1199 = vadd.f32 %v208, %v1196
  %v1200 = vtanh.pop %v1199
  %v1202 = vsel %vm63, %v1200, 0
  %1204 = vmatprep.subr.mxu0 0.0
  %1205 = vmatpush1.msra.mxu0 %v338
  %1206 = vmatprep.subr.mxu0 0.0
  %1207 = vmatpush1.msra.mxu0 %v343
  %1208 = vmatprep.subr.mxu0 0.0
  %1209 = vmatpush1.msra.mxu0 %v348
  %1210 = vmatprep.subr.mxu0 0.0
  %1211 = vmatpush1.msra.mxu0 %v353
  %1212 = vmatprep.subr.mxu0 0.0
  %1213 = vmatpush1.msra.mxu0 0.0
  %1214 = vmatprep.subr.mxu0 0.0
  %1215 = vmatpush1.msra.mxu0 0.0
  %1216 = vmatprep.subr.mxu0 0.0
  %1217 = vmatpush1.msra.mxu0 0.0
  %1218 = vmatprep.subr.mxu0 0.0
  %1219 = vmatpush1.msra.mxu0 0.0
  %1220 = vmatprep.subr.mxu0 0.0
  %1221 = vmatpush1.msra.mxu0 0.0
  %1222 = vmatprep.subr.mxu0 0.0
  %1223 = vmatpush1.msra.mxu0 0.0
  %1224 = vmatprep.subr.mxu0 0.0
  %1225 = vmatpush1.msra.mxu0 0.0
  %1226 = vmatprep.subr.mxu0 0.0
  %1227 = vmatpush1.msra.mxu0 0.0
  %1228 = vmatprep.subr.mxu0 0.0
  %1229 = vmatpush1.msra.mxu0 0.0
  %1230 = vmatprep.subr.mxu0 0.0
  %1231 = vmatpush1.msra.mxu0 0.0
  %1232 = vmatprep.subr.mxu0 0.0
  %1233 = vmatpush1.msra.mxu0 0.0
  %1234 = vmatprep.subr.mxu0 0.0
  %1235 = vmatpush1.msra.mxu0 0.0
  %1236 = vmatprep.subr.mxu0 0.0
  %1237 = vmatpush1.msra.mxu0 0.0
  %1238 = vmatprep.subr.mxu0 0.0
  %1239 = vmatpush1.msra.mxu0 0.0
  %1240 = vmatprep.subr.mxu0 0.0
  %1241 = vmatpush1.msra.mxu0 0.0
  %1242 = vmatprep.subr.mxu0 0.0
  %1243 = vmatpush1.msra.mxu0 0.0
  %1244 = vmatprep.subr.mxu0 0.0
  %1245 = vmatpush1.msra.mxu0 0.0
  %1246 = vmatprep.subr.mxu0 0.0
  %1247 = vmatpush1.msra.mxu0 0.0
  %1248 = vmatprep.subr.mxu0 0.0
  %1249 = vmatpush1.msra.mxu0 0.0
  %1250 = vmatprep.subr.mxu0 0.0
  %1251 = vmatpush1.msra.mxu0 0.0
  %1252 = vmatprep.subr.mxu0 0.0
  %1253 = vmatpush1.msra.mxu0 0.0
  %1254 = vmatprep.subr.mxu0 0.0
  %1255 = vmatpush1.msra.mxu0 0.0
  %1256 = vmatprep.subr.mxu0 0.0
  %1257 = vmatpush1.msra.mxu0 0.0
  %1258 = vmatprep.subr.mxu0 0.0
  %1259 = vmatpush1.msra.mxu0 0.0
  %1260 = vmatprep.subr.mxu0 0.0
  %1261 = vmatpush1.msra.mxu0 0.0
  %1262 = vmatprep.subr.mxu0 0.0
  %1263 = vmatpush1.msra.mxu0 0.0
  %1264 = vmatprep.subr.mxu0 0.0
  %1265 = vmatpush1.msra.mxu0 0.0
  %1266 = vmatprep.subr.mxu0 0.0
  %1267 = vmatpush1.msra.mxu0 0.0
  %1268 = vmatprep.mubr.f32.mxu0 0.0
  %1269 = vmatmul.mubr.f32.gmra.mrb[0].mxu0 %v1202
  %v1270 = vpop.f32.mrb[0].mxu0
  %v1271 = vadd.f32 0.0, %v1270
  %v1272 = vpop.f32.mrb[0].mxu0
  %1273 = vdwg.mxu0
  %v1274 = vmul.f32 %v1271, 0.17677669
  %vm1275 = vcmp.lt.f32.partialorder %v1055, 0.5
  %vm1276 = vmand %vm578, %vm1275
  %v1277 = vsel %vm1276, %v1274, -1e+09
  %s1278 = scalar_lea.vmem %s6, 6
  %1279 = vst [vmem:[%s1278] sm:$0x3] %v1277
  %v1280 = vsel %vm583, %v1277, -inf
  %1281 = vmax.index.xlane.f32.xlu0 %v1280
  %v1282 = vpop.xlane.xlu0 %1281
  %vm1283 = vcmp.eq.s32.totalorder %v427, %v1282
  %v1284 = vsel %vm1283, 1, 0
  %v1285 = vcvt.s32.f32 %v1284
  %v1286 = vmul.f32 %v1285, %v428
  %v1287 = vmax.f32 %v1055, %v1286
  %1288 = vmatprep.subr.mxu0 0.0
  %1289 = vmatpush1.msra.mxu0 %v23
  %1290 = vmatprep.subr.mxu0 0.0
  %1291 = vmatpush1.msra.mxu0 %v24
  %1292 = vmatprep.subr.mxu0 0.0
  %1293 = vmatpush1.msra.mxu0 %v25
  %1294 = vmatprep.subr.mxu0 0.0
  %1295 = vmatpush1.msra.mxu0 %v26
  %1296 = vmatprep.subr.mxu0 0.0
  %1297 = vmatpush1.msra.mxu0 %v27
  %1298 = vmatprep.subr.mxu0 0.0
  %1299 = vmatpush1.msra.mxu0 %v28
  %1300 = vmatprep.subr.mxu0 0.0
  %1301 = vmatpush1.msra.mxu0 %v29
  %1302 = vmatprep.subr.mxu0 0.0
  %1303 = vmatpush1.msra.mxu0 %v30
  %1304 = vmatprep.subr.mxu0 0.0
  %1305 = vmatpush1.msra.mxu0 %v31
  %1306 = vmatprep.subr.mxu0 0.0
  %1307 = vmatpush1.msra.mxu0 %v32
  %1308 = vmatprep.subr.mxu0 0.0
  %1309 = vmatpush1.msra.mxu0 %v33
  %1310 = vmatprep.subr.mxu0 0.0
  %1311 = vmatpush1.msra.mxu0 %v34
  %1312 = vmatprep.subr.mxu0 0.0
  %1313 = vmatpush1.msra.mxu0 %v35
  %1314 = vmatprep.subr.mxu0 0.0
  %1315 = vmatpush1.msra.mxu0 %v36
  %1316 = vmatprep.subr.mxu0 0.0
  %1317 = vmatpush1.msra.mxu0 %v37
  %1318 = vmatprep.subr.mxu0 0.0
  %1319 = vmatpush1.msra.mxu0 %v38
  %1320 = vmatprep.subr.mxu0 0.0
  %1321 = vmatpush1.msra.mxu0 0.0
  %1322 = vmatprep.subr.mxu0 0.0
  %1323 = vmatpush1.msra.mxu0 0.0
  %1324 = vmatprep.subr.mxu0 0.0
  %1325 = vmatpush1.msra.mxu0 0.0
  %1326 = vmatprep.subr.mxu0 0.0
  %1327 = vmatpush1.msra.mxu0 0.0
  %1328 = vmatprep.subr.mxu0 0.0
  %1329 = vmatpush1.msra.mxu0 0.0
  %1330 = vmatprep.subr.mxu0 0.0
  %1331 = vmatpush1.msra.mxu0 0.0
  %1332 = vmatprep.subr.mxu0 0.0
  %1333 = vmatpush1.msra.mxu0 0.0
  %1334 = vmatprep.subr.mxu0 0.0
  %1335 = vmatpush1.msra.mxu0 0.0
  %1336 = vmatprep.subr.mxu0 0.0
  %1337 = vmatpush1.msra.mxu0 0.0
  %1338 = vmatprep.subr.mxu0 0.0
  %1339 = vmatpush1.msra.mxu0 0.0
  %1340 = vmatprep.subr.mxu0 0.0
  %1341 = vmatpush1.msra.mxu0 0.0
  %1342 = vmatprep.subr.mxu0 0.0
  %1343 = vmatpush1.msra.mxu0 0.0
  %1344 = vmatprep.subr.mxu0 0.0
  %1345 = vmatpush1.msra.mxu0 0.0
  %1346 = vmatprep.subr.mxu0 0.0
  %1347 = vmatpush1.msra.mxu0 0.0
  %1348 = vmatprep.subr.mxu0 0.0
  %1349 = vmatpush1.msra.mxu0 0.0
  %1350 = vmatprep.subr.mxu0 0.0
  %1351 = vmatpush1.msra.mxu0 0.0
  %1352 = vmatprep.mubr.f32.mxu0 0.0
  %1353 = vmatmul.mubr.f32.gmra.mrb[0].mxu0 %v1285
  %v1354 = vpop.f32.mrb[0].mxu0
  %v1355 = vadd.f32 0.0, %v1354
  %v1356 = vpop.f32.mrb[0].mxu0
  %1357 = vdwg.mxu0
  %v1359 = vsel %vm63, %v1355, 0
  %1361 = vmatprep.subr.mxu0 0.0
  %1362 = vmatpush1.msra.mxu0 %v46
  %1363 = vmatprep.subr.mxu0 0.0
  %1364 = vmatpush1.msra.mxu0 %v47
  %1365 = vmatprep.subr.mxu0 0.0
  %1366 = vmatpush1.msra.mxu0 %v48
  %1367 = vmatprep.subr.mxu0 0.0
  %1368 = vmatpush1.msra.mxu0 %v49
  %1369 = vmatprep.subr.mxu0 0.0
  %1370 = vmatpush1.msra.mxu0 0.0
  %1371 = vmatprep.subr.mxu0 0.0
  %1372 = vmatpush1.msra.mxu0 0.0
  %1373 = vmatprep.subr.mxu0 0.0
  %1374 = vmatpush1.msra.mxu0 0.0
  %1375 = vmatprep.subr.mxu0 0.0
  %1376 = vmatpush1.msra.mxu0 0.0
  %1377 = vmatprep.subr.mxu0 0.0
  %1378 = vmatpush1.msra.mxu0 0.0
  %1379 = vmatprep.subr.mxu0 0.0
  %1380 = vmatpush1.msra.mxu0 0.0
  %1381 = vmatprep.subr.mxu0 0.0
  %1382 = vmatpush1.msra.mxu0 0.0
  %1383 = vmatprep.subr.mxu0 0.0
  %1384 = vmatpush1.msra.mxu0 0.0
  %1385 = vmatprep.subr.mxu0 0.0
  %1386 = vmatpush1.msra.mxu0 0.0
  %1387 = vmatprep.subr.mxu0 0.0
  %1388 = vmatpush1.msra.mxu0 0.0
  %1389 = vmatprep.subr.mxu0 0.0
  %1390 = vmatpush1.msra.mxu0 0.0
  %1391 = vmatprep.subr.mxu0 0.0
  %1392 = vmatpush1.msra.mxu0 0.0
  %1393 = vmatprep.subr.mxu0 0.0
  %1394 = vmatpush1.msra.mxu0 0.0
  %1395 = vmatprep.subr.mxu0 0.0
  %1396 = vmatpush1.msra.mxu0 0.0
  %1397 = vmatprep.subr.mxu0 0.0
  %1398 = vmatpush1.msra.mxu0 0.0
  %1399 = vmatprep.subr.mxu0 0.0
  %1400 = vmatpush1.msra.mxu0 0.0
  %1401 = vmatprep.subr.mxu0 0.0
  %1402 = vmatpush1.msra.mxu0 0.0
  %1403 = vmatprep.subr.mxu0 0.0
  %1404 = vmatpush1.msra.mxu0 0.0
  %1405 = vmatprep.subr.mxu0 0.0
  %1406 = vmatpush1.msra.mxu0 0.0
  %1407 = vmatprep.subr.mxu0 0.0
  %1408 = vmatpush1.msra.mxu0 0.0
  %1409 = vmatprep.subr.mxu0 0.0
  %1410 = vmatpush1.msra.mxu0 0.0
  %1411 = vmatprep.subr.mxu0 0.0
  %1412 = vmatpush1.msra.mxu0 0.0
  %1413 = vmatprep.subr.mxu0 0.0
  %1414 = vmatpush1.msra.mxu0 0.0
  %1415 = vmatprep.subr.mxu0 0.0
  %1416 = vmatpush1.msra.mxu0 0.0
  %1417 = vmatprep.subr.mxu0 0.0
  %1418 = vmatpush1.msra.mxu0 0.0
  %1419 = vmatprep.subr.mxu0 0.0
  %1420 = vmatpush1.msra.mxu0 0.0
  %1421 = vmatprep.subr.mxu0 0.0
  %1422 = vmatpush1.msra.mxu0 0.0
  %1423 = vmatprep.subr.mxu0 0.0
  %1424 = vmatpush1.msra.mxu0 0.0
  %1425 = vmatprep.mubr.f32.mxu0 0.0
  %1426 = vmatmul.mubr.f32.gmra.mrb[0].mxu0 %v1359
  %v1427 = vpop.f32.mrb[0].mxu0
  %v1428 = vadd.f32 0.0, %v1427
  %v1429 = vpop.f32.mrb[0].mxu0
  %1430 = vdwg.mxu0
  %v1431 = vadd.f32 %v208, %v1428
  %v1432 = vtanh.pop %v1431
  %v1434 = vsel %vm63, %v1432, 0
  %1436 = vmatprep.subr.mxu0 0.0
  %1437 = vmatpush1.msra.mxu0 %v338
  %1438 = vmatprep.subr.mxu0 0.0
  %1439 = vmatpush1.msra.mxu0 %v343
  %1440 = vmatprep.subr.mxu0 0.0
  %1441 = vmatpush1.msra.mxu0 %v348
  %1442 = vmatprep.subr.mxu0 0.0
  %1443 = vmatpush1.msra.mxu0 %v353
  %1444 = vmatprep.subr.mxu0 0.0
  %1445 = vmatpush1.msra.mxu0 0.0
  %1446 = vmatprep.subr.mxu0 0.0
  %1447 = vmatpush1.msra.mxu0 0.0
  %1448 = vmatprep.subr.mxu0 0.0
  %1449 = vmatpush1.msra.mxu0 0.0
  %1450 = vmatprep.subr.mxu0 0.0
  %1451 = vmatpush1.msra.mxu0 0.0
  %1452 = vmatprep.subr.mxu0 0.0
  %1453 = vmatpush1.msra.mxu0 0.0
  %1454 = vmatprep.subr.mxu0 0.0
  %1455 = vmatpush1.msra.mxu0 0.0
  %1456 = vmatprep.subr.mxu0 0.0
  %1457 = vmatpush1.msra.mxu0 0.0
  %1458 = vmatprep.subr.mxu0 0.0
  %1459 = vmatpush1.msra.mxu0 0.0
  %1460 = vmatprep.subr.mxu0 0.0
  %1461 = vmatpush1.msra.mxu0 0.0
  %1462 = vmatprep.subr.mxu0 0.0
  %1463 = vmatpush1.msra.mxu0 0.0
  %1464 = vmatprep.subr.mxu0 0.0
  %1465 = vmatpush1.msra.mxu0 0.0
  %1466 = vmatprep.subr.mxu0 0.0
  %1467 = vmatpush1.msra.mxu0 0.0
  %1468 = vmatprep.subr.mxu0 0.0
  %1469 = vmatpush1.msra.mxu0 0.0
  %1470 = vmatprep.subr.mxu0 0.0
  %1471 = vmatpush1.msra.mxu0 0.0
  %1472 = vmatprep.subr.mxu0 0.0
  %1473 = vmatpush1.msra.mxu0 0.0
  %1474 = vmatprep.subr.mxu0 0.0
  %1475 = vmatpush1.msra.mxu0 0.0
  %1476 = vmatprep.subr.mxu0 0.0
  %1477 = vmatpush1.msra.mxu0 0.0
  %1478 = vmatprep.subr.mxu0 0.0
  %1479 = vmatpush1.msra.mxu0 0.0
  %1480 = vmatprep.subr.mxu0 0.0
  %1481 = vmatpush1.msra.mxu0 0.0
  %1482 = vmatprep.subr.mxu0 0.0
  %1483 = vmatpush1.msra.mxu0 0.0
  %1484 = vmatprep.subr.mxu0 0.0
  %1485 = vmatpush1.msra.mxu0 0.0
  %1486 = vmatprep.subr.mxu0 0.0
  %1487 = vmatpush1.msra.mxu0 0.0
  %1488 = vmatprep.subr.mxu0 0.0
  %1489 = vmatpush1.msra.mxu0 0.0
  %1490 = vmatprep.subr.mxu0 0.0
  %1491 = vmatpush1.msra.mxu0 0.0
  %1492 = vmatprep.subr.mxu0 0.0
  %1493 = vmatpush1.msra.mxu0 0.0
  %1494 = vmatprep.subr.mxu0 0.0
  %1495 = vmatpush1.msra.mxu0 0.0
  %1496 = vmatprep.subr.mxu0 0.0
  %1497 = vmatpush1.msra.mxu0 0.0
  %1498 = vmatprep.subr.mxu0 0.0
  %1499 = vmatpush1.msra.mxu0 0.0
  %1500 = vmatprep.mubr.f32.mxu0 0.0
  %1501 = vmatmul.mubr.f32.gmra.mrb[0].mxu0 %v1434
  %v1502 = vpop.f32.mrb[0].mxu0
  %v1503 = vadd.f32 0.0, %v1502
  %v1504 = vpop.f32.mrb[0].mxu0
  %1505 = vdwg.mxu0
  %v1506 = vmul.f32 %v1503, 0.17677669
  %vm1507 = vcmp.lt.f32.partialorder %v1287, 0.5
  %vm1508 = vmand %vm578, %vm1507
  %v1509 = vsel %vm1508, %v1506, -1e+09
  %s1510 = scalar_lea.vmem %s6, 8
  %1511 = vst [vmem:[%s1510] sm:$0x3] %v1509
  %v1512 = vsel %vm583, %v1509, -inf
  %1513 = vmax.index.xlane.f32.xlu0 %v1512
  %v1514 = vpop.xlane.xlu0 %1513
  %vm1515 = vcmp.eq.s32.totalorder %v427, %v1514
  %v1516 = vsel %vm1515, 1, 0
  %v1517 = vcvt.s32.f32 %v1516
  %v1518 = vmul.f32 %v1517, %v428
  %v1519 = vmax.f32 %v1287, %v1518
  %1520 = vmatprep.subr.mxu0 0.0
  %1521 = vmatpush1.msra.mxu0 %v23
  %1522 = vmatprep.subr.mxu0 0.0
  %1523 = vmatpush1.msra.mxu0 %v24
  %1524 = vmatprep.subr.mxu0 0.0
  %1525 = vmatpush1.msra.mxu0 %v25
  %1526 = vmatprep.subr.mxu0 0.0
  %1527 = vmatpush1.msra.mxu0 %v26
  %1528 = vmatprep.subr.mxu0 0.0
  %1529 = vmatpush1.msra.mxu0 %v27
  %1530 = vmatprep.subr.mxu0 0.0
  %1531 = vmatpush1.msra.mxu0 %v28
  %1532 = vmatprep.subr.mxu0 0.0
  %1533 = vmatpush1.msra.mxu0 %v29
  %1534 = vmatprep.subr.mxu0 0.0
  %1535 = vmatpush1.msra.mxu0 %v30
  %1536 = vmatprep.subr.mxu0 0.0
  %1537 = vmatpush1.msra.mxu0 %v31
  %1538 = vmatprep.subr.mxu0 0.0
  %1539 = vmatpush1.msra.mxu0 %v32
  %1540 = vmatprep.subr.mxu0 0.0
  %1541 = vmatpush1.msra.mxu0 %v33
  %1542 = vmatprep.subr.mxu0 0.0
  %1543 = vmatpush1.msra.mxu0 %v34
  %1544 = vmatprep.subr.mxu0 0.0
  %1545 = vmatpush1.msra.mxu0 %v35
  %1546 = vmatprep.subr.mxu0 0.0
  %1547 = vmatpush1.msra.mxu0 %v36
  %1548 = vmatprep.subr.mxu0 0.0
  %1549 = vmatpush1.msra.mxu0 %v37
  %1550 = vmatprep.subr.mxu0 0.0
  %1551 = vmatpush1.msra.mxu0 %v38
  %1552 = vmatprep.subr.mxu0 0.0
  %1553 = vmatpush1.msra.mxu0 0.0
  %1554 = vmatprep.subr.mxu0 0.0
  %1555 = vmatpush1.msra.mxu0 0.0
  %1556 = vmatprep.subr.mxu0 0.0
  %1557 = vmatpush1.msra.mxu0 0.0
  %1558 = vmatprep.subr.mxu0 0.0
  %1559 = vmatpush1.msra.mxu0 0.0
  %1560 = vmatprep.subr.mxu0 0.0
  %1561 = vmatpush1.msra.mxu0 0.0
  %1562 = vmatprep.subr.mxu0 0.0
  %1563 = vmatpush1.msra.mxu0 0.0
  %1564 = vmatprep.subr.mxu0 0.0
  %1565 = vmatpush1.msra.mxu0 0.0
  %1566 = vmatprep.subr.mxu0 0.0
  %1567 = vmatpush1.msra.mxu0 0.0
  %1568 = vmatprep.subr.mxu0 0.0
  %1569 = vmatpush1.msra.mxu0 0.0
  %1570 = vmatprep.subr.mxu0 0.0
  %1571 = vmatpush1.msra.mxu0 0.0
  %1572 = vmatprep.subr.mxu0 0.0
  %1573 = vmatpush1.msra.mxu0 0.0
  %1574 = vmatprep.subr.mxu0 0.0
  %1575 = vmatpush1.msra.mxu0 0.0
  %1576 = vmatprep.subr.mxu0 0.0
  %1577 = vmatpush1.msra.mxu0 0.0
  %1578 = vmatprep.subr.mxu0 0.0
  %1579 = vmatpush1.msra.mxu0 0.0
  %1580 = vmatprep.subr.mxu0 0.0
  %1581 = vmatpush1.msra.mxu0 0.0
  %1582 = vmatprep.subr.mxu0 0.0
  %1583 = vmatpush1.msra.mxu0 0.0
  %1584 = vmatprep.mubr.f32.mxu0 0.0
  %1585 = vmatmul.mubr.f32.gmra.mrb[0].mxu0 %v1517
  %v1586 = vpop.f32.mrb[0].mxu0
  %v1587 = vadd.f32 0.0, %v1586
  %v1588 = vpop.f32.mrb[0].mxu0
  %1589 = vdwg.mxu0
  %v1591 = vsel %vm63, %v1587, 0
  %1593 = vmatprep.subr.mxu0 0.0
  %1594 = vmatpush1.msra.mxu0 %v46
  %1595 = vmatprep.subr.mxu0 0.0
  %1596 = vmatpush1.msra.mxu0 %v47
  %1597 = vmatprep.subr.mxu0 0.0
  %1598 = vmatpush1.msra.mxu0 %v48
  %1599 = vmatprep.subr.mxu0 0.0
  %1600 = vmatpush1.msra.mxu0 %v49
  %1601 = vmatprep.subr.mxu0 0.0
  %1602 = vmatpush1.msra.mxu0 0.0
  %1603 = vmatprep.subr.mxu0 0.0
  %1604 = vmatpush1.msra.mxu0 0.0
  %1605 = vmatprep.subr.mxu0 0.0
  %1606 = vmatpush1.msra.mxu0 0.0
  %1607 = vmatprep.subr.mxu0 0.0
  %1608 = vmatpush1.msra.mxu0 0.0
  %1609 = vmatprep.subr.mxu0 0.0
  %1610 = vmatpush1.msra.mxu0 0.0
  %1611 = vmatprep.subr.mxu0 0.0
  %1612 = vmatpush1.msra.mxu0 0.0
  %1613 = vmatprep.subr.mxu0 0.0
  %1614 = vmatpush1.msra.mxu0 0.0
  %1615 = vmatprep.subr.mxu0 0.0
  %1616 = vmatpush1.msra.mxu0 0.0
  %1617 = vmatprep.subr.mxu0 0.0
  %1618 = vmatpush1.msra.mxu0 0.0
  %1619 = vmatprep.subr.mxu0 0.0
  %1620 = vmatpush1.msra.mxu0 0.0
  %1621 = vmatprep.subr.mxu0 0.0
  %1622 = vmatpush1.msra.mxu0 0.0
  %1623 = vmatprep.subr.mxu0 0.0
  %1624 = vmatpush1.msra.mxu0 0.0
  %1625 = vmatprep.subr.mxu0 0.0
  %1626 = vmatpush1.msra.mxu0 0.0
  %1627 = vmatprep.subr.mxu0 0.0
  %1628 = vmatpush1.msra.mxu0 0.0
  %1629 = vmatprep.subr.mxu0 0.0
  %1630 = vmatpush1.msra.mxu0 0.0
  %1631 = vmatprep.subr.mxu0 0.0
  %1632 = vmatpush1.msra.mxu0 0.0
  %1633 = vmatprep.subr.mxu0 0.0
  %1634 = vmatpush1.msra.mxu0 0.0
  %1635 = vmatprep.subr.mxu0 0.0
  %1636 = vmatpush1.msra.mxu0 0.0
  %1637 = vmatprep.subr.mxu0 0.0
  %1638 = vmatpush1.msra.mxu0 0.0
  %1639 = vmatprep.subr.mxu0 0.0
  %1640 = vmatpush1.msra.mxu0 0.0
  %1641 = vmatprep.subr.mxu0 0.0
  %1642 = vmatpush1.msra.mxu0 0.0
  %1643 = vmatprep.subr.mxu0 0.0
  %1644 = vmatpush1.msra.mxu0 0.0
  %1645 = vmatprep.subr.mxu0 0.0
  %1646 = vmatpush1.msra.mxu0 0.0
  %1647 = vmatprep.subr.mxu0 0.0
  %1648 = vmatpush1.msra.mxu0 0.0
  %1649 = vmatprep.subr.mxu0 0.0
  %1650 = vmatpush1.msra.mxu0 0.0
  %1651 = vmatprep.subr.mxu0 0.0
  %1652 = vmatpush1.msra.mxu0 0.0
  %1653 = vmatprep.subr.mxu0 0.0
  %1654 = vmatpush1.msra.mxu0 0.0
  %1655 = vmatprep.subr.mxu0 0.0
  %1656 = vmatpush1.msra.mxu0 0.0
  %1657 = vmatprep.mubr.f32.mxu0 0.0
  %1658 = vmatmul.mubr.f32.gmra.mrb[0].mxu0 %v1591
  %v1659 = vpop.f32.mrb[0].mxu0
  %v1660 = vadd.f32 0.0, %v1659
  %v1661 = vpop.f32.mrb[0].mxu0
  %1662 = vdwg.mxu0
  %v1663 = vadd.f32 %v208, %v1660
  %v1664 = vtanh.pop %v1663
  %v1666 = vsel %vm63, %v1664, 0
  %1668 = vmatprep.subr.mxu0 0.0
  %1669 = vmatpush1.msra.mxu0 %v338
  %1670 = vmatprep.subr.mxu0 0.0
  %1671 = vmatpush1.msra.mxu0 %v343
  %1672 = vmatprep.subr.mxu0 0.0
  %1673 = vmatpush1.msra.mxu0 %v348
  %1674 = vmatprep.subr.mxu0 0.0
  %1675 = vmatpush1.msra.mxu0 %v353
  %1676 = vmatprep.subr.mxu0 0.0
  %1677 = vmatpush1.msra.mxu0 0.0
  %1678 = vmatprep.subr.mxu0 0.0
  %1679 = vmatpush1.msra.mxu0 0.0
  %1680 = vmatprep.subr.mxu0 0.0
  %1681 = vmatpush1.msra.mxu0 0.0
  %1682 = vmatprep.subr.mxu0 0.0
  %1683 = vmatpush1.msra.mxu0 0.0
  %1684 = vmatprep.subr.mxu0 0.0
  %1685 = vmatpush1.msra.mxu0 0.0
  %1686 = vmatprep.subr.mxu0 0.0
  %1687 = vmatpush1.msra.mxu0 0.0
  %1688 = vmatprep.subr.mxu0 0.0
  %1689 = vmatpush1.msra.mxu0 0.0
  %1690 = vmatprep.subr.mxu0 0.0
  %1691 = vmatpush1.msra.mxu0 0.0
  %1692 = vmatprep.subr.mxu0 0.0
  %1693 = vmatpush1.msra.mxu0 0.0
  %1694 = vmatprep.subr.mxu0 0.0
  %1695 = vmatpush1.msra.mxu0 0.0
  %1696 = vmatprep.subr.mxu0 0.0
  %1697 = vmatpush1.msra.mxu0 0.0
  %1698 = vmatprep.subr.mxu0 0.0
  %1699 = vmatpush1.msra.mxu0 0.0
  %1700 = vmatprep.subr.mxu0 0.0
  %1701 = vmatpush1.msra.mxu0 0.0
  %1702 = vmatprep.subr.mxu0 0.0
  %1703 = vmatpush1.msra.mxu0 0.0
  %1704 = vmatprep.subr.mxu0 0.0
  %1705 = vmatpush1.msra.mxu0 0.0
  %1706 = vmatprep.subr.mxu0 0.0
  %1707 = vmatpush1.msra.mxu0 0.0
  %1708 = vmatprep.subr.mxu0 0.0
  %1709 = vmatpush1.msra.mxu0 0.0
  %1710 = vmatprep.subr.mxu0 0.0
  %1711 = vmatpush1.msra.mxu0 0.0
  %1712 = vmatprep.subr.mxu0 0.0
  %1713 = vmatpush1.msra.mxu0 0.0
  %1714 = vmatprep.subr.mxu0 0.0
  %1715 = vmatpush1.msra.mxu0 0.0
  %1716 = vmatprep.subr.mxu0 0.0
  %1717 = vmatpush1.msra.mxu0 0.0
  %1718 = vmatprep.subr.mxu0 0.0
  %1719 = vmatpush1.msra.mxu0 0.0
  %1720 = vmatprep.subr.mxu0 0.0
  %1721 = vmatpush1.msra.mxu0 0.0
  %1722 = vmatprep.subr.mxu0 0.0
  %1723 = vmatpush1.msra.mxu0 0.0
  %1724 = vmatprep.subr.mxu0 0.0
  %1725 = vmatpush1.msra.mxu0 0.0
  %1726 = vmatprep.subr.mxu0 0.0
  %1727 = vmatpush1.msra.mxu0 0.0
  %1728 = vmatprep.subr.mxu0 0.0
  %1729 = vmatpush1.msra.mxu0 0.0
  %1730 = vmatprep.subr.mxu0 0.0
  %1731 = vmatpush1.msra.mxu0 0.0
  %1732 = vmatprep.mubr.f32.mxu0 0.0
  %1733 = vmatmul.mubr.f32.gmra.mrb[0].mxu0 %v1666
  %v1734 = vpop.f32.mrb[0].mxu0
  %v1735 = vadd.f32 0.0, %v1734
  %v1736 = vpop.f32.mrb[0].mxu0
  %1737 = vdwg.mxu0
  %v1738 = vmul.f32 %v1735, 0.17677669
  %vm1739 = vcmp.lt.f32.partialorder %v1519, 0.5
  %vm1740 = vmand %vm578, %vm1739
  %v1741 = vsel %vm1740, %v1738, -1e+09
  %s1742 = scalar_lea.vmem %s6, 10
  %1743 = vst [vmem:[%s1742] sm:$0x3] %v1741
  %v1744 = vsel %vm583, %v1741, -inf
  %1745 = vmax.index.xlane.f32.xlu0 %v1744
  %v1746 = vpop.xlane.xlu0 %1745
  %vm1747 = vcmp.eq.s32.totalorder %v427, %v1746
  %v1748 = vsel %vm1747, 1, 0
  %v1749 = vcvt.s32.f32 %v1748
  %v1750 = vmul.f32 %v1749, %v428
  %v1751 = vmax.f32 %v1519, %v1750
  %1752 = vmatprep.subr.mxu0 0.0
  %1753 = vmatpush1.msra.mxu0 %v23
  %1754 = vmatprep.subr.mxu0 0.0
  %1755 = vmatpush1.msra.mxu0 %v24
  %1756 = vmatprep.subr.mxu0 0.0
  %1757 = vmatpush1.msra.mxu0 %v25
  %1758 = vmatprep.subr.mxu0 0.0
  %1759 = vmatpush1.msra.mxu0 %v26
  %1760 = vmatprep.subr.mxu0 0.0
  %1761 = vmatpush1.msra.mxu0 %v27
  %1762 = vmatprep.subr.mxu0 0.0
  %1763 = vmatpush1.msra.mxu0 %v28
  %1764 = vmatprep.subr.mxu0 0.0
  %1765 = vmatpush1.msra.mxu0 %v29
  %1766 = vmatprep.subr.mxu0 0.0
  %1767 = vmatpush1.msra.mxu0 %v30
  %1768 = vmatprep.subr.mxu0 0.0
  %1769 = vmatpush1.msra.mxu0 %v31
  %1770 = vmatprep.subr.mxu0 0.0
  %1771 = vmatpush1.msra.mxu0 %v32
  %1772 = vmatprep.subr.mxu0 0.0
  %1773 = vmatpush1.msra.mxu0 %v33
  %1774 = vmatprep.subr.mxu0 0.0
  %1775 = vmatpush1.msra.mxu0 %v34
  %1776 = vmatprep.subr.mxu0 0.0
  %1777 = vmatpush1.msra.mxu0 %v35
  %1778 = vmatprep.subr.mxu0 0.0
  %1779 = vmatpush1.msra.mxu0 %v36
  %1780 = vmatprep.subr.mxu0 0.0
  %1781 = vmatpush1.msra.mxu0 %v37
  %1782 = vmatprep.subr.mxu0 0.0
  %1783 = vmatpush1.msra.mxu0 %v38
  %1784 = vmatprep.subr.mxu0 0.0
  %1785 = vmatpush1.msra.mxu0 0.0
  %1786 = vmatprep.subr.mxu0 0.0
  %1787 = vmatpush1.msra.mxu0 0.0
  %1788 = vmatprep.subr.mxu0 0.0
  %1789 = vmatpush1.msra.mxu0 0.0
  %1790 = vmatprep.subr.mxu0 0.0
  %1791 = vmatpush1.msra.mxu0 0.0
  %1792 = vmatprep.subr.mxu0 0.0
  %1793 = vmatpush1.msra.mxu0 0.0
  %1794 = vmatprep.subr.mxu0 0.0
  %1795 = vmatpush1.msra.mxu0 0.0
  %1796 = vmatprep.subr.mxu0 0.0
  %1797 = vmatpush1.msra.mxu0 0.0
  %1798 = vmatprep.subr.mxu0 0.0
  %1799 = vmatpush1.msra.mxu0 0.0
  %1800 = vmatprep.subr.mxu0 0.0
  %1801 = vmatpush1.msra.mxu0 0.0
  %1802 = vmatprep.subr.mxu0 0.0
  %1803 = vmatpush1.msra.mxu0 0.0
  %1804 = vmatprep.subr.mxu0 0.0
  %1805 = vmatpush1.msra.mxu0 0.0
  %1806 = vmatprep.subr.mxu0 0.0
  %1807 = vmatpush1.msra.mxu0 0.0
  %1808 = vmatprep.subr.mxu0 0.0
  %1809 = vmatpush1.msra.mxu0 0.0
  %1810 = vmatprep.subr.mxu0 0.0
  %1811 = vmatpush1.msra.mxu0 0.0
  %1812 = vmatprep.subr.mxu0 0.0
  %1813 = vmatpush1.msra.mxu0 0.0
  %1814 = vmatprep.subr.mxu0 0.0
  %1815 = vmatpush1.msra.mxu0 0.0
  %1816 = vmatprep.mubr.f32.mxu0 0.0
  %1817 = vmatmul.mubr.f32.gmra.mrb[0].mxu0 %v1749
  %v1818 = vpop.f32.mrb[0].mxu0
  %v1819 = vadd.f32 0.0, %v1818
  %v1820 = vpop.f32.mrb[0].mxu0
  %1821 = vdwg.mxu0
  %v1823 = vsel %vm63, %v1819, 0
  %1825 = vmatprep.subr.mxu0 0.0
  %1826 = vmatpush1.msra.mxu0 %v46
  %1827 = vmatprep.subr.mxu0 0.0
  %1828 = vmatpush1.msra.mxu0 %v47
  %1829 = vmatprep.subr.mxu0 0.0
  %1830 = vmatpush1.msra.mxu0 %v48
  %1831 = vmatprep.subr.mxu0 0.0
  %1832 = vmatpush1.msra.mxu0 %v49
  %1833 = vmatprep.subr.mxu0 0.0
  %1834 = vmatpush1.msra.mxu0 0.0
  %1835 = vmatprep.subr.mxu0 0.0
  %1836 = vmatpush1.msra.mxu0 0.0
  %1837 = vmatprep.subr.mxu0 0.0
  %1838 = vmatpush1.msra.mxu0 0.0
  %1839 = vmatprep.subr.mxu0 0.0
  %1840 = vmatpush1.msra.mxu0 0.0
  %1841 = vmatprep.subr.mxu0 0.0
  %1842 = vmatpush1.msra.mxu0 0.0
  %1843 = vmatprep.subr.mxu0 0.0
  %1844 = vmatpush1.msra.mxu0 0.0
  %1845 = vmatprep.subr.mxu0 0.0
  %1846 = vmatpush1.msra.mxu0 0.0
  %1847 = vmatprep.subr.mxu0 0.0
  %1848 = vmatpush1.msra.mxu0 0.0
  %1849 = vmatprep.subr.mxu0 0.0
  %1850 = vmatpush1.msra.mxu0 0.0
  %1851 = vmatprep.subr.mxu0 0.0
  %1852 = vmatpush1.msra.mxu0 0.0
  %1853 = vmatprep.subr.mxu0 0.0
  %1854 = vmatpush1.msra.mxu0 0.0
  %1855 = vmatprep.subr.mxu0 0.0
  %1856 = vmatpush1.msra.mxu0 0.0
  %1857 = vmatprep.subr.mxu0 0.0
  %1858 = vmatpush1.msra.mxu0 0.0
  %1859 = vmatprep.subr.mxu0 0.0
  %1860 = vmatpush1.msra.mxu0 0.0
  %1861 = vmatprep.subr.mxu0 0.0
  %1862 = vmatpush1.msra.mxu0 0.0
  %1863 = vmatprep.subr.mxu0 0.0
  %1864 = vmatpush1.msra.mxu0 0.0
  %1865 = vmatprep.subr.mxu0 0.0
  %1866 = vmatpush1.msra.mxu0 0.0
  %1867 = vmatprep.subr.mxu0 0.0
  %1868 = vmatpush1.msra.mxu0 0.0
  %1869 = vmatprep.subr.mxu0 0.0
  %1870 = vmatpush1.msra.mxu0 0.0
  %1871 = vmatprep.subr.mxu0 0.0
  %1872 = vmatpush1.msra.mxu0 0.0
  %1873 = vmatprep.subr.mxu0 0.0
  %1874 = vmatpush1.msra.mxu0 0.0
  %1875 = vmatprep.subr.mxu0 0.0
  %1876 = vmatpush1.msra.mxu0 0.0
  %1877 = vmatprep.subr.mxu0 0.0
  %1878 = vmatpush1.msra.mxu0 0.0
  %1879 = vmatprep.subr.mxu0 0.0
  %1880 = vmatpush1.msra.mxu0 0.0
  %1881 = vmatprep.subr.mxu0 0.0
  %1882 = vmatpush1.msra.mxu0 0.0
  %1883 = vmatprep.subr.mxu0 0.0
  %1884 = vmatpush1.msra.mxu0 0.0
  %1885 = vmatprep.subr.mxu0 0.0
  %1886 = vmatpush1.msra.mxu0 0.0
  %1887 = vmatprep.subr.mxu0 0.0
  %1888 = vmatpush1.msra.mxu0 0.0
  %1889 = vmatprep.mubr.f32.mxu0 0.0
  %1890 = vmatmul.mubr.f32.gmra.mrb[0].mxu0 %v1823
  %v1891 = vpop.f32.mrb[0].mxu0
  %v1892 = vadd.f32 0.0, %v1891
  %v1893 = vpop.f32.mrb[0].mxu0
  %1894 = vdwg.mxu0
  %v1895 = vadd.f32 %v208, %v1892
  %v1896 = vtanh.pop %v1895
  %v1898 = vsel %vm63, %v1896, 0
  %1900 = vmatprep.subr.mxu0 0.0
  %1901 = vmatpush1.msra.mxu0 %v338
  %1902 = vmatprep.subr.mxu0 0.0
  %1903 = vmatpush1.msra.mxu0 %v343
  %1904 = vmatprep.subr.mxu0 0.0
  %1905 = vmatpush1.msra.mxu0 %v348
  %1906 = vmatprep.subr.mxu0 0.0
  %1907 = vmatpush1.msra.mxu0 %v353
  %1908 = vmatprep.subr.mxu0 0.0
  %1909 = vmatpush1.msra.mxu0 0.0
  %1910 = vmatprep.subr.mxu0 0.0
  %1911 = vmatpush1.msra.mxu0 0.0
  %1912 = vmatprep.subr.mxu0 0.0
  %1913 = vmatpush1.msra.mxu0 0.0
  %1914 = vmatprep.subr.mxu0 0.0
  %1915 = vmatpush1.msra.mxu0 0.0
  %1916 = vmatprep.subr.mxu0 0.0
  %1917 = vmatpush1.msra.mxu0 0.0
  %1918 = vmatprep.subr.mxu0 0.0
  %1919 = vmatpush1.msra.mxu0 0.0
  %1920 = vmatprep.subr.mxu0 0.0
  %1921 = vmatpush1.msra.mxu0 0.0
  %1922 = vmatprep.subr.mxu0 0.0
  %1923 = vmatpush1.msra.mxu0 0.0
  %1924 = vmatprep.subr.mxu0 0.0
  %1925 = vmatpush1.msra.mxu0 0.0
  %1926 = vmatprep.subr.mxu0 0.0
  %1927 = vmatpush1.msra.mxu0 0.0
  %1928 = vmatprep.subr.mxu0 0.0
  %1929 = vmatpush1.msra.mxu0 0.0
  %1930 = vmatprep.subr.mxu0 0.0
  %1931 = vmatpush1.msra.mxu0 0.0
  %1932 = vmatprep.subr.mxu0 0.0
  %1933 = vmatpush1.msra.mxu0 0.0
  %1934 = vmatprep.subr.mxu0 0.0
  %1935 = vmatpush1.msra.mxu0 0.0
  %1936 = vmatprep.subr.mxu0 0.0
  %1937 = vmatpush1.msra.mxu0 0.0
  %1938 = vmatprep.subr.mxu0 0.0
  %1939 = vmatpush1.msra.mxu0 0.0
  %1940 = vmatprep.subr.mxu0 0.0
  %1941 = vmatpush1.msra.mxu0 0.0
  %1942 = vmatprep.subr.mxu0 0.0
  %1943 = vmatpush1.msra.mxu0 0.0
  %1944 = vmatprep.subr.mxu0 0.0
  %1945 = vmatpush1.msra.mxu0 0.0
  %1946 = vmatprep.subr.mxu0 0.0
  %1947 = vmatpush1.msra.mxu0 0.0
  %1948 = vmatprep.subr.mxu0 0.0
  %1949 = vmatpush1.msra.mxu0 0.0
  %1950 = vmatprep.subr.mxu0 0.0
  %1951 = vmatpush1.msra.mxu0 0.0
  %1952 = vmatprep.subr.mxu0 0.0
  %1953 = vmatpush1.msra.mxu0 0.0
  %1954 = vmatprep.subr.mxu0 0.0
  %1955 = vmatpush1.msra.mxu0 0.0
  %1956 = vmatprep.subr.mxu0 0.0
  %1957 = vmatpush1.msra.mxu0 0.0
  %1958 = vmatprep.subr.mxu0 0.0
  %1959 = vmatpush1.msra.mxu0 0.0
  %1960 = vmatprep.subr.mxu0 0.0
  %1961 = vmatpush1.msra.mxu0 0.0
  %1962 = vmatprep.subr.mxu0 0.0
  %1963 = vmatpush1.msra.mxu0 0.0
  %1964 = vmatprep.mubr.f32.mxu0 0.0
  %1965 = vmatmul.mubr.f32.gmra.mrb[0].mxu0 %v1898
  %v1966 = vpop.f32.mrb[0].mxu0
  %v1967 = vadd.f32 0.0, %v1966
  %v1968 = vpop.f32.mrb[0].mxu0
  %1969 = vdwg.mxu0
  %v1970 = vmul.f32 %v1967, 0.17677669
  %vm1971 = vcmp.lt.f32.partialorder %v1751, 0.5
  %vm1972 = vmand %vm578, %vm1971
  %v1973 = vsel %vm1972, %v1970, -1e+09
  %s1974 = scalar_lea.vmem %s6, 12
  %1975 = vst [vmem:[%s1974] sm:$0x3] %v1973
  %v1976 = vsel %vm583, %v1973, -inf
  %1977 = vmax.index.xlane.f32.xlu0 %v1976
  %v1978 = vpop.xlane.xlu0 %1977
  %vm1979 = vcmp.eq.s32.totalorder %v427, %v1978
  %v1980 = vsel %vm1979, 1, 0
  %v1981 = vcvt.s32.f32 %v1980
  %v1982 = vmul.f32 %v1981, %v428
  %v1983 = vmax.f32 %v1751, %v1982
  %1984 = vmatprep.subr.mxu0 0.0
  %1985 = vmatpush1.msra.mxu0 %v23
  %1986 = vmatprep.subr.mxu0 0.0
  %1987 = vmatpush1.msra.mxu0 %v24
  %1988 = vmatprep.subr.mxu0 0.0
  %1989 = vmatpush1.msra.mxu0 %v25
  %1990 = vmatprep.subr.mxu0 0.0
  %1991 = vmatpush1.msra.mxu0 %v26
  %1992 = vmatprep.subr.mxu0 0.0
  %1993 = vmatpush1.msra.mxu0 %v27
  %1994 = vmatprep.subr.mxu0 0.0
  %1995 = vmatpush1.msra.mxu0 %v28
  %1996 = vmatprep.subr.mxu0 0.0
  %1997 = vmatpush1.msra.mxu0 %v29
  %1998 = vmatprep.subr.mxu0 0.0
  %1999 = vmatpush1.msra.mxu0 %v30
  %2000 = vmatprep.subr.mxu0 0.0
  %2001 = vmatpush1.msra.mxu0 %v31
  %2002 = vmatprep.subr.mxu0 0.0
  %2003 = vmatpush1.msra.mxu0 %v32
  %2004 = vmatprep.subr.mxu0 0.0
  %2005 = vmatpush1.msra.mxu0 %v33
  %2006 = vmatprep.subr.mxu0 0.0
  %2007 = vmatpush1.msra.mxu0 %v34
  %2008 = vmatprep.subr.mxu0 0.0
  %2009 = vmatpush1.msra.mxu0 %v35
  %2010 = vmatprep.subr.mxu0 0.0
  %2011 = vmatpush1.msra.mxu0 %v36
  %2012 = vmatprep.subr.mxu0 0.0
  %2013 = vmatpush1.msra.mxu0 %v37
  %2014 = vmatprep.subr.mxu0 0.0
  %2015 = vmatpush1.msra.mxu0 %v38
  %2016 = vmatprep.subr.mxu0 0.0
  %2017 = vmatpush1.msra.mxu0 0.0
  %2018 = vmatprep.subr.mxu0 0.0
  %2019 = vmatpush1.msra.mxu0 0.0
  %2020 = vmatprep.subr.mxu0 0.0
  %2021 = vmatpush1.msra.mxu0 0.0
  %2022 = vmatprep.subr.mxu0 0.0
  %2023 = vmatpush1.msra.mxu0 0.0
  %2024 = vmatprep.subr.mxu0 0.0
  %2025 = vmatpush1.msra.mxu0 0.0
  %2026 = vmatprep.subr.mxu0 0.0
  %2027 = vmatpush1.msra.mxu0 0.0
  %2028 = vmatprep.subr.mxu0 0.0
  %2029 = vmatpush1.msra.mxu0 0.0
  %2030 = vmatprep.subr.mxu0 0.0
  %2031 = vmatpush1.msra.mxu0 0.0
  %2032 = vmatprep.subr.mxu0 0.0
  %2033 = vmatpush1.msra.mxu0 0.0
  %2034 = vmatprep.subr.mxu0 0.0
  %2035 = vmatpush1.msra.mxu0 0.0
  %2036 = vmatprep.subr.mxu0 0.0
  %2037 = vmatpush1.msra.mxu0 0.0
  %2038 = vmatprep.subr.mxu0 0.0
  %2039 = vmatpush1.msra.mxu0 0.0
  %2040 = vmatprep.subr.mxu0 0.0
  %2041 = vmatpush1.msra.mxu0 0.0
  %2042 = vmatprep.subr.mxu0 0.0
  %2043 = vmatpush1.msra.mxu0 0.0
  %2044 = vmatprep.subr.mxu0 0.0
  %2045 = vmatpush1.msra.mxu0 0.0
  %2046 = vmatprep.subr.mxu0 0.0
  %2047 = vmatpush1.msra.mxu0 0.0
  %2048 = vmatprep.mubr.f32.mxu0 0.0
  %2049 = vmatmul.mubr.f32.gmra.mrb[0].mxu0 %v1981
  %v2050 = vpop.f32.mrb[0].mxu0
  %v2051 = vadd.f32 0.0, %v2050
  %v2052 = vpop.f32.mrb[0].mxu0
  %2053 = vdwg.mxu0
  %v2055 = vsel %vm63, %v2051, 0
  %2057 = vmatprep.subr.mxu0 0.0
  %2058 = vmatpush1.msra.mxu0 %v46
  %2059 = vmatprep.subr.mxu0 0.0
  %2060 = vmatpush1.msra.mxu0 %v47
  %2061 = vmatprep.subr.mxu0 0.0
  %2062 = vmatpush1.msra.mxu0 %v48
  %2063 = vmatprep.subr.mxu0 0.0
  %2064 = vmatpush1.msra.mxu0 %v49
  %2065 = vmatprep.subr.mxu0 0.0
  %2066 = vmatpush1.msra.mxu0 0.0
  %2067 = vmatprep.subr.mxu0 0.0
  %2068 = vmatpush1.msra.mxu0 0.0
  %2069 = vmatprep.subr.mxu0 0.0
  %2070 = vmatpush1.msra.mxu0 0.0
  %2071 = vmatprep.subr.mxu0 0.0
  %2072 = vmatpush1.msra.mxu0 0.0
  %2073 = vmatprep.subr.mxu0 0.0
  %2074 = vmatpush1.msra.mxu0 0.0
  %2075 = vmatprep.subr.mxu0 0.0
  %2076 = vmatpush1.msra.mxu0 0.0
  %2077 = vmatprep.subr.mxu0 0.0
  %2078 = vmatpush1.msra.mxu0 0.0
  %2079 = vmatprep.subr.mxu0 0.0
  %2080 = vmatpush1.msra.mxu0 0.0
  %2081 = vmatprep.subr.mxu0 0.0
  %2082 = vmatpush1.msra.mxu0 0.0
  %2083 = vmatprep.subr.mxu0 0.0
  %2084 = vmatpush1.msra.mxu0 0.0
  %2085 = vmatprep.subr.mxu0 0.0
  %2086 = vmatpush1.msra.mxu0 0.0
  %2087 = vmatprep.subr.mxu0 0.0
  %2088 = vmatpush1.msra.mxu0 0.0
  %2089 = vmatprep.subr.mxu0 0.0
  %2090 = vmatpush1.msra.mxu0 0.0
  %2091 = vmatprep.subr.mxu0 0.0
  %2092 = vmatpush1.msra.mxu0 0.0
  %2093 = vmatprep.subr.mxu0 0.0
  %2094 = vmatpush1.msra.mxu0 0.0
  %2095 = vmatprep.subr.mxu0 0.0
  %2096 = vmatpush1.msra.mxu0 0.0
  %2097 = vmatprep.subr.mxu0 0.0
  %2098 = vmatpush1.msra.mxu0 0.0
  %2099 = vmatprep.subr.mxu0 0.0
  %2100 = vmatpush1.msra.mxu0 0.0
  %2101 = vmatprep.subr.mxu0 0.0
  %2102 = vmatpush1.msra.mxu0 0.0
  %2103 = vmatprep.subr.mxu0 0.0
  %2104 = vmatpush1.msra.mxu0 0.0
  %2105 = vmatprep.subr.mxu0 0.0
  %2106 = vmatpush1.msra.mxu0 0.0
  %2107 = vmatprep.subr.mxu0 0.0
  %2108 = vmatpush1.msra.mxu0 0.0
  %2109 = vmatprep.subr.mxu0 0.0
  %2110 = vmatpush1.msra.mxu0 0.0
  %2111 = vmatprep.subr.mxu0 0.0
  %2112 = vmatpush1.msra.mxu0 0.0
  %2113 = vmatprep.subr.mxu0 0.0
  %2114 = vmatpush1.msra.mxu0 0.0
  %2115 = vmatprep.subr.mxu0 0.0
  %2116 = vmatpush1.msra.mxu0 0.0
  %2117 = vmatprep.subr.mxu0 0.0
  %2118 = vmatpush1.msra.mxu0 0.0
  %2119 = vmatprep.subr.mxu0 0.0
  %2120 = vmatpush1.msra.mxu0 0.0
  %2121 = vmatprep.mubr.f32.mxu0 0.0
  %2122 = vmatmul.mubr.f32.gmra.mrb[0].mxu0 %v2055
  %v2123 = vpop.f32.mrb[0].mxu0
  %v2124 = vadd.f32 0.0, %v2123
  %v2125 = vpop.f32.mrb[0].mxu0
  %2126 = vdwg.mxu0
  %v2127 = vadd.f32 %v208, %v2124
  %v2128 = vtanh.pop %v2127
  %v2130 = vsel %vm63, %v2128, 0
  %2132 = vmatprep.subr.mxu0 0.0
  %2133 = vmatpush1.msra.mxu0 %v338
  %2134 = vmatprep.subr.mxu0 0.0
  %2135 = vmatpush1.msra.mxu0 %v343
  %2136 = vmatprep.subr.mxu0 0.0
  %2137 = vmatpush1.msra.mxu0 %v348
  %2138 = vmatprep.subr.mxu0 0.0
  %2139 = vmatpush1.msra.mxu0 %v353
  %2140 = vmatprep.subr.mxu0 0.0
  %2141 = vmatpush1.msra.mxu0 0.0
  %2142 = vmatprep.subr.mxu0 0.0
  %2143 = vmatpush1.msra.mxu0 0.0
  %2144 = vmatprep.subr.mxu0 0.0
  %2145 = vmatpush1.msra.mxu0 0.0
  %2146 = vmatprep.subr.mxu0 0.0
  %2147 = vmatpush1.msra.mxu0 0.0
  %2148 = vmatprep.subr.mxu0 0.0
  %2149 = vmatpush1.msra.mxu0 0.0
  %2150 = vmatprep.subr.mxu0 0.0
  %2151 = vmatpush1.msra.mxu0 0.0
  %2152 = vmatprep.subr.mxu0 0.0
  %2153 = vmatpush1.msra.mxu0 0.0
  %2154 = vmatprep.subr.mxu0 0.0
  %2155 = vmatpush1.msra.mxu0 0.0
  %2156 = vmatprep.subr.mxu0 0.0
  %2157 = vmatpush1.msra.mxu0 0.0
  %2158 = vmatprep.subr.mxu0 0.0
  %2159 = vmatpush1.msra.mxu0 0.0
  %2160 = vmatprep.subr.mxu0 0.0
  %2161 = vmatpush1.msra.mxu0 0.0
  %2162 = vmatprep.subr.mxu0 0.0
  %2163 = vmatpush1.msra.mxu0 0.0
  %2164 = vmatprep.subr.mxu0 0.0
  %2165 = vmatpush1.msra.mxu0 0.0
  %2166 = vmatprep.subr.mxu0 0.0
  %2167 = vmatpush1.msra.mxu0 0.0
  %2168 = vmatprep.subr.mxu0 0.0
  %2169 = vmatpush1.msra.mxu0 0.0
  %2170 = vmatprep.subr.mxu0 0.0
  %2171 = vmatpush1.msra.mxu0 0.0
  %2172 = vmatprep.subr.mxu0 0.0
  %2173 = vmatpush1.msra.mxu0 0.0
  %2174 = vmatprep.subr.mxu0 0.0
  %2175 = vmatpush1.msra.mxu0 0.0
  %2176 = vmatprep.subr.mxu0 0.0
  %2177 = vmatpush1.msra.mxu0 0.0
  %2178 = vmatprep.subr.mxu0 0.0
  %2179 = vmatpush1.msra.mxu0 0.0
  %2180 = vmatprep.subr.mxu0 0.0
  %2181 = vmatpush1.msra.mxu0 0.0
  %2182 = vmatprep.subr.mxu0 0.0
  %2183 = vmatpush1.msra.mxu0 0.0
  %2184 = vmatprep.subr.mxu0 0.0
  %2185 = vmatpush1.msra.mxu0 0.0
  %2186 = vmatprep.subr.mxu0 0.0
  %2187 = vmatpush1.msra.mxu0 0.0
  %2188 = vmatprep.subr.mxu0 0.0
  %2189 = vmatpush1.msra.mxu0 0.0
  %2190 = vmatprep.subr.mxu0 0.0
  %2191 = vmatpush1.msra.mxu0 0.0
  %2192 = vmatprep.subr.mxu0 0.0
  %2193 = vmatpush1.msra.mxu0 0.0
  %2194 = vmatprep.subr.mxu0 0.0
  %2195 = vmatpush1.msra.mxu0 0.0
  %2196 = vmatprep.mubr.f32.mxu0 0.0
  %2197 = vmatmul.mubr.f32.gmra.mrb[0].mxu0 %v2130
  %v2198 = vpop.f32.mrb[0].mxu0
  %v2199 = vadd.f32 0.0, %v2198
  %v2200 = vpop.f32.mrb[0].mxu0
  %2201 = vdwg.mxu0
  %v2202 = vmul.f32 %v2199, 0.17677669
  %vm2203 = vcmp.lt.f32.partialorder %v1983, 0.5
  %vm2204 = vmand %vm578, %vm2203
  %v2205 = vsel %vm2204, %v2202, -1e+09
  %s2206 = scalar_lea.vmem %s6, 14
  %2207 = vst [vmem:[%s2206] sm:$0x3] %v2205
  // Predicated region
  $region26: #{sequence_routing_forward.5} parent=0 // pred_check
    _
  $region27: #{sequence_routing_forward.5} parent=0 // pred_check_branch
    %2209 = sbr.rel (0) target = $region29
  $region28: #{sequence_routing_forward.5} parent=0 // pred_region
    _
  $region29: #{sequence_routing_forward.5} parent=0 // pred_fallthru
    _
  // Predicated region
  $region30: #{sequence_routing_forward.5} parent=0 // pred_check
    _
  $region31: #{sequence_routing_forward.5} parent=0 // pred_check_branch
    %2211 = sbr.rel (0) target = $region33
  $region32: #{sequence_routing_forward.5} parent=0 // pred_region
    _
  $region33: #{sequence_routing_forward.5} parent=0 // pred_fallthru
    _

</llo_original>
